<compile_context>
chip_gen: v6e
topology: v6e:2x2x1
jax: 0.10.0
libtpu: 0.0.40
codegen_flags: <defaults>
</compile_context>

<pallas_src>
import math
from functools import partial

import numpy as np
import jax
import jax.numpy as jnp
from jax.experimental import pallas as pl
from jax.experimental.pallas import tpu as pltpu


# ----------------------------------------------------------------------------
# ConvTranspose2d(3, stride=2, padding=1, output_padding=1) parity taps:
# out[2a+p, 2b+q] = sum over (dr, dc, k):  d[a+dr, b+dc] * W_k   (zero OOB)
# ----------------------------------------------------------------------------
_UP_TAPS = {
    (0, 0): ((0, 0, 4),),
    (0, 1): ((0, 0, 5), (0, 1, 3)),
    (1, 0): ((0, 0, 7), (1, 0, 1)),
    (1, 1): ((0, 0, 8), (0, 1, 6), (1, 0, 2), (1, 1, 0)),
}
# (dr, dc) -> which of the 9 stride-1 shift operators realizes that read.
_UP_SHIFT_K = {(0, 0): 4, (0, 1): 5, (1, 0): 7, (1, 1): 8}


# ----------------------------------------------------------------------------
# Constant 0/1 spatial operators (built with numpy at trace time).
# ----------------------------------------------------------------------------
def _shift_operators(H, W):
    """(9, HW, HW): M_k so that (x @ M_k)[:, h*W+w] = x[:, (h+dy)*W+(w+dx)] or 0."""
    HW = H * W
    m = np.zeros((9, HW, HW), np.float32)
    hh, ww = np.meshgrid(np.arange(H), np.arange(W), indexing="ij")
    for ky in range(3):
        for kx in range(3):
            dy, dx = ky - 1, kx - 1
            sh, sw = hh + dy, ww + dx
            ok = (sh >= 0) & (sh < H) & (sw >= 0) & (sw < W)
            m[ky * 3 + kx, (sh * W + sw)[ok], (hh * W + ww)[ok]] = 1.0
    return jnp.asarray(m, jnp.bfloat16)


def _down_select_operator(H, W):
    """(HW, Ho*Wo): picks the even (h, w) columns (stride-2 subsample)."""
    Ho, Wo = H // 2, W // 2
    s = np.zeros((H * W, Ho * Wo), np.float32)
    a, b = np.meshgrid(np.arange(Ho), np.arange(Wo), indexing="ij")
    s[(2 * a * W + 2 * b).ravel(), (a * Wo + b).ravel()] = 1.0
    return jnp.asarray(s, jnp.bfloat16)


def _up_interleave_operator(H, W):
    """(4*HW, 4*HW): parity-blocked columns -> interleaved (2H, 2W) flat layout."""
    HW = H * W
    p = np.zeros((4 * HW, 4 * HW), np.float32)
    a, b = np.meshgrid(np.arange(H), np.arange(W), indexing="ij")
    for pp in range(2):
        for qq in range(2):
            src = (2 * pp + qq) * HW + a * W + b
            dst = (2 * a + pp) * (2 * W) + (2 * b + qq)
            p[src.ravel(), dst.ravel()] = 1.0
    return jnp.asarray(p, jnp.bfloat16)


# ----------------------------------------------------------------------------
# Fused kernel: whole ResDensePool forward for one image, lane-dense (C, H*W).
# ----------------------------------------------------------------------------
def _rdp_fused_kernel(*refs, cout, has_res1, mode):
    it = iter(refs)
    x_ref = next(it)
    xu_ref = next(it) if mode == "up" else None
    shifts_ref = next(it)
    if has_res1:
        w_r1, s_r1, b_r1 = next(it), next(it), next(it)
    w_dw, s_dw, b_dw = next(it), next(it), next(it)
    w_pw, b_pw = next(it), next(it)
    w_dx, w_dr, s_d, b_d = next(it), next(it), next(it), next(it)
    if mode in ("same", "down"):
        w_p, s_p, b_p = next(it), next(it), next(it)
        s_sel = next(it) if mode == "down" else None
    else:
        wt = [next(it) for _ in range(4)]
        s_t, b_t = next(it), next(it)
        w_fp, w_fu, s_f, b_f = next(it), next(it), next(it), next(it)
        p_perm = next(it)
    o_ref = next(it)

    def shift(v_bf16, k):
        # Exact border-aware spatial shift of the (C, H*W) slab via a constant
        # 0/1 operator on the lane axis (k == 4 is the identity tap).
        if k == 4:
            return v_bf16.astype(jnp.float32)
        return jnp.dot(v_bf16, shifts_ref[k], preferred_element_type=jnp.float32)

    xf = x_ref[0]                                        # (cin, HW) f32
    xb = xf.astype(jnp.bfloat16)

    # ---- res1: 1x1 + BN + ReLU (or identity) --------------------------------
    if has_res1:
        r1 = jnp.dot(w_r1[...], xb, preferred_element_type=jnp.float32)
        r1 = jnp.maximum(r1 * s_r1[...] + b_r1[...], 0.0)
    else:
        r1 = xf                                          # cin == cout
    r1b = r1.astype(jnp.bfloat16)
    HW = r1.shape[1]

    # ---- res2: depthwise 3x3 + BN + ReLU (per-channel, f32 epilogue) --------
    wdw = w_dw[...]                                      # (cout, 9) f32
    acc = jnp.zeros((cout, HW), jnp.float32)
    for k in range(9):
        acc = acc + shift(r1b, k) * wdw[:, k:k + 1]
    r2 = jnp.maximum(acc * s_dw[...] + b_dw[...], 0.0)

    # ---- res2: 1x1 (bias only) + residual add -------------------------------
    pw = jnp.dot(w_pw[...], r2.astype(jnp.bfloat16),
                 preferred_element_type=jnp.float32) + b_pw[...]
    x_res = r1 + pw                                      # (cout, HW) f32

    # ---- dense: 1x1 on concat(x, x_res) + BN + ReLU (split weight) ----------
    # (split dots instead of a sublane-unaligned concat; K gain would be tiny)
    d = jnp.dot(w_dx[...], xb, preferred_element_type=jnp.float32)
    d = d + jnp.dot(w_dr[...], x_res.astype(jnp.bfloat16),
                    preferred_element_type=jnp.float32)
    d = jnp.maximum(d * s_d[...] + b_d[...], 0.0)
    db = d.astype(jnp.bfloat16)                          # (cout, HW)

    if mode in ("same", "down"):
        # 3x3 conv as ONE K = 9*cout matmul over the stacked tap slab.
        patches = jnp.concatenate(
            [shift(db, k).astype(jnp.bfloat16) for k in range(9)], axis=0)
        if mode == "down":
            # stride-2: pick the even (h, w) columns with the selection matrix.
            patches = jnp.dot(patches, s_sel[...],
                              preferred_element_type=jnp.float32).astype(jnp.bfloat16)
        y = jnp.dot(w_p[...], patches, preferred_element_type=jnp.float32)
        y = jnp.maximum(y * s_p[...] + b_p[...], 0.0)
        o_ref[0] = y.astype(o_ref.dtype)
    else:
        # ConvTranspose2d(3, s=2, p=1, op=1): 4 parity planes (one K-concat
        # matmul each) + BN + ReLU; interleave to the final (cout, 2H*2W) slab
        # with a 0/1 permutation matmul; then pool_final 1x1 + BN + ReLU with
        # x_up folded in as a second (split-weight) matmul.  Output is already
        # NCHW-flat, so the store is lane-dense and no XLA interleave follows.
        us = []
        for gi, (p, q) in enumerate(((0, 0), (0, 1), (1, 0), (1, 1))):
            taps = _UP_TAPS[(p, q)]
            dcat = jnp.concatenate(
                [shift(db, _UP_SHIFT_K[(dr, dc)]).astype(jnp.bfloat16)
                 for (dr, dc, _) in taps], axis=0)
            u = jnp.dot(wt[gi][...], dcat, preferred_element_type=jnp.float32)
            u = jnp.maximum(u * s_t[...] + b_t[...], 0.0)
            us.append(u.astype(jnp.bfloat16))
        u_cat = jnp.concatenate(us, axis=1)              # (cout, 4*HW) parity-blocked
        u_full = jnp.dot(u_cat, p_perm[...],
                         preferred_element_type=jnp.float32).astype(jnp.bfloat16)
        f = jnp.dot(w_fp[...], u_full, preferred_element_type=jnp.float32)
        f = f + jnp.dot(w_fu[...], xu_ref[0].astype(jnp.bfloat16),
                        preferred_element_type=jnp.float32)
        f = jnp.maximum(f * s_f[...] + b_f[...], 0.0)
        o_ref[0] = f.astype(o_ref.dtype)


# ----------------------------------------------------------------------------
# ResDensePool forward (NCHW in / NCHW out, like the PyTorch module)
# ----------------------------------------------------------------------------
def res_dense_pool_forward(kp, x_nchw, x_up_nchw=None):
    N, cin, H, W = x_nchw.shape
    HW = H * W
    cout, mode, has_res1 = kp["cout"], kp["pool"], kp["has_res1"]

    operands = [x_nchw.reshape(N, cin, HW)]              # free contiguous reshape
    in_specs = [pl.BlockSpec((1, cin, HW), lambda n: (n, 0, 0))]
    if mode == "up":
        up_c = x_up_nchw.shape[1]
        operands.append(x_up_nchw.reshape(N, up_c, 4 * HW))
        in_specs.append(pl.BlockSpec((1, up_c, 4 * HW), lambda n: (n, 0, 0)))

    def add(a):
        operands.append(a)
        in_specs.append(pl.BlockSpec(a.shape, lambda n, _nd=a.ndim: (0,) * _nd))

    add(_shift_operators(H, W))
    names = (["w_r1", "s_r1", "b_r1"] if has_res1 else []) + \
            ["w_dw", "s_dw", "b_dw", "w_pw", "b_pw", "w_dx", "w_dr", "s_d", "b_d"]
    if mode in ("same", "down"):
        names += ["w_p", "s_p", "b_p"]
    else:
        names += ["wT00", "wT01", "wT10", "wT11", "s_t", "b_t",
                  "w_fp", "w_fu", "s_f", "b_f"]
    for nm in names:
        add(kp[nm])
    if mode == "down":
        add(_down_select_operator(H, W))
    if mode == "up":
        add(_up_interleave_operator(H, W))

    if mode == "same":
        Mo, oh, ow = HW, H, W
    elif mode == "down":
        Mo, oh, ow = (H // 2) * (W // 2), H // 2, W // 2
    else:
        Mo, oh, ow = 4 * HW, 2 * H, 2 * W

    out = pl.pallas_call(
        partial(_rdp_fused_kernel, cout=cout, has_res1=has_res1, mode=mode),
        out_shape=jax.ShapeDtypeStruct((N, cout, Mo), jnp.float32),
        grid=(N,),
        in_specs=in_specs,
        out_specs=pl.BlockSpec((1, cout, Mo), lambda n: (n, 0, 0)),
        compiler_params=pltpu.CompilerParams(dimension_semantics=("parallel",)),
    )(*operands)
    return out.reshape(N, cout, oh, ow)                  # free reshape -> NCHW


# ----------------------------------------------------------------------------
# Deterministic parameter construction (PyTorch layouts) + BN-folding prep
# ----------------------------------------------------------------------------
class _Rng:
    def __init__(self, seed):
        self.key = jax.random.PRNGKey(seed)

    def next(self):
        self.key, sub = jax.random.split(self.key)
        return sub


def _init_bn(rng, c):
    return {"gamma": 1.0 + 0.1 * jax.random.normal(rng.next(), (c,), jnp.float32),
            "beta": 0.1 * jax.random.normal(rng.next(), (c,), jnp.float32),
            "mean": 0.1 * jax.random.normal(rng.next(), (c,), jnp.float32),
            "var": 0.5 + jax.random.uniform(rng.next(), (c,), jnp.float32),
            "eps": jnp.float32(1e-5)}


def init_res_dense_pool(seed, in_c, out_c, pool, up_c=None):
    rng = _Rng(seed)
    if pool == "up" and up_c is None:
        up_c = out_c // 2

    def lin(ci, co):
        return {"w": jax.random.normal(rng.next(), (co, ci), jnp.float32) / math.sqrt(ci),
                "b": 0.05 * jax.random.normal(rng.next(), (co,), jnp.float32)}

    p = {"in_c": in_c, "out_c": out_c, "pool": pool, "up_c": up_c, "res1": None}
    if in_c != out_c:
        p["res1"] = dict(lin(in_c, out_c), bn=_init_bn(rng, out_c))
    p["res2_dw"] = {"w": 0.2 * jax.random.normal(rng.next(), (out_c, 1, 3, 3), jnp.float32),
                    "b": 0.05 * jax.random.normal(rng.next(), (out_c,), jnp.float32),
                    "bn": _init_bn(rng, out_c)}
    p["res2_pw"] = lin(out_c, out_c)
    p["dense"] = dict(lin(in_c + out_c, out_c), bn=_init_bn(rng, out_c))
    p["pools"] = {"w": jax.random.normal(rng.next(), (out_c, out_c, 3, 3),
                                         jnp.float32) / math.sqrt(9 * out_c),
                  "b": 0.05 * jax.random.normal(rng.next(), (out_c,), jnp.float32),
                  "bn": _init_bn(rng, out_c)}
    if pool == "up":
        p["pool_final"] = dict(lin(out_c + up_c, out_c), bn=_init_bn(rng, out_c))
    return p


def _fold_bn(bn, conv_bias, cout):
    scale = bn["gamma"] / jnp.sqrt(bn["var"] + bn["eps"])
    shift = bn["beta"] + (conv_bias - bn["mean"]) * scale
    return (scale.reshape(cout, 1).astype(jnp.float32),
            shift.reshape(cout, 1).astype(jnp.float32))


def prepare_kernel_params(p):
    in_c, out_c, pool = p["in_c"], p["out_c"], p["pool"]
    kp = {"pool": pool, "cout": out_c, "has_res1": p["res1"] is not None}
    if kp["has_res1"]:
        kp["w_r1"] = p["res1"]["w"].astype(jnp.bfloat16)                   # (O, I)
        kp["s_r1"], kp["b_r1"] = _fold_bn(p["res1"]["bn"], p["res1"]["b"], out_c)
    kp["w_dw"] = p["res2_dw"]["w"].reshape(out_c, 9).astype(jnp.float32)   # (C, 9)
    kp["s_dw"], kp["b_dw"] = _fold_bn(p["res2_dw"]["bn"], p["res2_dw"]["b"], out_c)
    kp["w_pw"] = p["res2_pw"]["w"].astype(jnp.bfloat16)
    kp["b_pw"] = p["res2_pw"]["b"].reshape(out_c, 1).astype(jnp.float32)
    wd = p["dense"]["w"]                                                   # (O, in_c+out_c)
    kp["w_dx"] = wd[:, :in_c].astype(jnp.bfloat16)
    kp["w_dr"] = wd[:, in_c:].astype(jnp.bfloat16)
    kp["s_d"], kp["b_d"] = _fold_bn(p["dense"]["bn"], p["dense"]["b"], out_c)
    if pool in ("down", "same"):
        w = p["pools"]["w"]                                                # Conv2d (O, I, 3, 3)
        kp["w_p"] = jnp.transpose(w, (0, 2, 3, 1)).reshape(out_c, 9 * out_c).astype(jnp.bfloat16)
        kp["s_p"], kp["b_p"] = _fold_bn(p["pools"]["bn"], p["pools"]["b"], out_c)
    else:
        w = jnp.transpose(p["pools"]["w"], (1, 0, 2, 3))                   # ConvT (I,O,..) -> (O,I,3,3)
        for (pp, qq), taps in _UP_TAPS.items():
            kp[f"wT{pp}{qq}"] = jnp.concatenate(
                [w[:, :, k // 3, k % 3] for (_, _, k) in taps], axis=1).astype(jnp.bfloat16)
        kp["s_t"], kp["b_t"] = _fold_bn(p["pools"]["bn"], p["pools"]["b"], out_c)
        wf = p["pool_final"]["w"]                                          # (O, out_c + up_c)
        kp["w_fp"] = wf[:, :out_c].astype(jnp.bfloat16)
        kp["w_fu"] = wf[:, out_c:].astype(jnp.bfloat16)
        kp["s_f"], kp["b_f"] = _fold_bn(p["pool_final"]["bn"], p["pool_final"]["b"], out_c)
    return kp


# ----------------------------------------------------------------------------
# Pure-JAX reference (eval-mode module semantics) for correctness checking
# ----------------------------------------------------------------------------
def _bn_ref(x, bn):
    inv = bn["gamma"] * jax.lax.rsqrt(bn["var"] + bn["eps"])
    return (x - bn["mean"]) * inv + bn["beta"]


def _conv2d_ref(x, w_oihw, b, stride, pad, groups=1):
    y = jax.lax.conv_general_dilated(
        x, jnp.transpose(w_oihw, (2, 3, 1, 0)), (stride, stride),
        [(pad, pad), (pad, pad)], dimension_numbers=("NHWC", "HWIO", "NHWC"),
        feature_group_count=groups)
    return y + b


def _convT2d_ref(x, w_iohw, b):
    # ConvTranspose2d(k=3, stride=2, padding=1, output_padding=1)
    w = jnp.transpose(w_iohw[:, :, ::-1, ::-1], (2, 3, 0, 1))
    y = jax.lax.conv_general_dilated(
        x, w, (1, 1), [(1, 2), (1, 2)], lhs_dilation=(2, 2),
        dimension_numbers=("NHWC", "HWIO", "NHWC"))
    return y + b


def rdp_reference(p, x_nchw, x_up_nchw=None):
    x = jnp.transpose(x_nchw, (0, 2, 3, 1)).astype(jnp.float32)
    out_c = p["out_c"]
    if p["res1"] is not None:
        r1 = x @ p["res1"]["w"].T + p["res1"]["b"]
        r1 = jnp.maximum(_bn_ref(r1, p["res1"]["bn"]), 0.0)
    else:
        r1 = x
    dw = _conv2d_ref(r1, p["res2_dw"]["w"], p["res2_dw"]["b"], 1, 1, groups=out_c)
    r2 = jnp.maximum(_bn_ref(dw, p["res2_dw"]["bn"]), 0.0)
    r2 = r2 @ p["res2_pw"]["w"].T + p["res2_pw"]["b"]
    x_res = r1 + r2
    x2 = jnp.concatenate([x, x_res], axis=-1)
    d = jnp.maximum(_bn_ref(x2 @ p["dense"]["w"].T + p["dense"]["b"], p["dense"]["bn"]), 0.0)
    if p["pool"] == "down":
        y = _conv2d_ref(d, p["pools"]["w"], p["pools"]["b"], 2, 1)
        y = jnp.maximum(_bn_ref(y, p["pools"]["bn"]), 0.0)
    elif p["pool"] == "same":
        y = _conv2d_ref(d, p["pools"]["w"], p["pools"]["b"], 1, 1)
        y = jnp.maximum(_bn_ref(y, p["pools"]["bn"]), 0.0)
    else:
        u = _convT2d_ref(d, p["pools"]["w"], p["pools"]["b"])
        u = jnp.maximum(_bn_ref(u, p["pools"]["bn"]), 0.0)
        xu = jnp.transpose(x_up_nchw, (0, 2, 3, 1)).astype(jnp.float32)
        cat = jnp.concatenate([u, xu], axis=-1)
        y = cat @ p["pool_final"]["w"].T + p["pool_final"]["b"]
        y = jnp.maximum(_bn_ref(y, p["pool_final"]["bn"]), 0.0)
    return jnp.transpose(y, (0, 3, 1, 2))


# ----------------------------------------------------------------------------
if __name__ == "__main__":
    B = 2
    cases = [
        # (seed, pool,   in_c, out_c, H,  W,  up_c)
        (1, "down", 4, 16, 16, 16, None),   # in_c != out_c -> res1 conv branch
        (2, "same", 16, 16, 16, 16, None),  # in_c == out_c -> identity res1
        (3, "up", 8, 16, 16, 16, 8),        # transposed-conv / skip-concat path
    ]
    root = jax.random.PRNGKey(0)
    for seed, pool, in_c, out_c, H, W, up_c in cases:
        p = init_res_dense_pool(seed, in_c, out_c, pool, up_c)
        kp = prepare_kernel_params(p)
        root, k1, k2 = jax.random.split(root, 3)
        x = jax.random.normal(k1, (B, in_c, H, W), jnp.float32)
        if pool == "up":
            x_up = jax.random.normal(k2, (B, p["up_c"], 2 * H, 2 * W), jnp.float32)
            out = jax.jit(lambda a, b: res_dense_pool_forward(kp, a, b))(x, x_up)
            ref = rdp_reference(p, x, x_up)
        else:
            out = jax.jit(lambda a: res_dense_pool_forward(kp, a))(x)
            ref = rdp_reference(p, x)
        out = jax.block_until_ready(out)
        assert out.shape == ref.shape, (pool, out.shape, ref.shape)
        assert bool(jnp.all(jnp.isfinite(out))), pool
        err = float(jnp.max(jnp.abs(out - ref)))
        scale = float(jnp.max(jnp.abs(ref))) + 1e-6
        assert err <= 5e-2 * scale + 1e-2, (pool, err, scale)  # bf16-MXU tolerance
    print("KERNEL_OK")
</pallas_src>

<mosaic_0001>
module attributes {stable_mosaic.version = 11 : i64} {
  func.func @_rdp_fused_kernel(%arg0: i32, %arg1: memref<1x4x256xf32, #tpu.memory_space<vmem>>, %arg2: memref<9x256x256xbf16, #tpu.memory_space<vmem>>, %arg3: memref<16x4xbf16, #tpu.memory_space<vmem>>, %arg4: memref<16x1xf32, #tpu.memory_space<vmem>>, %arg5: memref<16x1xf32, #tpu.memory_space<vmem>>, %arg6: memref<16x9xf32, #tpu.memory_space<vmem>>, %arg7: memref<16x1xf32, #tpu.memory_space<vmem>>, %arg8: memref<16x1xf32, #tpu.memory_space<vmem>>, %arg9: memref<16x16xbf16, #tpu.memory_space<vmem>>, %arg10: memref<16x1xf32, #tpu.memory_space<vmem>>, %arg11: memref<16x4xbf16, #tpu.memory_space<vmem>>, %arg12: memref<16x16xbf16, #tpu.memory_space<vmem>>, %arg13: memref<16x1xf32, #tpu.memory_space<vmem>>, %arg14: memref<16x1xf32, #tpu.memory_space<vmem>>, %arg15: memref<16x144xbf16, #tpu.memory_space<vmem>>, %arg16: memref<16x1xf32, #tpu.memory_space<vmem>>, %arg17: memref<16x1xf32, #tpu.memory_space<vmem>>, %arg18: memref<256x64xbf16, #tpu.memory_space<vmem>>, %arg19: memref<1x16x64xf32, #tpu.memory_space<vmem>>) attributes {dimension_semantics = [#tpu.dimension_semantics<parallel>], iteration_bounds = array<i64: 2>, scalar_prefetch = 0 : i64, scratch_operands = 0 : i64, tpu.core_type = #tpu.core_type<tc>, window_params = [{transform_indices = @transform_0, window_bounds = array<i64: 1, 4, 256>}, {pipeline_mode = #tpu.pipeline_mode<synchronous>, transform_indices = @transform_1, window_bounds = array<i64: 9, 256, 256>}, {pipeline_mode = #tpu.pipeline_mode<synchronous>, transform_indices = @transform_2, window_bounds = array<i64: 16, 4>}, {pipeline_mode = #tpu.pipeline_mode<synchronous>, transform_indices = @transform_3, window_bounds = array<i64: 16, 1>}, {pipeline_mode = #tpu.pipeline_mode<synchronous>, transform_indices = @transform_4, window_bounds = array<i64: 16, 1>}, {pipeline_mode = #tpu.pipeline_mode<synchronous>, transform_indices = @transform_5, window_bounds = array<i64: 16, 9>}, {pipeline_mode = #tpu.pipeline_mode<synchronous>, transform_indices = @transform_6, window_bounds = array<i64: 16, 1>}, {pipeline_mode = #tpu.pipeline_mode<synchronous>, transform_indices = @transform_7, window_bounds = array<i64: 16, 1>}, {pipeline_mode = #tpu.pipeline_mode<synchronous>, transform_indices = @transform_8, window_bounds = array<i64: 16, 16>}, {pipeline_mode = #tpu.pipeline_mode<synchronous>, transform_indices = @transform_9, window_bounds = array<i64: 16, 1>}, {pipeline_mode = #tpu.pipeline_mode<synchronous>, transform_indices = @transform_10, window_bounds = array<i64: 16, 4>}, {pipeline_mode = #tpu.pipeline_mode<synchronous>, transform_indices = @transform_11, window_bounds = array<i64: 16, 16>}, {pipeline_mode = #tpu.pipeline_mode<synchronous>, transform_indices = @transform_12, window_bounds = array<i64: 16, 1>}, {pipeline_mode = #tpu.pipeline_mode<synchronous>, transform_indices = @transform_13, window_bounds = array<i64: 16, 1>}, {pipeline_mode = #tpu.pipeline_mode<synchronous>, transform_indices = @transform_14, window_bounds = array<i64: 16, 144>}, {pipeline_mode = #tpu.pipeline_mode<synchronous>, transform_indices = @transform_15, window_bounds = array<i64: 16, 1>}, {pipeline_mode = #tpu.pipeline_mode<synchronous>, transform_indices = @transform_16, window_bounds = array<i64: 16, 1>}, {pipeline_mode = #tpu.pipeline_mode<synchronous>, transform_indices = @transform_17, window_bounds = array<i64: 256, 64>}, {transform_indices = @transform_18, window_bounds = array<i64: 1, 16, 64>}]} {
    %c0 = arith.constant 0 : index
    %c0_0 = arith.constant 0 : index
    %c0_1 = arith.constant 0 : index
    %0 = vector.load %arg1[%c0, %c0_0, %c0_1] : memref<1x4x256xf32, #tpu.memory_space<vmem>>, vector<1x4x256xf32>
    %1 = vector.shape_cast %0 : vector<1x4x256xf32> to vector<4x256xf32>
    %2 = arith.truncf %1 : vector<4x256xf32> to vector<4x256xbf16>
    %c0_2 = arith.constant 0 : index
    %c0_3 = arith.constant 0 : index
    %3 = vector.load %arg3[%c0_2, %c0_3] : memref<16x4xbf16, #tpu.memory_space<vmem>>, vector<16x4xbf16>
    %cst = arith.constant dense<0.000000e+00> : vector<16x256xf32>
    %4 = tpu.matmul %3, %2, %cst {dimension_numbers = #tpu.dot_dimension_numbers<[1], [0], [0], [1], [0, 0, 1, 1], [], []>} : vector<16x4xbf16>, vector<4x256xbf16>, vector<16x256xf32> -> vector<16x256xf32>
    %c0_4 = arith.constant 0 : index
    %c0_5 = arith.constant 0 : index
    %5 = vector.load %arg4[%c0_4, %c0_5] : memref<16x1xf32, #tpu.memory_space<vmem>>, vector<16x1xf32>
    %6 = vector.broadcast %5 : vector<16x1xf32> to vector<16x256xf32>
    %7 = arith.mulf %4, %6 : vector<16x256xf32>
    %c0_6 = arith.constant 0 : index
    %c0_7 = arith.constant 0 : index
    %8 = vector.load %arg5[%c0_6, %c0_7] : memref<16x1xf32, #tpu.memory_space<vmem>>, vector<16x1xf32>
    %9 = vector.broadcast %8 : vector<16x1xf32> to vector<16x256xf32>
    %10 = arith.addf %7, %9 : vector<16x256xf32>
    %cst_8 = arith.constant 0.000000e+00 : f32
    %11 = vector.broadcast %cst_8 : f32 to vector<16x256xf32>
    %12 = arith.maximumf %10, %11 : vector<16x256xf32>
    %13 = arith.truncf %12 : vector<16x256xf32> to vector<16x256xbf16>
    %c0_9 = arith.constant 0 : index
    %c0_10 = arith.constant 0 : index
    %14 = vector.load %arg6[%c0_9, %c0_10] : memref<16x9xf32, #tpu.memory_space<vmem>>, vector<16x9xf32>
    %cst_11 = arith.constant 0.000000e+00 : f32
    %15 = vector.broadcast %cst_11 : f32 to vector<16x256xf32>
    %c0_12 = arith.constant 0 : index
    %c0_13 = arith.constant 0 : index
    %c0_14 = arith.constant 0 : index
    %16 = vector.load %arg2[%c0_12, %c0_13, %c0_14] : memref<9x256x256xbf16, #tpu.memory_space<vmem>>, vector<1x256x256xbf16>
    %17 = vector.shape_cast %16 : vector<1x256x256xbf16> to vector<256x256xbf16>
    %cst_15 = arith.constant dense<0.000000e+00> : vector<16x256xf32>
    %18 = tpu.matmul %13, %17, %cst_15 {dimension_numbers = #tpu.dot_dimension_numbers<[1], [0], [0], [1], [0, 0, 1, 1], [], []>} : vector<16x256xbf16>, vector<256x256xbf16>, vector<16x256xf32> -> vector<16x256xf32>
    %19 = vector.extract_strided_slice %14 {offsets = [0, 0], sizes = [16, 1], strides = [1, 1]} : vector<16x9xf32> to vector<16x1xf32>
    %20 = vector.broadcast %19 : vector<16x1xf32> to vector<16x256xf32>
    %21 = arith.mulf %18, %20 : vector<16x256xf32>
    %22 = arith.addf %15, %21 : vector<16x256xf32>
    %c1 = arith.constant 1 : index
    %c0_16 = arith.constant 0 : index
    %c0_17 = arith.constant 0 : index
    %23 = vector.load %arg2[%c1, %c0_16, %c0_17] : memref<9x256x256xbf16, #tpu.memory_space<vmem>>, vector<1x256x256xbf16>
    %24 = vector.shape_cast %23 : vector<1x256x256xbf16> to vector<256x256xbf16>
    %cst_18 = arith.constant dense<0.000000e+00> : vector<16x256xf32>
    %25 = tpu.matmul %13, %24, %cst_18 {dimension_numbers = #tpu.dot_dimension_numbers<[1], [0], [0], [1], [0, 0, 1, 1], [], []>} : vector<16x256xbf16>, vector<256x256xbf16>, vector<16x256xf32> -> vector<16x256xf32>
    %26 = vector.extract_strided_slice %14 {offsets = [0, 1], sizes = [16, 1], strides = [1, 1]} : vector<16x9xf32> to vector<16x1xf32>
    %27 = vector.broadcast %26 : vector<16x1xf32> to vector<16x256xf32>
    %28 = arith.mulf %25, %27 : vector<16x256xf32>
    %29 = arith.addf %22, %28 : vector<16x256xf32>
    %c2 = arith.constant 2 : index
    %c0_19 = arith.constant 0 : index
    %c0_20 = arith.constant 0 : index
    %30 = vector.load %arg2[%c2, %c0_19, %c0_20] : memref<9x256x256xbf16, #tpu.memory_space<vmem>>, vector<1x256x256xbf16>
    %31 = vector.shape_cast %30 : vector<1x256x256xbf16> to vector<256x256xbf16>
    %cst_21 = arith.constant dense<0.000000e+00> : vector<16x256xf32>
    %32 = tpu.matmul %13, %31, %cst_21 {dimension_numbers = #tpu.dot_dimension_numbers<[1], [0], [0], [1], [0, 0, 1, 1], [], []>} : vector<16x256xbf16>, vector<256x256xbf16>, vector<16x256xf32> -> vector<16x256xf32>
    %33 = vector.extract_strided_slice %14 {offsets = [0, 2], sizes = [16, 1], strides = [1, 1]} : vector<16x9xf32> to vector<16x1xf32>
    %34 = vector.broadcast %33 : vector<16x1xf32> to vector<16x256xf32>
    %35 = arith.mulf %32, %34 : vector<16x256xf32>
    %36 = arith.addf %29, %35 : vector<16x256xf32>
    %c3 = arith.constant 3 : index
    %c0_22 = arith.constant 0 : index
    %c0_23 = arith.constant 0 : index
    %37 = vector.load %arg2[%c3, %c0_22, %c0_23] : memref<9x256x256xbf16, #tpu.memory_space<vmem>>, vector<1x256x256xbf16>
    %38 = vector.shape_cast %37 : vector<1x256x256xbf16> to vector<256x256xbf16>
    %cst_24 = arith.constant dense<0.000000e+00> : vector<16x256xf32>
    %39 = tpu.matmul %13, %38, %cst_24 {dimension_numbers = #tpu.dot_dimension_numbers<[1], [0], [0], [1], [0, 0, 1, 1], [], []>} : vector<16x256xbf16>, vector<256x256xbf16>, vector<16x256xf32> -> vector<16x256xf32>
    %40 = vector.extract_strided_slice %14 {offsets = [0, 3], sizes = [16, 1], strides = [1, 1]} : vector<16x9xf32> to vector<16x1xf32>
    %41 = vector.broadcast %40 : vector<16x1xf32> to vector<16x256xf32>
    %42 = arith.mulf %39, %41 : vector<16x256xf32>
    %43 = arith.addf %36, %42 : vector<16x256xf32>
    %44 = arith.extf %13 : vector<16x256xbf16> to vector<16x256xf32>
    %45 = vector.extract_strided_slice %14 {offsets = [0, 4], sizes = [16, 1], strides = [1, 1]} : vector<16x9xf32> to vector<16x1xf32>
    %46 = vector.broadcast %45 : vector<16x1xf32> to vector<16x256xf32>
    %47 = arith.mulf %44, %46 : vector<16x256xf32>
    %48 = arith.addf %43, %47 : vector<16x256xf32>
    %c5 = arith.constant 5 : index
    %c0_25 = arith.constant 0 : index
    %c0_26 = arith.constant 0 : index
    %49 = vector.load %arg2[%c5, %c0_25, %c0_26] : memref<9x256x256xbf16, #tpu.memory_space<vmem>>, vector<1x256x256xbf16>
    %50 = vector.shape_cast %49 : vector<1x256x256xbf16> to vector<256x256xbf16>
    %cst_27 = arith.constant dense<0.000000e+00> : vector<16x256xf32>
    %51 = tpu.matmul %13, %50, %cst_27 {dimension_numbers = #tpu.dot_dimension_numbers<[1], [0], [0], [1], [0, 0, 1, 1], [], []>} : vector<16x256xbf16>, vector<256x256xbf16>, vector<16x256xf32> -> vector<16x256xf32>
    %52 = vector.extract_strided_slice %14 {offsets = [0, 5], sizes = [16, 1], strides = [1, 1]} : vector<16x9xf32> to vector<16x1xf32>
    %53 = vector.broadcast %52 : vector<16x1xf32> to vector<16x256xf32>
    %54 = arith.mulf %51, %53 : vector<16x256xf32>
    %55 = arith.addf %48, %54 : vector<16x256xf32>
    %c6 = arith.constant 6 : index
    %c0_28 = arith.constant 0 : index
    %c0_29 = arith.constant 0 : index
    %56 = vector.load %arg2[%c6, %c0_28, %c0_29] : memref<9x256x256xbf16, #tpu.memory_space<vmem>>, vector<1x256x256xbf16>
    %57 = vector.shape_cast %56 : vector<1x256x256xbf16> to vector<256x256xbf16>
    %cst_30 = arith.constant dense<0.000000e+00> : vector<16x256xf32>
    %58 = tpu.matmul %13, %57, %cst_30 {dimension_numbers = #tpu.dot_dimension_numbers<[1], [0], [0], [1], [0, 0, 1, 1], [], []>} : vector<16x256xbf16>, vector<256x256xbf16>, vector<16x256xf32> -> vector<16x256xf32>
    %59 = vector.extract_strided_slice %14 {offsets = [0, 6], sizes = [16, 1], strides = [1, 1]} : vector<16x9xf32> to vector<16x1xf32>
    %60 = vector.broadcast %59 : vector<16x1xf32> to vector<16x256xf32>
    %61 = arith.mulf %58, %60 : vector<16x256xf32>
    %62 = arith.addf %55, %61 : vector<16x256xf32>
    %c7 = arith.constant 7 : index
    %c0_31 = arith.constant 0 : index
    %c0_32 = arith.constant 0 : index
    %63 = vector.load %arg2[%c7, %c0_31, %c0_32] : memref<9x256x256xbf16, #tpu.memory_space<vmem>>, vector<1x256x256xbf16>
    %64 = vector.shape_cast %63 : vector<1x256x256xbf16> to vector<256x256xbf16>
    %cst_33 = arith.constant dense<0.000000e+00> : vector<16x256xf32>
    %65 = tpu.matmul %13, %64, %cst_33 {dimension_numbers = #tpu.dot_dimension_numbers<[1], [0], [0], [1], [0, 0, 1, 1], [], []>} : vector<16x256xbf16>, vector<256x256xbf16>, vector<16x256xf32> -> vector<16x256xf32>
    %66 = vector.extract_strided_slice %14 {offsets = [0, 7], sizes = [16, 1], strides = [1, 1]} : vector<16x9xf32> to vector<16x1xf32>
    %67 = vector.broadcast %66 : vector<16x1xf32> to vector<16x256xf32>
    %68 = arith.mulf %65, %67 : vector<16x256xf32>
    %69 = arith.addf %62, %68 : vector<16x256xf32>
    %c8 = arith.constant 8 : index
    %c0_34 = arith.constant 0 : index
    %c0_35 = arith.constant 0 : index
    %70 = vector.load %arg2[%c8, %c0_34, %c0_35] : memref<9x256x256xbf16, #tpu.memory_space<vmem>>, vector<1x256x256xbf16>
    %71 = vector.shape_cast %70 : vector<1x256x256xbf16> to vector<256x256xbf16>
    %cst_36 = arith.constant dense<0.000000e+00> : vector<16x256xf32>
    %72 = tpu.matmul %13, %71, %cst_36 {dimension_numbers = #tpu.dot_dimension_numbers<[1], [0], [0], [1], [0, 0, 1, 1], [], []>} : vector<16x256xbf16>, vector<256x256xbf16>, vector<16x256xf32> -> vector<16x256xf32>
    %73 = vector.extract_strided_slice %14 {offsets = [0, 8], sizes = [16, 1], strides = [1, 1]} : vector<16x9xf32> to vector<16x1xf32>
    %74 = vector.broadcast %73 : vector<16x1xf32> to vector<16x256xf32>
    %75 = arith.mulf %72, %74 : vector<16x256xf32>
    %76 = arith.addf %69, %75 : vector<16x256xf32>
    %c0_37 = arith.constant 0 : index
    %c0_38 = arith.constant 0 : index
    %77 = vector.load %arg7[%c0_37, %c0_38] : memref<16x1xf32, #tpu.memory_space<vmem>>, vector<16x1xf32>
    %78 = vector.broadcast %77 : vector<16x1xf32> to vector<16x256xf32>
    %79 = arith.mulf %76, %78 : vector<16x256xf32>
    %c0_39 = arith.constant 0 : index
    %c0_40 = arith.constant 0 : index
    %80 = vector.load %arg8[%c0_39, %c0_40] : memref<16x1xf32, #tpu.memory_space<vmem>>, vector<16x1xf32>
    %81 = vector.broadcast %80 : vector<16x1xf32> to vector<16x256xf32>
    %82 = arith.addf %79, %81 : vector<16x256xf32>
    %cst_41 = arith.constant 0.000000e+00 : f32
    %83 = vector.broadcast %cst_41 : f32 to vector<16x256xf32>
    %84 = arith.maximumf %82, %83 : vector<16x256xf32>
    %c0_42 = arith.constant 0 : index
    %c0_43 = arith.constant 0 : index
    %85 = vector.load %arg9[%c0_42, %c0_43] : memref<16x16xbf16, #tpu.memory_space<vmem>>, vector<16x16xbf16>
    %86 = arith.truncf %84 : vector<16x256xf32> to vector<16x256xbf16>
    %cst_44 = arith.constant dense<0.000000e+00> : vector<16x256xf32>
    %87 = tpu.matmul %85, %86, %cst_44 {dimension_numbers = #tpu.dot_dimension_numbers<[1], [0], [0], [1], [0, 0, 1, 1], [], []>} : vector<16x16xbf16>, vector<16x256xbf16>, vector<16x256xf32> -> vector<16x256xf32>
    %c0_45 = arith.constant 0 : index
    %c0_46 = arith.constant 0 : index
    %88 = vector.load %arg10[%c0_45, %c0_46] : memref<16x1xf32, #tpu.memory_space<vmem>>, vector<16x1xf32>
    %89 = vector.broadcast %88 : vector<16x1xf32> to vector<16x256xf32>
    %90 = arith.addf %87, %89 : vector<16x256xf32>
    %91 = arith.addf %12, %90 : vector<16x256xf32>
    %c0_47 = arith.constant 0 : index
    %c0_48 = arith.constant 0 : index
    %92 = vector.load %arg11[%c0_47, %c0_48] : memref<16x4xbf16, #tpu.memory_space<vmem>>, vector<16x4xbf16>
    %cst_49 = arith.constant dense<0.000000e+00> : vector<16x256xf32>
    %93 = tpu.matmul %92, %2, %cst_49 {dimension_numbers = #tpu.dot_dimension_numbers<[1], [0], [0], [1], [0, 0, 1, 1], [], []>} : vector<16x4xbf16>, vector<4x256xbf16>, vector<16x256xf32> -> vector<16x256xf32>
    %c0_50 = arith.constant 0 : index
    %c0_51 = arith.constant 0 : index
    %94 = vector.load %arg12[%c0_50, %c0_51] : memref<16x16xbf16, #tpu.memory_space<vmem>>, vector<16x16xbf16>
    %95 = arith.truncf %91 : vector<16x256xf32> to vector<16x256xbf16>
    %cst_52 = arith.constant dense<0.000000e+00> : vector<16x256xf32>
    %96 = tpu.matmul %94, %95, %cst_52 {dimension_numbers = #tpu.dot_dimension_numbers<[1], [0], [0], [1], [0, 0, 1, 1], [], []>} : vector<16x16xbf16>, vector<16x256xbf16>, vector<16x256xf32> -> vector<16x256xf32>
    %97 = arith.addf %93, %96 : vector<16x256xf32>
    %c0_53 = arith.constant 0 : index
    %c0_54 = arith.constant 0 : index
    %98 = vector.load %arg13[%c0_53, %c0_54] : memref<16x1xf32, #tpu.memory_space<vmem>>, vector<16x1xf32>
    %99 = vector.broadcast %98 : vector<16x1xf32> to vector<16x256xf32>
    %100 = arith.mulf %97, %99 : vector<16x256xf32>
    %c0_55 = arith.constant 0 : index
    %c0_56 = arith.constant 0 : index
    %101 = vector.load %arg14[%c0_55, %c0_56] : memref<16x1xf32, #tpu.memory_space<vmem>>, vector<16x1xf32>
    %102 = vector.broadcast %101 : vector<16x1xf32> to vector<16x256xf32>
    %103 = arith.addf %100, %102 : vector<16x256xf32>
    %cst_57 = arith.constant 0.000000e+00 : f32
    %104 = vector.broadcast %cst_57 : f32 to vector<16x256xf32>
    %105 = arith.maximumf %103, %104 : vector<16x256xf32>
    %106 = arith.truncf %105 : vector<16x256xf32> to vector<16x256xbf16>
    %c0_58 = arith.constant 0 : index
    %c0_59 = arith.constant 0 : index
    %c0_60 = arith.constant 0 : index
    %107 = vector.load %arg2[%c0_58, %c0_59, %c0_60] : memref<9x256x256xbf16, #tpu.memory_space<vmem>>, vector<1x256x256xbf16>
    %108 = vector.shape_cast %107 : vector<1x256x256xbf16> to vector<256x256xbf16>
    %cst_61 = arith.constant dense<0.000000e+00> : vector<16x256xf32>
    %109 = tpu.matmul %106, %108, %cst_61 {dimension_numbers = #tpu.dot_dimension_numbers<[1], [0], [0], [1], [0, 0, 1, 1], [], []>} : vector<16x256xbf16>, vector<256x256xbf16>, vector<16x256xf32> -> vector<16x256xf32>
    %110 = arith.truncf %109 : vector<16x256xf32> to vector<16x256xbf16>
    %c1_62 = arith.constant 1 : index
    %c0_63 = arith.constant 0 : index
    %c0_64 = arith.constant 0 : index
    %111 = vector.load %arg2[%c1_62, %c0_63, %c0_64] : memref<9x256x256xbf16, #tpu.memory_space<vmem>>, vector<1x256x256xbf16>
    %112 = vector.shape_cast %111 : vector<1x256x256xbf16> to vector<256x256xbf16>
    %cst_65 = arith.constant dense<0.000000e+00> : vector<16x256xf32>
    %113 = tpu.matmul %106, %112, %cst_65 {dimension_numbers = #tpu.dot_dimension_numbers<[1], [0], [0], [1], [0, 0, 1, 1], [], []>} : vector<16x256xbf16>, vector<256x256xbf16>, vector<16x256xf32> -> vector<16x256xf32>
    %114 = arith.truncf %113 : vector<16x256xf32> to vector<16x256xbf16>
    %c2_66 = arith.constant 2 : index
    %c0_67 = arith.constant 0 : index
    %c0_68 = arith.constant 0 : index
    %115 = vector.load %arg2[%c2_66, %c0_67, %c0_68] : memref<9x256x256xbf16, #tpu.memory_space<vmem>>, vector<1x256x256xbf16>
    %116 = vector.shape_cast %115 : vector<1x256x256xbf16> to vector<256x256xbf16>
    %cst_69 = arith.constant dense<0.000000e+00> : vector<16x256xf32>
    %117 = tpu.matmul %106, %116, %cst_69 {dimension_numbers = #tpu.dot_dimension_numbers<[1], [0], [0], [1], [0, 0, 1, 1], [], []>} : vector<16x256xbf16>, vector<256x256xbf16>, vector<16x256xf32> -> vector<16x256xf32>
    %118 = arith.truncf %117 : vector<16x256xf32> to vector<16x256xbf16>
    %c3_70 = arith.constant 3 : index
    %c0_71 = arith.constant 0 : index
    %c0_72 = arith.constant 0 : index
    %119 = vector.load %arg2[%c3_70, %c0_71, %c0_72] : memref<9x256x256xbf16, #tpu.memory_space<vmem>>, vector<1x256x256xbf16>
    %120 = vector.shape_cast %119 : vector<1x256x256xbf16> to vector<256x256xbf16>
    %cst_73 = arith.constant dense<0.000000e+00> : vector<16x256xf32>
    %121 = tpu.matmul %106, %120, %cst_73 {dimension_numbers = #tpu.dot_dimension_numbers<[1], [0], [0], [1], [0, 0, 1, 1], [], []>} : vector<16x256xbf16>, vector<256x256xbf16>, vector<16x256xf32> -> vector<16x256xf32>
    %122 = arith.truncf %121 : vector<16x256xf32> to vector<16x256xbf16>
    %123 = arith.extf %106 : vector<16x256xbf16> to vector<16x256xf32>
    %124 = arith.truncf %123 : vector<16x256xf32> to vector<16x256xbf16>
    %c5_74 = arith.constant 5 : index
    %c0_75 = arith.constant 0 : index
    %c0_76 = arith.constant 0 : index
    %125 = vector.load %arg2[%c5_74, %c0_75, %c0_76] : memref<9x256x256xbf16, #tpu.memory_space<vmem>>, vector<1x256x256xbf16>
    %126 = vector.shape_cast %125 : vector<1x256x256xbf16> to vector<256x256xbf16>
    %cst_77 = arith.constant dense<0.000000e+00> : vector<16x256xf32>
    %127 = tpu.matmul %106, %126, %cst_77 {dimension_numbers = #tpu.dot_dimension_numbers<[1], [0], [0], [1], [0, 0, 1, 1], [], []>} : vector<16x256xbf16>, vector<256x256xbf16>, vector<16x256xf32> -> vector<16x256xf32>
    %128 = arith.truncf %127 : vector<16x256xf32> to vector<16x256xbf16>
    %c6_78 = arith.constant 6 : index
    %c0_79 = arith.constant 0 : index
    %c0_80 = arith.constant 0 : index
    %129 = vector.load %arg2[%c6_78, %c0_79, %c0_80] : memref<9x256x256xbf16, #tpu.memory_space<vmem>>, vector<1x256x256xbf16>
    %130 = vector.shape_cast %129 : vector<1x256x256xbf16> to vector<256x256xbf16>
    %cst_81 = arith.constant dense<0.000000e+00> : vector<16x256xf32>
    %131 = tpu.matmul %106, %130, %cst_81 {dimension_numbers = #tpu.dot_dimension_numbers<[1], [0], [0], [1], [0, 0, 1, 1], [], []>} : vector<16x256xbf16>, vector<256x256xbf16>, vector<16x256xf32> -> vector<16x256xf32>
    %132 = arith.truncf %131 : vector<16x256xf32> to vector<16x256xbf16>
    %c7_82 = arith.constant 7 : index
    %c0_83 = arith.constant 0 : index
    %c0_84 = arith.constant 0 : index
    %133 = vector.load %arg2[%c7_82, %c0_83, %c0_84] : memref<9x256x256xbf16, #tpu.memory_space<vmem>>, vector<1x256x256xbf16>
    %134 = vector.shape_cast %133 : vector<1x256x256xbf16> to vector<256x256xbf16>
    %cst_85 = arith.constant dense<0.000000e+00> : vector<16x256xf32>
    %135 = tpu.matmul %106, %134, %cst_85 {dimension_numbers = #tpu.dot_dimension_numbers<[1], [0], [0], [1], [0, 0, 1, 1], [], []>} : vector<16x256xbf16>, vector<256x256xbf16>, vector<16x256xf32> -> vector<16x256xf32>
    %136 = arith.truncf %135 : vector<16x256xf32> to vector<16x256xbf16>
    %c8_86 = arith.constant 8 : index
    %c0_87 = arith.constant 0 : index
    %c0_88 = arith.constant 0 : index
    %137 = vector.load %arg2[%c8_86, %c0_87, %c0_88] : memref<9x256x256xbf16, #tpu.memory_space<vmem>>, vector<1x256x256xbf16>
    %138 = vector.shape_cast %137 : vector<1x256x256xbf16> to vector<256x256xbf16>
    %cst_89 = arith.constant dense<0.000000e+00> : vector<16x256xf32>
    %139 = tpu.matmul %106, %138, %cst_89 {dimension_numbers = #tpu.dot_dimension_numbers<[1], [0], [0], [1], [0, 0, 1, 1], [], []>} : vector<16x256xbf16>, vector<256x256xbf16>, vector<16x256xf32> -> vector<16x256xf32>
    %140 = arith.truncf %139 : vector<16x256xf32> to vector<16x256xbf16>
    %141 = tpu.concatenate %110, %114, %118, %122, %124, %128, %132, %136, %140 in 0 : vector<16x256xbf16>, vector<16x256xbf16>, vector<16x256xbf16>, vector<16x256xbf16>, vector<16x256xbf16>, vector<16x256xbf16>, vector<16x256xbf16>, vector<16x256xbf16>, vector<16x256xbf16> -> vector<144x256xbf16>
    %c0_90 = arith.constant 0 : index
    %c0_91 = arith.constant 0 : index
    %142 = vector.load %arg18[%c0_90, %c0_91] : memref<256x64xbf16, #tpu.memory_space<vmem>>, vector<256x64xbf16>
    %cst_92 = arith.constant dense<0.000000e+00> : vector<144x64xf32>
    %143 = tpu.matmul %141, %142, %cst_92 {dimension_numbers = #tpu.dot_dimension_numbers<[1], [0], [0], [1], [0, 0, 1, 1], [], []>} : vector<144x256xbf16>, vector<256x64xbf16>, vector<144x64xf32> -> vector<144x64xf32>
    %144 = arith.truncf %143 : vector<144x64xf32> to vector<144x64xbf16>
    %c0_93 = arith.constant 0 : index
    %c0_94 = arith.constant 0 : index
    %145 = vector.load %arg15[%c0_93, %c0_94] : memref<16x144xbf16, #tpu.memory_space<vmem>>, vector<16x144xbf16>
    %cst_95 = arith.constant dense<0.000000e+00> : vector<16x64xf32>
    %146 = tpu.matmul %145, %144, %cst_95 {dimension_numbers = #tpu.dot_dimension_numbers<[1], [0], [0], [1], [0, 0, 1, 1], [], []>} : vector<16x144xbf16>, vector<144x64xbf16>, vector<16x64xf32> -> vector<16x64xf32>
    %c0_96 = arith.constant 0 : index
    %c0_97 = arith.constant 0 : index
    %147 = vector.load %arg16[%c0_96, %c0_97] : memref<16x1xf32, #tpu.memory_space<vmem>>, vector<16x1xf32>
    %148 = vector.broadcast %147 : vector<16x1xf32> to vector<16x64xf32>
    %149 = arith.mulf %146, %148 : vector<16x64xf32>
    %c0_98 = arith.constant 0 : index
    %c0_99 = arith.constant 0 : index
    %150 = vector.load %arg17[%c0_98, %c0_99] : memref<16x1xf32, #tpu.memory_space<vmem>>, vector<16x1xf32>
    %151 = vector.broadcast %150 : vector<16x1xf32> to vector<16x64xf32>
    %152 = arith.addf %149, %151 : vector<16x64xf32>
    %cst_100 = arith.constant 0.000000e+00 : f32
    %153 = vector.broadcast %cst_100 : f32 to vector<16x64xf32>
    %154 = arith.maximumf %152, %153 : vector<16x64xf32>
    %c0_101 = arith.constant 0 : index
    %c0_102 = arith.constant 0 : index
    %c0_103 = arith.constant 0 : index
    %155 = vector.load %arg19[%c0_101, %c0_102, %c0_103] : memref<1x16x64xf32, #tpu.memory_space<vmem>>, vector<1x16x64xf32>
    %156 = vector.shape_cast %155 : vector<1x16x64xf32> to vector<16x64xf32>
    %157 = vector.shape_cast %154 : vector<16x64xf32> to vector<1x16x64xf32>
    tpu.vector_store %arg19[%c0_101, %c0_102, %c0_103], %157 {strides = array<i32>} : memref<1x16x64xf32, #tpu.memory_space<vmem>>, vector<1x16x64xf32>,
    return
  }
  func.func @transform_0(%arg0: i32) -> (i32, i32, i32) {
    %c0_i32 = arith.constant 0 : i32
    %c0_i32_0 = arith.constant 0 : i32
    %c0_i32_1 = arith.constant 0 : i32
    return %arg0, %c0_i32, %c0_i32_0 : i32, i32, i32
  }
  func.func @transform_1(%arg0: i32) -> (i32, i32, i32) {
    %c0_i32 = arith.constant 0 : i32
    %c0_i32_0 = arith.constant 0 : i32
    %c0_i32_1 = arith.constant 0 : i32
    %c0_i32_2 = arith.constant 0 : i32
    return %c0_i32, %c0_i32_0, %c0_i32_1 : i32, i32, i32
  }
  func.func @transform_2(%arg0: i32) -> (i32, i32) {
    %c0_i32 = arith.constant 0 : i32
    %c0_i32_0 = arith.constant 0 : i32
    %c0_i32_1 = arith.constant 0 : i32
    return %c0_i32, %c0_i32_0 : i32, i32
  }
  func.func @transform_3(%arg0: i32) -> (i32, i32) {
    %c0_i32 = arith.constant 0 : i32
    %c0_i32_0 = arith.constant 0 : i32
    %c0_i32_1 = arith.constant 0 : i32
    return %c0_i32, %c0_i32_0 : i32, i32
  }
  func.func @transform_4(%arg0: i32) -> (i32, i32) {
    %c0_i32 = arith.constant 0 : i32
    %c0_i32_0 = arith.constant 0 : i32
    %c0_i32_1 = arith.constant 0 : i32
    return %c0_i32, %c0_i32_0 : i32, i32
  }
  func.func @transform_5(%arg0: i32) -> (i32, i32) {
    %c0_i32 = arith.constant 0 : i32
    %c0_i32_0 = arith.constant 0 : i32
    %c0_i32_1 = arith.constant 0 : i32
    return %c0_i32, %c0_i32_0 : i32, i32
  }
  func.func @transform_6(%arg0: i32) -> (i32, i32) {
    %c0_i32 = arith.constant 0 : i32
    %c0_i32_0 = arith.constant 0 : i32
    %c0_i32_1 = arith.constant 0 : i32
    return %c0_i32, %c0_i32_0 : i32, i32
  }
  func.func @transform_7(%arg0: i32) -> (i32, i32) {
    %c0_i32 = arith.constant 0 : i32
    %c0_i32_0 = arith.constant 0 : i32
    %c0_i32_1 = arith.constant 0 : i32
    return %c0_i32, %c0_i32_0 : i32, i32
  }
  func.func @transform_8(%arg0: i32) -> (i32, i32) {
    %c0_i32 = arith.constant 0 : i32
    %c0_i32_0 = arith.constant 0 : i32
    %c0_i32_1 = arith.constant 0 : i32
    return %c0_i32, %c0_i32_0 : i32, i32
  }
  func.func @transform_9(%arg0: i32) -> (i32, i32) {
    %c0_i32 = arith.constant 0 : i32
    %c0_i32_0 = arith.constant 0 : i32
    %c0_i32_1 = arith.constant 0 : i32
    return %c0_i32, %c0_i32_0 : i32, i32
  }
  func.func @transform_10(%arg0: i32) -> (i32, i32) {
    %c0_i32 = arith.constant 0 : i32
    %c0_i32_0 = arith.constant 0 : i32
    %c0_i32_1 = arith.constant 0 : i32
    return %c0_i32, %c0_i32_0 : i32, i32
  }
  func.func @transform_11(%arg0: i32) -> (i32, i32) {
    %c0_i32 = arith.constant 0 : i32
    %c0_i32_0 = arith.constant 0 : i32
    %c0_i32_1 = arith.constant 0 : i32
    return %c0_i32, %c0_i32_0 : i32, i32
  }
  func.func @transform_12(%arg0: i32) -> (i32, i32) {
    %c0_i32 = arith.constant 0 : i32
    %c0_i32_0 = arith.constant 0 : i32
    %c0_i32_1 = arith.constant 0 : i32
    return %c0_i32, %c0_i32_0 : i32, i32
  }
  func.func @transform_13(%arg0: i32) -> (i32, i32) {
    %c0_i32 = arith.constant 0 : i32
    %c0_i32_0 = arith.constant 0 : i32
    %c0_i32_1 = arith.constant 0 : i32
    return %c0_i32, %c0_i32_0 : i32, i32
  }
  func.func @transform_14(%arg0: i32) -> (i32, i32) {
    %c0_i32 = arith.constant 0 : i32
    %c0_i32_0 = arith.constant 0 : i32
    %c0_i32_1 = arith.constant 0 : i32
    return %c0_i32, %c0_i32_0 : i32, i32
  }
  func.func @transform_15(%arg0: i32) -> (i32, i32) {
    %c0_i32 = arith.constant 0 : i32
    %c0_i32_0 = arith.constant 0 : i32
    %c0_i32_1 = arith.constant 0 : i32
    return %c0_i32, %c0_i32_0 : i32, i32
  }
  func.func @transform_16(%arg0: i32) -> (i32, i32) {
    %c0_i32 = arith.constant 0 : i32
    %c0_i32_0 = arith.constant 0 : i32
    %c0_i32_1 = arith.constant 0 : i32
    return %c0_i32, %c0_i32_0 : i32, i32
  }
  func.func @transform_17(%arg0: i32) -> (i32, i32) {
    %c0_i32 = arith.constant 0 : i32
    %c0_i32_0 = arith.constant 0 : i32
    %c0_i32_1 = arith.constant 0 : i32
    return %c0_i32, %c0_i32_0 : i32, i32
  }
  func.func @transform_18(%arg0: i32) -> (i32, i32, i32) {
    %c0_i32 = arith.constant 0 : i32
    %c0_i32_0 = arith.constant 0 : i32
    %c0_i32_1 = arith.constant 0 : i32
    return %arg0, %c0_i32, %c0_i32_0 : i32, i32, i32
  }
}

</mosaic_0001>

<llo_original>
// kernel: _lambda_.1
$region0: #{_lambda_.1}
  #allocation0 [shape = 'u32[]', space=smem, size = 0x4, offset = 0x4, fixed_abs, tag = 'smem constant byte address 0x4 - core index']
  #allocation1 [shape = 'u32[144,128]{1,0:T(1,128)}', space=vmem, size = 0x12000, scoped, tag = 'internal scratch']
  %s0 = inlined_call_operand.vmem [shape: f32[2,4,256], index: 0, kind: input, shape index: {}]
  %s1 = inlined_call_operand.hbm [shape: bf16[9,256,256], index: 1, kind: input, shape index: {}]
  %s2 = inlined_call_operand.hbm [shape: bf16[16,4], index: 2, kind: input, shape index: {}]
  %s3 = inlined_call_operand.hbm [shape: f32[16,1], index: 3, kind: input, shape index: {}]
  %s4 = inlined_call_operand.hbm [shape: f32[16,1], index: 4, kind: input, shape index: {}]
  %s5 = inlined_call_operand.hbm [shape: f32[16,9], index: 5, kind: input, shape index: {}]
  %s6 = inlined_call_operand.hbm [shape: f32[16,1], index: 6, kind: input, shape index: {}]
  %s7 = inlined_call_operand.hbm [shape: f32[16,1], index: 7, kind: input, shape index: {}]
  %s8 = inlined_call_operand.hbm [shape: bf16[16,16], index: 8, kind: input, shape index: {}]
  %s9 = inlined_call_operand.hbm [shape: f32[16,1], index: 9, kind: input, shape index: {}]
  %s10 = inlined_call_operand.hbm [shape: bf16[16,4], index: 10, kind: input, shape index: {}]
  %s11 = inlined_call_operand.hbm [shape: bf16[16,16], index: 11, kind: input, shape index: {}]
  %s12 = inlined_call_operand.hbm [shape: f32[16,1], index: 12, kind: input, shape index: {}]
  %s13 = inlined_call_operand.hbm [shape: f32[16,1], index: 13, kind: input, shape index: {}]
  %s14 = inlined_call_operand.hbm [shape: bf16[16,144], index: 14, kind: input, shape index: {}]
  %s15 = inlined_call_operand.hbm [shape: f32[16,1], index: 15, kind: input, shape index: {}]
  %s16 = inlined_call_operand.hbm [shape: f32[16,1], index: 16, kind: input, shape index: {}]
  %s17 = inlined_call_operand.hbm [shape: bf16[256,64], index: 17, kind: input, shape index: {}]
  %s18 = inlined_call_operand.vmem [shape: f32[2,16,64], index: 18, kind: output, shape index: {}]
  %s19 = sld [smem:[#allocation0]]
  $region173: #{_lambda_.1} parent=0
    _
  %s21 = ssub.s32 1, %s19
  %s22 = scalar_select 0, %s21, %s19
  $region1: #{_lambda_.1} parent=0
    #allocation2 [shape = 'u8[1179648]{0}', space=vmem, size = 0x120000, scoped, tag = 'input window, operand 1, single buffered']
    #allocation3 [shape = 's32[2]{0}', space=sflag, size = 0x8, scoped, tag = 'scoped memory for _lambda_.1']
    #allocation4 [shape = 'u8[4096]{0}', space=vmem, size = 0x1000, scoped, tag = 'input window, operand 2, single buffered']
    #allocation5 [shape = 's32[1]{0}', space=sflag, size = 0x4, scoped, tag = 'scoped memory for _lambda_.1']
    #allocation6 [shape = 'u8[8192]{0}', space=vmem, size = 0x2000, scoped, tag = 'input window, operand 3, single buffered']
    #allocation7 [shape = 'u8[8192]{0}', space=vmem, size = 0x2000, scoped, tag = 'input window, operand 4, single buffered']
    #allocation8 [shape = 's32[1]{0}', space=sflag, size = 0x4, scoped, tag = 'scoped memory for _lambda_.1']
    #allocation9 [shape = 'u8[8192]{0}', space=vmem, size = 0x2000, scoped, tag = 'input window, operand 5, single buffered']
    #allocation10 [shape = 'u8[8192]{0}', space=vmem, size = 0x2000, scoped, tag = 'input window, operand 6, single buffered']
    #allocation11 [shape = 's32[1]{0}', space=sflag, size = 0x4, scoped, tag = 'scoped memory for _lambda_.1']
    #allocation12 [shape = 'u8[8192]{0}', space=vmem, size = 0x2000, scoped, tag = 'input window, operand 7, single buffered']
    #allocation13 [shape = 'u8[4096]{0}', space=vmem, size = 0x1000, scoped, tag = 'input window, operand 8, single buffered']
    #allocation14 [shape = 's32[1]{0}', space=sflag, size = 0x4, scoped, tag = 'scoped memory for _lambda_.1']
    #allocation15 [shape = 'u8[8192]{0}', space=vmem, size = 0x2000, scoped, tag = 'input window, operand 9, single buffered']
    #allocation16 [shape = 'u8[4096]{0}', space=vmem, size = 0x1000, scoped, tag = 'input window, operand 10, single buffered']
    #allocation17 [shape = 's32[1]{0}', space=sflag, size = 0x4, scoped, tag = 'scoped memory for _lambda_.1']
    #allocation18 [shape = 'u8[4096]{0}', space=vmem, size = 0x1000, scoped, tag = 'input window, operand 11, single buffered']
    #allocation19 [shape = 'u8[8192]{0}', space=vmem, size = 0x2000, scoped, tag = 'input window, operand 12, single buffered']
    #allocation20 [shape = 's32[1]{0}', space=sflag, size = 0x4, scoped, tag = 'scoped memory for _lambda_.1']
    #allocation21 [shape = 'u8[8192]{0}', space=vmem, size = 0x2000, scoped, tag = 'input window, operand 13, single buffered']
    #allocation22 [shape = 'u8[8192]{0}', space=vmem, size = 0x2000, scoped, tag = 'input window, operand 14, single buffered']
    #allocation23 [shape = 's32[1]{0}', space=sflag, size = 0x4, scoped, tag = 'scoped memory for _lambda_.1']
    #allocation24 [shape = 'u8[8192]{0}', space=vmem, size = 0x2000, scoped, tag = 'input window, operand 15, single buffered']
    #allocation25 [shape = 'u8[8192]{0}', space=vmem, size = 0x2000, scoped, tag = 'input window, operand 16, single buffered']
    #allocation26 [shape = 's32[1]{0}', space=sflag, size = 0x4, scoped, tag = 'scoped memory for _lambda_.1']
    #allocation27 [shape = 'u8[65536]{0}', space=vmem, size = 0x10000, scoped, tag = 'input window, operand 17, single buffered']
    %23 = vsyncpa [#allocation3], 0
    %24 = vsyncpa [#allocation5], 0
    %25 = vsyncpa [#allocation8], 0
    %26 = vsyncpa [#allocation11], 0
    %27 = vsyncpa [#allocation14], 0
    %28 = vsyncpa [#allocation17], 0
    %29 = vsyncpa [#allocation20], 0
    %30 = vsyncpa [#allocation23], 0
    %31 = vsyncpa [#allocation26], 0
    loop: start=0, step=1, limit=4
    $region2: #{_lambda_.1} parent=1 // loop_pre_header
      _
    $region3: #{_lambda_.1} parent=1 // loop_header
      %s33 = sphi 0, %s37
      %p34 = scmp.ge.s32.totalorder %s33, 4
      %s43 = sphi 0, %s45
      %s46 = sphi 0, %s43
      %s47 = sphi 0, %s46
      %s63 = sphi 0, %s47
      %s67 = sphi 0, %s67
      %s69 = sphi 0, %s67
      %s70 = sphi 0, %s69
      %s84 = sphi 0, %s70
      %s88 = sphi 0, %s88
      %s90 = sphi 0, %s88
      %s91 = sphi 0, %s90
      %s105 = sphi 0, %s91
      %s109 = sphi 0, %s109
      %s111 = sphi 0, %s109
      %s112 = sphi 0, %s111
      %s126 = sphi 0, %s112
      %s130 = sphi 0, %s130
      %s132 = sphi 0, %s130
      %s133 = sphi 0, %s132
      %s147 = sphi 0, %s133
      %s151 = sphi 0, %s151
      %s153 = sphi 0, %s151
      %s154 = sphi 0, %s153
      %s168 = sphi 0, %s154
      %s172 = sphi 0, %s172
      %s174 = sphi 0, %s172
      %s175 = sphi 0, %s174
      %s189 = sphi 0, %s175
      %s193 = sphi 0, %s193
      %s195 = sphi 0, %s193
      %s196 = sphi 0, %s195
      %s210 = sphi 0, %s196
      %s214 = sphi 0, %s214
      %s216 = sphi 0, %s214
      %s217 = sphi 0, %s216
      %s231 = sphi 0, %s217
      %s235 = sphi 0, %s235
      %s237 = sphi 0, %s235
      %s238 = sphi 0, %s237
      %s252 = sphi 0, %s238
      %s256 = sphi 0, %s256
      %s258 = sphi 0, %s256
      %s259 = sphi 0, %s258
      %s273 = sphi 0, %s259
      %s277 = sphi 0, %s277
      %s279 = sphi 0, %s277
      %s280 = sphi 0, %s279
      %s294 = sphi 0, %s280
      %s298 = sphi 0, %s298
      %s300 = sphi 0, %s298
      %s301 = sphi 0, %s300
      %s315 = sphi 0, %s301
      %s319 = sphi 0, %s319
      %s321 = sphi 0, %s319
      %s322 = sphi 0, %s321
      %s336 = sphi 0, %s322
      %s340 = sphi 0, %s340
      %s342 = sphi 0, %s340
      %s343 = sphi 0, %s342
      %s357 = sphi 0, %s343
      %s361 = sphi 0, %s361
      %s363 = sphi 0, %s361
      %s364 = sphi 0, %s363
      %s378 = sphi 0, %s364
      %s382 = sphi 0, %s382
      %s384 = sphi 0, %s382
      %s385 = sphi 0, %s384
      %s399 = sphi 0, %s385
      %s403 = sphi 0, %s403
      %s405 = sphi 0, %s403
      %s406 = sphi 0, %s405
      %s420 = sphi 0, %s406
      %s426 = sphi 0, %s428
      %s429 = sphi 0, %s426
      %s430 = sphi 0, %s429
      %s446 = sphi 0, %s430
    $region4: #{_lambda_.1} parent=1 // loop_header_branch
      %36 = sbr.rel (%p34) target = $region8
    $region5: #{_lambda_.1} parent=1 // loop_body
      %s38 = ssub.s32 %s33, 1
      %s39 = ssub.s32 %s33, 2
      %s40 = sadd.s32 %s33, 1
      %s41 = ssub.s32 %s33, %s40
      %p42 = scmp.eq.s32.totalorder %s41, 0
      %s44 = sadd.s32 %s43, 1
      %s45 = scalar_select %p42, %s43, %s44
      %p48 = pneg %p42
      %p49 = scmp.eq.s32.totalorder %s33, 1
      %p50 = por %p48, %p49
      %p51 = scmp.ne.s32.totalorder %s43, %s46
      %p52 = scmp.eq.s32.totalorder %s33, 0
      %p53 = por %p51, %p52
      %p54 = scmp.ne.s32.totalorder %s43, %s46
      %p55 = scmp.eq.s32.totalorder %s38, 1
      %p56 = por %p54, %p55
      %p57 = scmp.ne.s32.totalorder %s46, %s47
      %p58 = scmp.eq.s32.totalorder %s38, 0
      %p59 = por %p57, %p58
      %p60 = scmp.ne.s32.totalorder %s46, %s47
      %p61 = scmp.eq.s32.totalorder %s39, 1
      %p62 = por %p60, %p61
      %p64 = scmp.ne.s32.totalorder %s47, %s63
      %p65 = scmp.eq.s32.totalorder %s39, 0
      %p66 = por %p64, %p65
      %s68 = sadd.s32 %s67, 1
      %p71 = scmp.eq.s32.totalorder %s33, 1
      %p72 = scmp.ne.s32.totalorder %s67, %s69
      %p73 = scmp.eq.s32.totalorder %s33, 0
      %p74 = por %p72, %p73
      %p75 = scmp.ne.s32.totalorder %s67, %s69
      %p76 = scmp.eq.s32.totalorder %s38, 1
      %p77 = por %p75, %p76
      %p78 = scmp.ne.s32.totalorder %s69, %s70
      %p79 = scmp.eq.s32.totalorder %s38, 0
      %p80 = por %p78, %p79
      %p81 = scmp.ne.s32.totalorder %s69, %s70
      %p82 = scmp.eq.s32.totalorder %s39, 1
      %p83 = por %p81, %p82
      %p85 = scmp.ne.s32.totalorder %s70, %s84
      %p86 = scmp.eq.s32.totalorder %s39, 0
      %p87 = por %p85, %p86
      %s89 = sadd.s32 %s88, 1
      %p92 = scmp.eq.s32.totalorder %s33, 1
      %p93 = scmp.ne.s32.totalorder %s88, %s90
      %p94 = scmp.eq.s32.totalorder %s33, 0
      %p95 = por %p93, %p94
      %p96 = scmp.ne.s32.totalorder %s88, %s90
      %p97 = scmp.eq.s32.totalorder %s38, 1
      %p98 = por %p96, %p97
      %p99 = scmp.ne.s32.totalorder %s90, %s91
      %p100 = scmp.eq.s32.totalorder %s38, 0
      %p101 = por %p99, %p100
      %p102 = scmp.ne.s32.totalorder %s90, %s91
      %p103 = scmp.eq.s32.totalorder %s39, 1
      %p104 = por %p102, %p103
      %p106 = scmp.ne.s32.totalorder %s91, %s105
      %p107 = scmp.eq.s32.totalorder %s39, 0
      %p108 = por %p106, %p107
      %s110 = sadd.s32 %s109, 1
      %p113 = scmp.eq.s32.totalorder %s33, 1
      %p114 = scmp.ne.s32.totalorder %s109, %s111
      %p115 = scmp.eq.s32.totalorder %s33, 0
      %p116 = por %p114, %p115
      %p117 = scmp.ne.s32.totalorder %s109, %s111
      %p118 = scmp.eq.s32.totalorder %s38, 1
      %p119 = por %p117, %p118
      %p120 = scmp.ne.s32.totalorder %s111, %s112
      %p121 = scmp.eq.s32.totalorder %s38, 0
      %p122 = por %p120, %p121
      %p123 = scmp.ne.s32.totalorder %s111, %s112
      %p124 = scmp.eq.s32.totalorder %s39, 1
      %p125 = por %p123, %p124
      %p127 = scmp.ne.s32.totalorder %s112, %s126
      %p128 = scmp.eq.s32.totalorder %s39, 0
      %p129 = por %p127, %p128
      %s131 = sadd.s32 %s130, 1
      %p134 = scmp.eq.s32.totalorder %s33, 1
      %p135 = scmp.ne.s32.totalorder %s130, %s132
      %p136 = scmp.eq.s32.totalorder %s33, 0
      %p137 = por %p135, %p136
      %p138 = scmp.ne.s32.totalorder %s130, %s132
      %p139 = scmp.eq.s32.totalorder %s38, 1
      %p140 = por %p138, %p139
      %p141 = scmp.ne.s32.totalorder %s132, %s133
      %p142 = scmp.eq.s32.totalorder %s38, 0
      %p143 = por %p141, %p142
      %p144 = scmp.ne.s32.totalorder %s132, %s133
      %p145 = scmp.eq.s32.totalorder %s39, 1
      %p146 = por %p144, %p145
      %p148 = scmp.ne.s32.totalorder %s133, %s147
      %p149 = scmp.eq.s32.totalorder %s39, 0
      %p150 = por %p148, %p149
      %s152 = sadd.s32 %s151, 1
      %p155 = scmp.eq.s32.totalorder %s33, 1
      %p156 = scmp.ne.s32.totalorder %s151, %s153
      %p157 = scmp.eq.s32.totalorder %s33, 0
      %p158 = por %p156, %p157
      %p159 = scmp.ne.s32.totalorder %s151, %s153
      %p160 = scmp.eq.s32.totalorder %s38, 1
      %p161 = por %p159, %p160
      %p162 = scmp.ne.s32.totalorder %s153, %s154
      %p163 = scmp.eq.s32.totalorder %s38, 0
      %p164 = por %p162, %p163
      %p165 = scmp.ne.s32.totalorder %s153, %s154
      %p166 = scmp.eq.s32.totalorder %s39, 1
      %p167 = por %p165, %p166
      %p169 = scmp.ne.s32.totalorder %s154, %s168
      %p170 = scmp.eq.s32.totalorder %s39, 0
      %p171 = por %p169, %p170
      %s173 = sadd.s32 %s172, 1
      %p176 = scmp.eq.s32.totalorder %s33, 1
      %p177 = scmp.ne.s32.totalorder %s172, %s174
      %p178 = scmp.eq.s32.totalorder %s33, 0
      %p179 = por %p177, %p178
      %p180 = scmp.ne.s32.totalorder %s172, %s174
      %p181 = scmp.eq.s32.totalorder %s38, 1
      %p182 = por %p180, %p181
      %p183 = scmp.ne.s32.totalorder %s174, %s175
      %p184 = scmp.eq.s32.totalorder %s38, 0
      %p185 = por %p183, %p184
      %p186 = scmp.ne.s32.totalorder %s174, %s175
      %p187 = scmp.eq.s32.totalorder %s39, 1
      %p188 = por %p186, %p187
      %p190 = scmp.ne.s32.totalorder %s175, %s189
      %p191 = scmp.eq.s32.totalorder %s39, 0
      %p192 = por %p190, %p191
      %s194 = sadd.s32 %s193, 1
      %p197 = scmp.eq.s32.totalorder %s33, 1
      %p198 = scmp.ne.s32.totalorder %s193, %s195
      %p199 = scmp.eq.s32.totalorder %s33, 0
      %p200 = por %p198, %p199
      %p201 = scmp.ne.s32.totalorder %s193, %s195
      %p202 = scmp.eq.s32.totalorder %s38, 1
      %p203 = por %p201, %p202
      %p204 = scmp.ne.s32.totalorder %s195, %s196
      %p205 = scmp.eq.s32.totalorder %s38, 0
      %p206 = por %p204, %p205
      %p207 = scmp.ne.s32.totalorder %s195, %s196
      %p208 = scmp.eq.s32.totalorder %s39, 1
      %p209 = por %p207, %p208
      %p211 = scmp.ne.s32.totalorder %s196, %s210
      %p212 = scmp.eq.s32.totalorder %s39, 0
      %p213 = por %p211, %p212
      %s215 = sadd.s32 %s214, 1
      %p218 = scmp.eq.s32.totalorder %s33, 1
      %p219 = scmp.ne.s32.totalorder %s214, %s216
      %p220 = scmp.eq.s32.totalorder %s33, 0
      %p221 = por %p219, %p220
      %p222 = scmp.ne.s32.totalorder %s214, %s216
      %p223 = scmp.eq.s32.totalorder %s38, 1
      %p224 = por %p222, %p223
      %p225 = scmp.ne.s32.totalorder %s216, %s217
      %p226 = scmp.eq.s32.totalorder %s38, 0
      %p227 = por %p225, %p226
      %p228 = scmp.ne.s32.totalorder %s216, %s217
      %p229 = scmp.eq.s32.totalorder %s39, 1
      %p230 = por %p228, %p229
      %p232 = scmp.ne.s32.totalorder %s217, %s231
      %p233 = scmp.eq.s32.totalorder %s39, 0
      %p234 = por %p232, %p233
      %s236 = sadd.s32 %s235, 1
      %p239 = scmp.eq.s32.totalorder %s33, 1
      %p240 = scmp.ne.s32.totalorder %s235, %s237
      %p241 = scmp.eq.s32.totalorder %s33, 0
      %p242 = por %p240, %p241
      %p243 = scmp.ne.s32.totalorder %s235, %s237
      %p244 = scmp.eq.s32.totalorder %s38, 1
      %p245 = por %p243, %p244
      %p246 = scmp.ne.s32.totalorder %s237, %s238
      %p247 = scmp.eq.s32.totalorder %s38, 0
      %p248 = por %p246, %p247
      %p249 = scmp.ne.s32.totalorder %s237, %s238
      %p250 = scmp.eq.s32.totalorder %s39, 1
      %p251 = por %p249, %p250
      %p253 = scmp.ne.s32.totalorder %s238, %s252
      %p254 = scmp.eq.s32.totalorder %s39, 0
      %p255 = por %p253, %p254
      %s257 = sadd.s32 %s256, 1
      %p260 = scmp.eq.s32.totalorder %s33, 1
      %p261 = scmp.ne.s32.totalorder %s256, %s258
      %p262 = scmp.eq.s32.totalorder %s33, 0
      %p263 = por %p261, %p262
      %p264 = scmp.ne.s32.totalorder %s256, %s258
      %p265 = scmp.eq.s32.totalorder %s38, 1
      %p266 = por %p264, %p265
      %p267 = scmp.ne.s32.totalorder %s258, %s259
      %p268 = scmp.eq.s32.totalorder %s38, 0
      %p269 = por %p267, %p268
      %p270 = scmp.ne.s32.totalorder %s258, %s259
      %p271 = scmp.eq.s32.totalorder %s39, 1
      %p272 = por %p270, %p271
      %p274 = scmp.ne.s32.totalorder %s259, %s273
      %p275 = scmp.eq.s32.totalorder %s39, 0
      %p276 = por %p274, %p275
      %s278 = sadd.s32 %s277, 1
      %p281 = scmp.eq.s32.totalorder %s33, 1
      %p282 = scmp.ne.s32.totalorder %s277, %s279
      %p283 = scmp.eq.s32.totalorder %s33, 0
      %p284 = por %p282, %p283
      %p285 = scmp.ne.s32.totalorder %s277, %s279
      %p286 = scmp.eq.s32.totalorder %s38, 1
      %p287 = por %p285, %p286
      %p288 = scmp.ne.s32.totalorder %s279, %s280
      %p289 = scmp.eq.s32.totalorder %s38, 0
      %p290 = por %p288, %p289
      %p291 = scmp.ne.s32.totalorder %s279, %s280
      %p292 = scmp.eq.s32.totalorder %s39, 1
      %p293 = por %p291, %p292
      %p295 = scmp.ne.s32.totalorder %s280, %s294
      %p296 = scmp.eq.s32.totalorder %s39, 0
      %p297 = por %p295, %p296
      %s299 = sadd.s32 %s298, 1
      %p302 = scmp.eq.s32.totalorder %s33, 1
      %p303 = scmp.ne.s32.totalorder %s298, %s300
      %p304 = scmp.eq.s32.totalorder %s33, 0
      %p305 = por %p303, %p304
      %p306 = scmp.ne.s32.totalorder %s298, %s300
      %p307 = scmp.eq.s32.totalorder %s38, 1
      %p308 = por %p306, %p307
      %p309 = scmp.ne.s32.totalorder %s300, %s301
      %p310 = scmp.eq.s32.totalorder %s38, 0
      %p311 = por %p309, %p310
      %p312 = scmp.ne.s32.totalorder %s300, %s301
      %p313 = scmp.eq.s32.totalorder %s39, 1
      %p314 = por %p312, %p313
      %p316 = scmp.ne.s32.totalorder %s301, %s315
      %p317 = scmp.eq.s32.totalorder %s39, 0
      %p318 = por %p316, %p317
      %s320 = sadd.s32 %s319, 1
      %p323 = scmp.eq.s32.totalorder %s33, 1
      %p324 = scmp.ne.s32.totalorder %s319, %s321
      %p325 = scmp.eq.s32.totalorder %s33, 0
      %p326 = por %p324, %p325
      %p327 = scmp.ne.s32.totalorder %s319, %s321
      %p328 = scmp.eq.s32.totalorder %s38, 1
      %p329 = por %p327, %p328
      %p330 = scmp.ne.s32.totalorder %s321, %s322
      %p331 = scmp.eq.s32.totalorder %s38, 0
      %p332 = por %p330, %p331
      %p333 = scmp.ne.s32.totalorder %s321, %s322
      %p334 = scmp.eq.s32.totalorder %s39, 1
      %p335 = por %p333, %p334
      %p337 = scmp.ne.s32.totalorder %s322, %s336
      %p338 = scmp.eq.s32.totalorder %s39, 0
      %p339 = por %p337, %p338
      %s341 = sadd.s32 %s340, 1
      %p344 = scmp.eq.s32.totalorder %s33, 1
      %p345 = scmp.ne.s32.totalorder %s340, %s342
      %p346 = scmp.eq.s32.totalorder %s33, 0
      %p347 = por %p345, %p346
      %p348 = scmp.ne.s32.totalorder %s340, %s342
      %p349 = scmp.eq.s32.totalorder %s38, 1
      %p350 = por %p348, %p349
      %p351 = scmp.ne.s32.totalorder %s342, %s343
      %p352 = scmp.eq.s32.totalorder %s38, 0
      %p353 = por %p351, %p352
      %p354 = scmp.ne.s32.totalorder %s342, %s343
      %p355 = scmp.eq.s32.totalorder %s39, 1
      %p356 = por %p354, %p355
      %p358 = scmp.ne.s32.totalorder %s343, %s357
      %p359 = scmp.eq.s32.totalorder %s39, 0
      %p360 = por %p358, %p359
      %s362 = sadd.s32 %s361, 1
      %p365 = scmp.eq.s32.totalorder %s33, 1
      %p366 = scmp.ne.s32.totalorder %s361, %s363
      %p367 = scmp.eq.s32.totalorder %s33, 0
      %p368 = por %p366, %p367
      %p369 = scmp.ne.s32.totalorder %s361, %s363
      %p370 = scmp.eq.s32.totalorder %s38, 1
      %p371 = por %p369, %p370
      %p372 = scmp.ne.s32.totalorder %s363, %s364
      %p373 = scmp.eq.s32.totalorder %s38, 0
      %p374 = por %p372, %p373
      %p375 = scmp.ne.s32.totalorder %s363, %s364
      %p376 = scmp.eq.s32.totalorder %s39, 1
      %p377 = por %p375, %p376
      %p379 = scmp.ne.s32.totalorder %s364, %s378
      %p380 = scmp.eq.s32.totalorder %s39, 0
      %p381 = por %p379, %p380
      %s383 = sadd.s32 %s382, 1
      %p386 = scmp.eq.s32.totalorder %s33, 1
      %p387 = scmp.ne.s32.totalorder %s382, %s384
      %p388 = scmp.eq.s32.totalorder %s33, 0
      %p389 = por %p387, %p388
      %p390 = scmp.ne.s32.totalorder %s382, %s384
      %p391 = scmp.eq.s32.totalorder %s38, 1
      %p392 = por %p390, %p391
      %p393 = scmp.ne.s32.totalorder %s384, %s385
      %p394 = scmp.eq.s32.totalorder %s38, 0
      %p395 = por %p393, %p394
      %p396 = scmp.ne.s32.totalorder %s384, %s385
      %p397 = scmp.eq.s32.totalorder %s39, 1
      %p398 = por %p396, %p397
      %p400 = scmp.ne.s32.totalorder %s385, %s399
      %p401 = scmp.eq.s32.totalorder %s39, 0
      %p402 = por %p400, %p401
      %s404 = sadd.s32 %s403, 1
      %p407 = scmp.eq.s32.totalorder %s33, 1
      %p408 = scmp.ne.s32.totalorder %s403, %s405
      %p409 = scmp.eq.s32.totalorder %s33, 0
      %p410 = por %p408, %p409
      %p411 = scmp.ne.s32.totalorder %s403, %s405
      %p412 = scmp.eq.s32.totalorder %s38, 1
      %p413 = por %p411, %p412
      %p414 = scmp.ne.s32.totalorder %s405, %s406
      %p415 = scmp.eq.s32.totalorder %s38, 0
      %p416 = por %p414, %p415
      %p417 = scmp.ne.s32.totalorder %s405, %s406
      %p418 = scmp.eq.s32.totalorder %s39, 1
      %p419 = por %p417, %p418
      %p421 = scmp.ne.s32.totalorder %s406, %s420
      %p422 = scmp.eq.s32.totalorder %s39, 0
      %p423 = por %p421, %p422
      %s424 = ssub.s32 %s33, %s40
      %p425 = scmp.eq.s32.totalorder %s424, 0
      %s427 = sadd.s32 %s426, 1
      %s428 = scalar_select %p425, %s426, %s427
      %p431 = pneg %p425
      %p432 = scmp.eq.s32.totalorder %s33, 1
      %p433 = por %p431, %p432
      %p434 = scmp.ne.s32.totalorder %s426, %s429
      %p435 = scmp.eq.s32.totalorder %s33, 0
      %p436 = por %p434, %p435
      %p437 = scmp.ne.s32.totalorder %s426, %s429
      %p438 = scmp.eq.s32.totalorder %s38, 1
      %p439 = por %p437, %p438
      %p440 = scmp.ne.s32.totalorder %s429, %s430
      %p441 = scmp.eq.s32.totalorder %s38, 0
      %p442 = por %p440, %p441
      %p443 = scmp.ne.s32.totalorder %s429, %s430
      %p444 = scmp.eq.s32.totalorder %s39, 1
      %p445 = por %p443, %p444
      %p447 = scmp.ne.s32.totalorder %s430, %s446
      %p448 = scmp.eq.s32.totalorder %s39, 0
      %p449 = por %p447, %p448
      %p450 = scmp.le.s32.totalorder 1, %s33
      %p451 = scmp.lt.s32.totalorder %s33, 3
      %p452 = pnand %p450, %p451
      %p453 = pneg %p452
      // Predicated region
      $region9: #{_lambda_.1} parent=5 // pred_check
        _
      $region10: #{_lambda_.1} parent=5 // pred_check_branch
        %455 = sbr.rel (%p452) target = $region12
      $region11: #{_lambda_.1} parent=5 // pred_region
        %s456 = ssub.s32 %s33, 1
        // Predicated region
        $region13: #{_lambda_.1} parent=11 // pred_check
          %p457 = pneg %p80
        $region14: #{_lambda_.1} parent=11 // pred_check_branch
          %459 = sbr.rel (%p457) target = $region16
        $region15: #{_lambda_.1} parent=11 // pred_region
          %s461 = ssub.s32 36864, 36864
          %462 = vsyncadd [#allocation3], %s461
          %s463 = sshll.u32 [#allocation2], 4
          %s464 = int_to_ptr.vmem [resolvable:$true] %s463
          %469 = dma.hbm_to_vmem [thread:$0]  %s1, 36864, %s464, [#allocation3], 128, 128, 8
        $region16: #{_lambda_.1} parent=11 // pred_fallthru
          _
        // Predicated region
        $region17: #{_lambda_.1} parent=11 // pred_check
          %p470 = pneg %p101
        $region18: #{_lambda_.1} parent=11 // pred_check_branch
          %472 = sbr.rel (%p470) target = $region20
        $region19: #{_lambda_.1} parent=11 // pred_region
          %s474 = ssub.s32 128, 128
          %475 = vsyncadd [#allocation5], %s474
          %s476 = sshll.u32 [#allocation4], 4
          %s477 = int_to_ptr.vmem [resolvable:$true] %s476
          %482 = dma.hbm_to_vmem [thread:$0]  %s2, 128, %s477, [#allocation5], 64, 64, 4
        $region20: #{_lambda_.1} parent=11 // pred_fallthru
          _
        // Predicated region
        $region21: #{_lambda_.1} parent=11 // pred_check
          %p483 = pneg %p122
        $region22: #{_lambda_.1} parent=11 // pred_check_branch
          %485 = sbr.rel (%p483) target = $region24
        $region23: #{_lambda_.1} parent=11 // pred_region
          %s487 = ssub.s32 256, 256
          %488 = vsyncadd [#allocation5], %s487
          %s489 = sshll.u32 [#allocation6], 4
          %s490 = int_to_ptr.vmem [resolvable:$true] %s489
          %495 = dma.hbm_to_vmem [thread:$0]  %s3, 256, %s490, [#allocation5], 128, 128, 8
        $region24: #{_lambda_.1} parent=11 // pred_fallthru
          _
        // Predicated region
        $region25: #{_lambda_.1} parent=11 // pred_check
          %p496 = pneg %p143
        $region26: #{_lambda_.1} parent=11 // pred_check_branch
          %498 = sbr.rel (%p496) target = $region28
        $region27: #{_lambda_.1} parent=11 // pred_region
          %s500 = ssub.s32 256, 256
          %501 = vsyncadd [#allocation8], %s500
          %s502 = sshll.u32 [#allocation7], 4
          %s503 = int_to_ptr.vmem [resolvable:$true] %s502
          %508 = dma.hbm_to_vmem [thread:$0]  %s4, 256, %s503, [#allocation8], 128, 128, 8
        $region28: #{_lambda_.1} parent=11 // pred_fallthru
          _
        // Predicated region
        $region29: #{_lambda_.1} parent=11 // pred_check
          %p509 = pneg %p164
        $region30: #{_lambda_.1} parent=11 // pred_check_branch
          %511 = sbr.rel (%p509) target = $region32
        $region31: #{_lambda_.1} parent=11 // pred_region
          %s513 = ssub.s32 256, 256
          %514 = vsyncadd [#allocation8], %s513
          %s515 = sshll.u32 [#allocation9], 4
          %s516 = int_to_ptr.vmem [resolvable:$true] %s515
          %521 = dma.hbm_to_vmem [thread:$0]  %s5, 256, %s516, [#allocation8], 128, 128, 8
        $region32: #{_lambda_.1} parent=11 // pred_fallthru
          _
        // Predicated region
        $region33: #{_lambda_.1} parent=11 // pred_check
          %p522 = pneg %p185
        $region34: #{_lambda_.1} parent=11 // pred_check_branch
          %524 = sbr.rel (%p522) target = $region36
        $region35: #{_lambda_.1} parent=11 // pred_region
          %s526 = ssub.s32 256, 256
          %527 = vsyncadd [#allocation11], %s526
          %s528 = sshll.u32 [#allocation10], 4
          %s529 = int_to_ptr.vmem [resolvable:$true] %s528
          %534 = dma.hbm_to_vmem [thread:$0]  %s6, 256, %s529, [#allocation11], 128, 128, 8
        $region36: #{_lambda_.1} parent=11 // pred_fallthru
          _
        // Predicated region
        $region37: #{_lambda_.1} parent=11 // pred_check
          %p535 = pneg %p206
        $region38: #{_lambda_.1} parent=11 // pred_check_branch
          %537 = sbr.rel (%p535) target = $region40
        $region39: #{_lambda_.1} parent=11 // pred_region
          %s539 = ssub.s32 256, 256
          %540 = vsyncadd [#allocation11], %s539
          %s541 = sshll.u32 [#allocation12], 4
          %s542 = int_to_ptr.vmem [resolvable:$true] %s541
          %547 = dma.hbm_to_vmem [thread:$0]  %s7, 256, %s542, [#allocation11], 128, 128, 8
        $region40: #{_lambda_.1} parent=11 // pred_fallthru
          _
        // Predicated region
        $region41: #{_lambda_.1} parent=11 // pred_check
          %p548 = pneg %p227
        $region42: #{_lambda_.1} parent=11 // pred_check_branch
          %550 = sbr.rel (%p548) target = $region44
        $region43: #{_lambda_.1} parent=11 // pred_region
          %s552 = ssub.s32 128, 128
          %553 = vsyncadd [#allocation14], %s552
          %s554 = sshll.u32 [#allocation13], 4
          %s555 = int_to_ptr.vmem [resolvable:$true] %s554
          %560 = dma.hbm_to_vmem [thread:$0]  %s8, 128, %s555, [#allocation14], 64, 64, 4
        $region44: #{_lambda_.1} parent=11 // pred_fallthru
          _
        // Predicated region
        $region45: #{_lambda_.1} parent=11 // pred_check
          %p561 = pneg %p248
        $region46: #{_lambda_.1} parent=11 // pred_check_branch
          %563 = sbr.rel (%p561) target = $region48
        $region47: #{_lambda_.1} parent=11 // pred_region
          %s565 = ssub.s32 256, 256
          %566 = vsyncadd [#allocation14], %s565
          %s567 = sshll.u32 [#allocation15], 4
          %s568 = int_to_ptr.vmem [resolvable:$true] %s567
          %573 = dma.hbm_to_vmem [thread:$0]  %s9, 256, %s568, [#allocation14], 128, 128, 8
        $region48: #{_lambda_.1} parent=11 // pred_fallthru
          _
        // Predicated region
        $region49: #{_lambda_.1} parent=11 // pred_check
          %p574 = pneg %p269
        $region50: #{_lambda_.1} parent=11 // pred_check_branch
          %576 = sbr.rel (%p574) target = $region52
        $region51: #{_lambda_.1} parent=11 // pred_region
          %s578 = ssub.s32 128, 128
          %579 = vsyncadd [#allocation17], %s578
          %s580 = sshll.u32 [#allocation16], 4
          %s581 = int_to_ptr.vmem [resolvable:$true] %s580
          %586 = dma.hbm_to_vmem [thread:$0]  %s10, 128, %s581, [#allocation17], 64, 64, 4
        $region52: #{_lambda_.1} parent=11 // pred_fallthru
          _
        // Predicated region
        $region53: #{_lambda_.1} parent=11 // pred_check
          %p587 = pneg %p290
        $region54: #{_lambda_.1} parent=11 // pred_check_branch
          %589 = sbr.rel (%p587) target = $region56
        $region55: #{_lambda_.1} parent=11 // pred_region
          %s591 = ssub.s32 128, 128
          %592 = vsyncadd [#allocation17], %s591
          %s593 = sshll.u32 [#allocation18], 4
          %s594 = int_to_ptr.vmem [resolvable:$true] %s593
          %599 = dma.hbm_to_vmem [thread:$0]  %s11, 128, %s594, [#allocation17], 64, 64, 4
        $region56: #{_lambda_.1} parent=11 // pred_fallthru
          _
        // Predicated region
        $region57: #{_lambda_.1} parent=11 // pred_check
          %p600 = pneg %p311
        $region58: #{_lambda_.1} parent=11 // pred_check_branch
          %602 = sbr.rel (%p600) target = $region60
        $region59: #{_lambda_.1} parent=11 // pred_region
          %s604 = ssub.s32 256, 256
          %605 = vsyncadd [#allocation20], %s604
          %s606 = sshll.u32 [#allocation19], 4
          %s607 = int_to_ptr.vmem [resolvable:$true] %s606
          %612 = dma.hbm_to_vmem [thread:$0]  %s12, 256, %s607, [#allocation20], 128, 128, 8
        $region60: #{_lambda_.1} parent=11 // pred_fallthru
          _
        // Predicated region
        $region61: #{_lambda_.1} parent=11 // pred_check
          %p613 = pneg %p332
        $region62: #{_lambda_.1} parent=11 // pred_check_branch
          %615 = sbr.rel (%p613) target = $region64
        $region63: #{_lambda_.1} parent=11 // pred_region
          %s617 = ssub.s32 256, 256
          %618 = vsyncadd [#allocation20], %s617
          %s619 = sshll.u32 [#allocation21], 4
          %s620 = int_to_ptr.vmem [resolvable:$true] %s619
          %625 = dma.hbm_to_vmem [thread:$0]  %s13, 256, %s620, [#allocation20], 128, 128, 8
        $region64: #{_lambda_.1} parent=11 // pred_fallthru
          _
        // Predicated region
        $region65: #{_lambda_.1} parent=11 // pred_check
          %p626 = pneg %p353
        $region66: #{_lambda_.1} parent=11 // pred_check_branch
          %628 = sbr.rel (%p626) target = $region68
        $region67: #{_lambda_.1} parent=11 // pred_region
          %s630 = ssub.s32 256, 256
          %631 = vsyncadd [#allocation23], %s630
          %s632 = sshll.u32 [#allocation22], 4
          %s633 = int_to_ptr.vmem [resolvable:$true] %s632
          %638 = dma.hbm_to_vmem [thread:$0]  %s14, 256, %s633, [#allocation23], 128, 128, 8
        $region68: #{_lambda_.1} parent=11 // pred_fallthru
          _
        // Predicated region
        $region69: #{_lambda_.1} parent=11 // pred_check
          %p639 = pneg %p374
        $region70: #{_lambda_.1} parent=11 // pred_check_branch
          %641 = sbr.rel (%p639) target = $region72
        $region71: #{_lambda_.1} parent=11 // pred_region
          %s643 = ssub.s32 256, 256
          %644 = vsyncadd [#allocation23], %s643
          %s645 = sshll.u32 [#allocation24], 4
          %s646 = int_to_ptr.vmem [resolvable:$true] %s645
          %651 = dma.hbm_to_vmem [thread:$0]  %s15, 256, %s646, [#allocation23], 128, 128, 8
        $region72: #{_lambda_.1} parent=11 // pred_fallthru
          _
        // Predicated region
        $region73: #{_lambda_.1} parent=11 // pred_check
          %p652 = pneg %p395
        $region74: #{_lambda_.1} parent=11 // pred_check_branch
          %654 = sbr.rel (%p652) target = $region76
        $region75: #{_lambda_.1} parent=11 // pred_region
          %s656 = ssub.s32 256, 256
          %657 = vsyncadd [#allocation26], %s656
          %s658 = sshll.u32 [#allocation25], 4
          %s659 = int_to_ptr.vmem [resolvable:$true] %s658
          %664 = dma.hbm_to_vmem [thread:$0]  %s16, 256, %s659, [#allocation26], 128, 128, 8
        $region76: #{_lambda_.1} parent=11 // pred_fallthru
          _
        // Predicated region
        $region77: #{_lambda_.1} parent=11 // pred_check
          %p665 = pneg %p416
        $region78: #{_lambda_.1} parent=11 // pred_check_branch
          %667 = sbr.rel (%p665) target = $region80
        $region79: #{_lambda_.1} parent=11 // pred_region
          %s669 = ssub.s32 2048, 2048
          %670 = vsyncadd [#allocation26], %s669
          %s671 = sshll.u32 [#allocation27], 4
          %s672 = int_to_ptr.vmem [resolvable:$true] %s671
          %677 = dma.hbm_to_vmem [thread:$0]  %s17, 2048, %s672, [#allocation26], 64, 64, 4
        $region80: #{_lambda_.1} parent=11 // pred_fallthru
          _
      $region12: #{_lambda_.1} parent=5 // pred_fallthru
        _
      %p678 = scmp.lt.s32.totalorder %s33, 2
      // Predicated region
      $region81: #{_lambda_.1} parent=5 // pred_check
        %p679 = pneg %p678
      $region82: #{_lambda_.1} parent=5 // pred_check_branch
        %681 = sbr.rel (%p679) target = $region84
      $region83: #{_lambda_.1} parent=5 // pred_region
        // Predicated region
        $region85: #{_lambda_.1} parent=83 // pred_check
          %p682 = pneg %p53
        $region86: #{_lambda_.1} parent=83 // pred_check_branch
          %684 = sbr.rel (%p682) target = $region88
        $region87: #{_lambda_.1} parent=83 // pred_region
          %p685 = scmp.lt.s32.totalorder %s33, 1
          %s686 = scalar_select %p685, %s33, 1
          %s687 = smul.addr %s686, 2
          %s688 = smul.addr %s687, 4
          %s689 = scalar_lea.vmem %s0, %s688
        $region88: #{_lambda_.1} parent=83 // pred_fallthru
          _
      $region84: #{_lambda_.1} parent=5 // pred_fallthru
        _
      %p690 = scmp.le.s32.totalorder 1, %s33
      %p691 = scmp.lt.s32.totalorder %s33, 3
      %p692 = pnand %p690, %p691
      %p693 = pneg %p692
      // Predicated region
      $region89: #{_lambda_.1} parent=5 // pred_check
        _
      $region90: #{_lambda_.1} parent=5 // pred_check_branch
        %695 = sbr.rel (%p692) target = $region92
      $region91: #{_lambda_.1} parent=5 // pred_region
        %s696 = ssub.s32 %s33, 1
        // Predicated region
        $region93: #{_lambda_.1} parent=91 // pred_check
          %p697 = pneg %p80
        $region94: #{_lambda_.1} parent=91 // pred_check_branch
          %699 = sbr.rel (%p697) target = $region96
        $region95: #{_lambda_.1} parent=91 // pred_region
          %700 = dma.done [#allocation3], 36864
        $region96: #{_lambda_.1} parent=91 // pred_fallthru
          _
        // Predicated region
        $region97: #{_lambda_.1} parent=91 // pred_check
          %p701 = pneg %p101
        $region98: #{_lambda_.1} parent=91 // pred_check_branch
          %703 = sbr.rel (%p701) target = $region100
        $region99: #{_lambda_.1} parent=91 // pred_region
          %704 = dma.done [#allocation5], 128
        $region100: #{_lambda_.1} parent=91 // pred_fallthru
          _
        // Predicated region
        $region101: #{_lambda_.1} parent=91 // pred_check
          %p705 = pneg %p122
        $region102: #{_lambda_.1} parent=91 // pred_check_branch
          %707 = sbr.rel (%p705) target = $region104
        $region103: #{_lambda_.1} parent=91 // pred_region
          %708 = dma.done [#allocation5], 256
        $region104: #{_lambda_.1} parent=91 // pred_fallthru
          _
        // Predicated region
        $region105: #{_lambda_.1} parent=91 // pred_check
          %p709 = pneg %p143
        $region106: #{_lambda_.1} parent=91 // pred_check_branch
          %711 = sbr.rel (%p709) target = $region108
        $region107: #{_lambda_.1} parent=91 // pred_region
          %712 = dma.done [#allocation8], 256
        $region108: #{_lambda_.1} parent=91 // pred_fallthru
          _
        // Predicated region
        $region109: #{_lambda_.1} parent=91 // pred_check
          %p713 = pneg %p164
        $region110: #{_lambda_.1} parent=91 // pred_check_branch
          %715 = sbr.rel (%p713) target = $region112
        $region111: #{_lambda_.1} parent=91 // pred_region
          %716 = dma.done [#allocation8], 256
        $region112: #{_lambda_.1} parent=91 // pred_fallthru
          _
        // Predicated region
        $region113: #{_lambda_.1} parent=91 // pred_check
          %p717 = pneg %p185
        $region114: #{_lambda_.1} parent=91 // pred_check_branch
          %719 = sbr.rel (%p717) target = $region116
        $region115: #{_lambda_.1} parent=91 // pred_region
          %720 = dma.done [#allocation11], 256
        $region116: #{_lambda_.1} parent=91 // pred_fallthru
          _
        // Predicated region
        $region117: #{_lambda_.1} parent=91 // pred_check
          %p721 = pneg %p206
        $region118: #{_lambda_.1} parent=91 // pred_check_branch
          %723 = sbr.rel (%p721) target = $region120
        $region119: #{_lambda_.1} parent=91 // pred_region
          %724 = dma.done [#allocation11], 256
        $region120: #{_lambda_.1} parent=91 // pred_fallthru
          _
        // Predicated region
        $region121: #{_lambda_.1} parent=91 // pred_check
          %p725 = pneg %p227
        $region122: #{_lambda_.1} parent=91 // pred_check_branch
          %727 = sbr.rel (%p725) target = $region124
        $region123: #{_lambda_.1} parent=91 // pred_region
          %728 = dma.done [#allocation14], 128
        $region124: #{_lambda_.1} parent=91 // pred_fallthru
          _
        // Predicated region
        $region125: #{_lambda_.1} parent=91 // pred_check
          %p729 = pneg %p248
        $region126: #{_lambda_.1} parent=91 // pred_check_branch
          %731 = sbr.rel (%p729) target = $region128
        $region127: #{_lambda_.1} parent=91 // pred_region
          %732 = dma.done [#allocation14], 256
        $region128: #{_lambda_.1} parent=91 // pred_fallthru
          _
        // Predicated region
        $region129: #{_lambda_.1} parent=91 // pred_check
          %p733 = pneg %p269
        $region130: #{_lambda_.1} parent=91 // pred_check_branch
          %735 = sbr.rel (%p733) target = $region132
        $region131: #{_lambda_.1} parent=91 // pred_region
          %736 = dma.done [#allocation17], 128
        $region132: #{_lambda_.1} parent=91 // pred_fallthru
          _
        // Predicated region
        $region133: #{_lambda_.1} parent=91 // pred_check
          %p737 = pneg %p290
        $region134: #{_lambda_.1} parent=91 // pred_check_branch
          %739 = sbr.rel (%p737) target = $region136
        $region135: #{_lambda_.1} parent=91 // pred_region
          %740 = dma.done [#allocation17], 128
        $region136: #{_lambda_.1} parent=91 // pred_fallthru
          _
        // Predicated region
        $region137: #{_lambda_.1} parent=91 // pred_check
          %p741 = pneg %p311
        $region138: #{_lambda_.1} parent=91 // pred_check_branch
          %743 = sbr.rel (%p741) target = $region140
        $region139: #{_lambda_.1} parent=91 // pred_region
          %744 = dma.done [#allocation20], 256
        $region140: #{_lambda_.1} parent=91 // pred_fallthru
          _
        // Predicated region
        $region141: #{_lambda_.1} parent=91 // pred_check
          %p745 = pneg %p332
        $region142: #{_lambda_.1} parent=91 // pred_check_branch
          %747 = sbr.rel (%p745) target = $region144
        $region143: #{_lambda_.1} parent=91 // pred_region
          %748 = dma.done [#allocation20], 256
        $region144: #{_lambda_.1} parent=91 // pred_fallthru
          _
        // Predicated region
        $region145: #{_lambda_.1} parent=91 // pred_check
          %p749 = pneg %p353
        $region146: #{_lambda_.1} parent=91 // pred_check_branch
          %751 = sbr.rel (%p749) target = $region148
        $region147: #{_lambda_.1} parent=91 // pred_region
          %752 = dma.done [#allocation23], 256
        $region148: #{_lambda_.1} parent=91 // pred_fallthru
          _
        // Predicated region
        $region149: #{_lambda_.1} parent=91 // pred_check
          %p753 = pneg %p374
        $region150: #{_lambda_.1} parent=91 // pred_check_branch
          %755 = sbr.rel (%p753) target = $region152
        $region151: #{_lambda_.1} parent=91 // pred_region
          %756 = dma.done [#allocation23], 256
        $region152: #{_lambda_.1} parent=91 // pred_fallthru
          _
        // Predicated region
        $region153: #{_lambda_.1} parent=91 // pred_check
          %p757 = pneg %p395
        $region154: #{_lambda_.1} parent=91 // pred_check_branch
          %759 = sbr.rel (%p757) target = $region156
        $region155: #{_lambda_.1} parent=91 // pred_region
          %760 = dma.done [#allocation26], 256
        $region156: #{_lambda_.1} parent=91 // pred_fallthru
          _
        // Predicated region
        $region157: #{_lambda_.1} parent=91 // pred_check
          %p761 = pneg %p416
        $region158: #{_lambda_.1} parent=91 // pred_check_branch
          %763 = sbr.rel (%p761) target = $region160
        $region159: #{_lambda_.1} parent=91 // pred_region
          %764 = dma.done [#allocation26], 2048
        $region160: #{_lambda_.1} parent=91 // pred_fallthru
          _
        %p765 = scmp.lt.s32.totalorder %s38, 1
        %s766 = scalar_select %p765, %s38, 1
        %s767 = smul.addr %s766, 2
        %s768 = smul.addr %s767, 4
        %s769 = scalar_lea.vmem %s0, %s768
        %p770 = pneg %p59
        %p771 = pneg %p56
        %p772 = pneg %p80
        %p773 = pneg %p77
        %p774 = pneg %p101
        %p775 = pneg %p98
        %p776 = pneg %p122
        %p777 = pneg %p119
        %p778 = pneg %p143
        %p779 = pneg %p140
        %p780 = pneg %p164
        %p781 = pneg %p161
        %p782 = pneg %p185
        %p783 = pneg %p182
        %p784 = pneg %p206
        %p785 = pneg %p203
        %p786 = pneg %p227
        %p787 = pneg %p224
        %p788 = pneg %p248
        %p789 = pneg %p245
        %p790 = pneg %p269
        %p791 = pneg %p266
        %p792 = pneg %p290
        %p793 = pneg %p287
        %p794 = pneg %p311
        %p795 = pneg %p308
        %p796 = pneg %p332
        %p797 = pneg %p329
        %p798 = pneg %p353
        %p799 = pneg %p350
        %p800 = pneg %p374
        %p801 = pneg %p371
        %p802 = pneg %p395
        %p803 = pneg %p392
        %p804 = pneg %p416
        %p805 = pneg %p413
        %p806 = pneg %p442
        %p807 = pneg %p439
        %p808 = scmp.lt.s32.totalorder %s38, 1
        %s809 = scalar_select %p808, %s38, 1
        %s810 = smul.addr %s809, 2
        %s811 = smul.addr %s810, 8
        %s812 = scalar_lea.vmem %s18, %s811
        %p813 = scmp.lt.s32.totalorder %s38, 1
        %s814 = scalar_select %p813, %s38, 1
        %s815 = smul.addr %s814, 2
        %s816 = smul.addr %s815, 4
        %s817 = scalar_lea.vmem %s0, %s816
        %p818 = scmp.lt.s32.totalorder %s38, 1
        %s819 = scalar_select %p818, %s38, 1
        %s820 = smul.addr %s819, 2
        %s821 = smul.addr %s820, 8
        %s822 = scalar_lea.vmem %s18, %s821
        %v824 = vld [vmem:[%s817] sm:$0xff]
        %v826 = vcombine.high %v824, %v824
        %v828 = vpack.c.bf16 %v824, %v824
        %v829 = vpack.c.bf16 %v826, %v826
        %v830 = vld [vmem:[#allocation4] sm:$0xf]
        %v831 = vld [vmem:[#allocation4 + $0x4] sm:$0xf]
        %v834 = vunpack.c.l.b16 %v830
        %v835 = vunpack.c.l.b16 %v831
        %v836 = vpack.c.b16 %v835, %v834
        %vm837 = vcmask 31744
        %v839 = vsel %vm837, %v836, 0
        %vm841 = vcmask 1041408
        %v843 = vsel %vm841, %v828, 0
        %v846 = vsel %vm841, %v829, 0
        %848 = vmatprep.subr.bf16.mxu0 0
        %849 = vmatpush1.bf16.msra.mxu0 0
        %850 = vmatprep.subr.bf16.mxu0 0
        %851 = vmatpush1.bf16.msra.mxu0 0
        %852 = vmatprep.subr.bf16.mxu0 0
        %853 = vmatpush1.bf16.msra.mxu0 0
        %854 = vmatprep.subr.bf16.mxu0 0
        %855 = vmatpush1.bf16.msra.mxu0 0
        %856 = vmatprep.subr.bf16.mxu0 0
        %857 = vmatpush1.bf16.msra.mxu0 0
        %858 = vmatprep.subr.bf16.mxu0 0
        %859 = vmatpush1.bf16.msra.mxu0 0
        %860 = vmatprep.subr.bf16.mxu0 0
        %861 = vmatpush1.bf16.msra.mxu0 0
        %862 = vmatprep.subr.bf16.mxu0 %v846
        %863 = vmatpush1.bf16.msra.mxu0 %v843
        %864 = vmatprep.subr.bf16.mxu0 0
        %865 = vmatpush2.bf16.msra.mxu0 0
        %866 = vmatprep.subr.bf16.mxu0 0
        %867 = vmatpush2.bf16.msra.mxu0 0
        %868 = vmatprep.subr.bf16.mxu0 0
        %869 = vmatpush2.bf16.msra.mxu0 0
        %870 = vmatprep.subr.bf16.mxu0 0
        %871 = vmatpush2.bf16.msra.mxu0 0
        %872 = vmatprep.subr.bf16.mxu0 0
        %873 = vmatpush2.bf16.msra.mxu0 0
        %874 = vmatprep.subr.bf16.mxu0 0
        %875 = vmatpush2.bf16.msra.mxu0 0
        %876 = vmatprep.subr.bf16.mxu0 0
        %877 = vmatpush2.bf16.msra.mxu0 0
        %878 = vmatprep.subr.bf16.mxu0 0
        %879 = vmatpush2.bf16.msra.mxu0 0
        %880 = vmatprep.mubr.bf16.mxu0 0
        %881 = vmatmul.mubr.bf16.gmra.mxu0 %v839
        %v882 = vpop.f32.mrf.mxu0
        %v883 = vadd.f32 0.0, %v882
        %v884 = vpop.f32.mrf.mxu0
        %v885 = vadd.f32 0.0, %v884
        %v886 = vpop.f32.mrf.mxu0
        %v887 = vadd.f32 0.0, %v886
        %v888 = vpop.f32.mrf.mxu0
        %v889 = vadd.f32 0.0, %v888
        %890 = vdwg.mxu0
        %v891 = vld [vmem:[#allocation6] sm:$0xff]
        %v892 = vld [vmem:[#allocation6 + $0x8] sm:$0xff]
        %894 = vset.pattern.permute.xlu0 0
        %895 = vperm.xlu0 %894, %v891
        %v896 = vpop.permute.xlu0 %895
        %899 = vset.pattern.permute.xlu0 0
        %900 = vperm.xlu0 %899, %v892
        %v901 = vpop.permute.xlu0 %900
        %v903 = vmul.f32 %v883, %v896
        %v904 = vmul.f32 %v885, %v896
        %v905 = vmul.f32 %v887, %v901
        %v906 = vmul.f32 %v889, %v901
        %v907 = vld [vmem:[#allocation7] sm:$0xff]
        %v908 = vld [vmem:[#allocation7 + $0x8] sm:$0xff]
        %910 = vset.pattern.permute.xlu0 0
        %911 = vperm.xlu0 %910, %v907
        %v912 = vpop.permute.xlu0 %911
        %915 = vset.pattern.permute.xlu0 0
        %916 = vperm.xlu0 %915, %v908
        %v917 = vpop.permute.xlu0 %916
        %v919 = vadd.f32 %v903, %v912
        %v920 = vadd.f32 %v904, %v912
        %v921 = vadd.f32 %v905, %v917
        %v922 = vadd.f32 %v906, %v917
        %v923 = vmax.f32 %v919, 0.0
        %v924 = vmax.f32 %v920, 0.0
        %v925 = vmax.f32 %v921, 0.0
        %v926 = vmax.f32 %v922, 0.0
        %v927 = vpack.c.bf16 %v925, %v923
        %v928 = vpack.c.bf16 %v926, %v924
        %v929 = vld [vmem:[#allocation9] sm:$0xff]
        %v930 = vld [vmem:[#allocation9 + $0x8] sm:$0xff]
        %v931 = vld [vmem:[#allocation2] sm:$0xff]
        %v932 = vld [vmem:[#allocation2 + $0x8] sm:$0xff]
        %v933 = vld [vmem:[#allocation2 + $0x10] sm:$0xff]
        %v934 = vld [vmem:[#allocation2 + $0x18] sm:$0xff]
        %v935 = vld [vmem:[#allocation2 + $0x20] sm:$0xff]
        %v936 = vld [vmem:[#allocation2 + $0x28] sm:$0xff]
        %v937 = vld [vmem:[#allocation2 + $0x30] sm:$0xff]
        %v938 = vld [vmem:[#allocation2 + $0x38] sm:$0xff]
        %v939 = vld [vmem:[#allocation2 + $0x40] sm:$0xff]
        %v940 = vld [vmem:[#allocation2 + $0x48] sm:$0xff]
        %v941 = vld [vmem:[#allocation2 + $0x50] sm:$0xff]
        %v942 = vld [vmem:[#allocation2 + $0x58] sm:$0xff]
        %v943 = vld [vmem:[#allocation2 + $0x60] sm:$0xff]
        %v944 = vld [vmem:[#allocation2 + $0x68] sm:$0xff]
        %v945 = vld [vmem:[#allocation2 + $0x70] sm:$0xff]
        %v946 = vld [vmem:[#allocation2 + $0x78] sm:$0xff]
        %v947 = vld [vmem:[#allocation2 + $0x80] sm:$0xff]
        %v948 = vld [vmem:[#allocation2 + $0x88] sm:$0xff]
        %v949 = vld [vmem:[#allocation2 + $0x90] sm:$0xff]
        %v950 = vld [vmem:[#allocation2 + $0x98] sm:$0xff]
        %v951 = vld [vmem:[#allocation2 + $0xa0] sm:$0xff]
        %v952 = vld [vmem:[#allocation2 + $0xa8] sm:$0xff]
        %v953 = vld [vmem:[#allocation2 + $0xb0] sm:$0xff]
        %v954 = vld [vmem:[#allocation2 + $0xb8] sm:$0xff]
        %v955 = vld [vmem:[#allocation2 + $0xc0] sm:$0xff]
        %v956 = vld [vmem:[#allocation2 + $0xc8] sm:$0xff]
        %v957 = vld [vmem:[#allocation2 + $0xd0] sm:$0xff]
        %v958 = vld [vmem:[#allocation2 + $0xd8] sm:$0xff]
        %v959 = vld [vmem:[#allocation2 + $0xe0] sm:$0xff]
        %v960 = vld [vmem:[#allocation2 + $0xe8] sm:$0xff]
        %v961 = vld [vmem:[#allocation2 + $0xf0] sm:$0xff]
        %v962 = vld [vmem:[#allocation2 + $0xf8] sm:$0xff]
        %v995 = vunpack.c.l.b16 %v931
        %v996 = vunpack.c.h.b16 %v931
        %v997 = vunpack.c.l.b16 %v932
        %v998 = vunpack.c.h.b16 %v932
        %v999 = vunpack.c.l.b16 %v933
        %v1000 = vunpack.c.h.b16 %v933
        %v1001 = vunpack.c.l.b16 %v934
        %v1002 = vunpack.c.h.b16 %v934
        %v1003 = vunpack.c.l.b16 %v935
        %v1004 = vunpack.c.h.b16 %v935
        %v1005 = vunpack.c.l.b16 %v936
        %v1006 = vunpack.c.h.b16 %v936
        %v1007 = vunpack.c.l.b16 %v937
        %v1008 = vunpack.c.h.b16 %v937
        %v1009 = vunpack.c.l.b16 %v938
        %v1010 = vunpack.c.h.b16 %v938
        %v1011 = vunpack.c.l.b16 %v939
        %v1012 = vunpack.c.h.b16 %v939
        %v1013 = vunpack.c.l.b16 %v940
        %v1014 = vunpack.c.h.b16 %v940
        %v1015 = vunpack.c.l.b16 %v941
        %v1016 = vunpack.c.h.b16 %v941
        %v1017 = vunpack.c.l.b16 %v942
        %v1018 = vunpack.c.h.b16 %v942
        %v1019 = vunpack.c.l.b16 %v943
        %v1020 = vunpack.c.h.b16 %v943
        %v1021 = vunpack.c.l.b16 %v944
        %v1022 = vunpack.c.h.b16 %v944
        %v1023 = vunpack.c.l.b16 %v945
        %v1024 = vunpack.c.h.b16 %v945
        %v1025 = vunpack.c.l.b16 %v946
        %v1026 = vunpack.c.h.b16 %v946
        %v1027 = vunpack.c.l.b16 %v947
        %v1028 = vunpack.c.h.b16 %v947
        %v1029 = vunpack.c.l.b16 %v948
        %v1030 = vunpack.c.h.b16 %v948
        %v1031 = vunpack.c.l.b16 %v949
        %v1032 = vunpack.c.h.b16 %v949
        %v1033 = vunpack.c.l.b16 %v950
        %v1034 = vunpack.c.h.b16 %v950
        %v1035 = vunpack.c.l.b16 %v951
        %v1036 = vunpack.c.h.b16 %v951
        %v1037 = vunpack.c.l.b16 %v952
        %v1038 = vunpack.c.h.b16 %v952
        %v1039 = vunpack.c.l.b16 %v953
        %v1040 = vunpack.c.h.b16 %v953
        %v1041 = vunpack.c.l.b16 %v954
        %v1042 = vunpack.c.h.b16 %v954
        %v1043 = vunpack.c.l.b16 %v955
        %v1044 = vunpack.c.h.b16 %v955
        %v1045 = vunpack.c.l.b16 %v956
        %v1046 = vunpack.c.h.b16 %v956
        %v1047 = vunpack.c.l.b16 %v957
        %v1048 = vunpack.c.h.b16 %v957
        %v1049 = vunpack.c.l.b16 %v958
        %v1050 = vunpack.c.h.b16 %v958
        %v1051 = vunpack.c.l.b16 %v959
        %v1052 = vunpack.c.h.b16 %v959
        %v1053 = vunpack.c.l.b16 %v960
        %v1054 = vunpack.c.h.b16 %v960
        %v1055 = vunpack.c.l.b16 %v961
        %v1056 = vunpack.c.h.b16 %v961
        %v1057 = vunpack.c.l.b16 %v962
        %v1058 = vunpack.c.h.b16 %v962
        %v1059 = vpack.c.b16 %v997, %v995
        %v1060 = vpack.c.b16 %v998, %v996
        %v1061 = vpack.c.b16 %v1001, %v999
        %v1062 = vpack.c.b16 %v1002, %v1000
        %v1063 = vpack.c.b16 %v1005, %v1003
        %v1064 = vpack.c.b16 %v1006, %v1004
        %v1065 = vpack.c.b16 %v1009, %v1007
        %v1066 = vpack.c.b16 %v1010, %v1008
        %v1067 = vpack.c.b16 %v1013, %v1011
        %v1068 = vpack.c.b16 %v1014, %v1012
        %v1069 = vpack.c.b16 %v1017, %v1015
        %v1070 = vpack.c.b16 %v1018, %v1016
        %v1071 = vpack.c.b16 %v1021, %v1019
        %v1072 = vpack.c.b16 %v1022, %v1020
        %v1073 = vpack.c.b16 %v1025, %v1023
        %v1074 = vpack.c.b16 %v1026, %v1024
        %v1075 = vpack.c.b16 %v1029, %v1027
        %v1076 = vpack.c.b16 %v1030, %v1028
        %v1077 = vpack.c.b16 %v1033, %v1031
        %v1078 = vpack.c.b16 %v1034, %v1032
        %v1079 = vpack.c.b16 %v1037, %v1035
        %v1080 = vpack.c.b16 %v1038, %v1036
        %v1081 = vpack.c.b16 %v1041, %v1039
        %v1082 = vpack.c.b16 %v1042, %v1040
        %v1083 = vpack.c.b16 %v1045, %v1043
        %v1084 = vpack.c.b16 %v1046, %v1044
        %v1085 = vpack.c.b16 %v1049, %v1047
        %v1086 = vpack.c.b16 %v1050, %v1048
        %v1087 = vpack.c.b16 %v1053, %v1051
        %v1088 = vpack.c.b16 %v1054, %v1052
        %v1089 = vpack.c.b16 %v1057, %v1055
        %v1090 = vpack.c.b16 %v1058, %v1056
        %1123 = vmatprep.subr.bf16.mxu0 %v1074
        %1124 = vmatpush1.bf16.msra.mxu0 %v1073
        %1125 = vmatprep.subr.bf16.mxu0 %v1072
        %1126 = vmatpush1.bf16.msra.mxu0 %v1071
        %1127 = vmatprep.subr.bf16.mxu0 %v1070
        %1128 = vmatpush1.bf16.msra.mxu0 %v1069
        %1129 = vmatprep.subr.bf16.mxu0 %v1068
        %1130 = vmatpush1.bf16.msra.mxu0 %v1067
        %1131 = vmatprep.subr.bf16.mxu0 %v1066
        %1132 = vmatpush1.bf16.msra.mxu0 %v1065
        %1133 = vmatprep.subr.bf16.mxu0 %v1064
        %1134 = vmatpush1.bf16.msra.mxu0 %v1063
        %1135 = vmatprep.subr.bf16.mxu0 %v1062
        %1136 = vmatpush1.bf16.msra.mxu0 %v1061
        %1137 = vmatprep.subr.bf16.mxu0 %v1060
        %1138 = vmatpush1.bf16.msra.mxu0 %v1059
        %1139 = vmatprep.subr.bf16.mxu0 %v1090
        %1140 = vmatpush2.bf16.msra.mxu0 %v1089
        %1141 = vmatprep.subr.bf16.mxu0 %v1088
        %1142 = vmatpush2.bf16.msra.mxu0 %v1087
        %1143 = vmatprep.subr.bf16.mxu0 %v1086
        %1144 = vmatpush2.bf16.msra.mxu0 %v1085
        %1145 = vmatprep.subr.bf16.mxu0 %v1084
        %1146 = vmatpush2.bf16.msra.mxu0 %v1083
        %1147 = vmatprep.subr.bf16.mxu0 %v1082
        %1148 = vmatpush2.bf16.msra.mxu0 %v1081
        %1149 = vmatprep.subr.bf16.mxu0 %v1080
        %1150 = vmatpush2.bf16.msra.mxu0 %v1079
        %1151 = vmatprep.subr.bf16.mxu0 %v1078
        %1152 = vmatpush2.bf16.msra.mxu0 %v1077
        %1153 = vmatprep.subr.bf16.mxu0 %v1076
        %1154 = vmatpush2.bf16.msra.mxu0 %v1075
        %1155 = vmatprep.mubr.bf16.mxu0 %v928
        %1156 = vmatmul.mubr.bf16.gmra.mxu0 %v927
        %v1157 = vpop.f32.mrf.mxu0
        %v1158 = vadd.f32 0.0, %v1157
        %v1159 = vpop.f32.mrf.mxu0
        %v1160 = vadd.f32 0.0, %v1159
        %v1161 = vpop.f32.mrf.mxu0
        %v1162 = vadd.f32 0.0, %v1161
        %v1163 = vpop.f32.mrf.mxu0
        %v1164 = vadd.f32 0.0, %v1163
        %1165 = vdwg.mxu0
        %1167 = vset.pattern.permute.xlu0 0
        %1168 = vperm.xlu0 %1167, %v929
        %v1169 = vpop.permute.xlu0 %1168
        %1172 = vset.pattern.permute.xlu0 0
        %1173 = vperm.xlu0 %1172, %v930
        %v1174 = vpop.permute.xlu0 %1173
        %v1176 = vmul.f32 %v1158, %v1169
        %v1177 = vmul.f32 %v1160, %v1169
        %v1178 = vmul.f32 %v1162, %v1174
        %v1179 = vmul.f32 %v1164, %v1174
        %v1180 = vadd.f32 %v1176, 0.0
        %v1181 = vadd.f32 %v1177, 0.0
        %v1182 = vadd.f32 %v1178, 0.0
        %v1183 = vadd.f32 %v1179, 0.0
        %s1184 = scalar_lea.vmem [#allocation2], 256
        %v1185 = vld [vmem:[%s1184] sm:$0xff]
        %v1186 = vld [vmem:[%s1184 + $0x8] sm:$0xff]
        %v1187 = vld [vmem:[%s1184 + $0x10] sm:$0xff]
        %v1188 = vld [vmem:[%s1184 + $0x18] sm:$0xff]
        %v1189 = vld [vmem:[%s1184 + $0x20] sm:$0xff]
        %v1190 = vld [vmem:[%s1184 + $0x28] sm:$0xff]
        %v1191 = vld [vmem:[%s1184 + $0x30] sm:$0xff]
        %v1192 = vld [vmem:[%s1184 + $0x38] sm:$0xff]
        %v1193 = vld [vmem:[%s1184 + $0x40] sm:$0xff]
        %v1194 = vld [vmem:[%s1184 + $0x48] sm:$0xff]
        %v1195 = vld [vmem:[%s1184 + $0x50] sm:$0xff]
        %v1196 = vld [vmem:[%s1184 + $0x58] sm:$0xff]
        %v1197 = vld [vmem:[%s1184 + $0x60] sm:$0xff]
        %v1198 = vld [vmem:[%s1184 + $0x68] sm:$0xff]
        %v1199 = vld [vmem:[%s1184 + $0x70] sm:$0xff]
        %v1200 = vld [vmem:[%s1184 + $0x78] sm:$0xff]
        %v1201 = vld [vmem:[%s1184 + $0x80] sm:$0xff]
        %v1202 = vld [vmem:[%s1184 + $0x88] sm:$0xff]
        %v1203 = vld [vmem:[%s1184 + $0x90] sm:$0xff]
        %v1204 = vld [vmem:[%s1184 + $0x98] sm:$0xff]
        %v1205 = vld [vmem:[%s1184 + $0xa0] sm:$0xff]
        %v1206 = vld [vmem:[%s1184 + $0xa8] sm:$0xff]
        %v1207 = vld [vmem:[%s1184 + $0xb0] sm:$0xff]
        %v1208 = vld [vmem:[%s1184 + $0xb8] sm:$0xff]
        %v1209 = vld [vmem:[%s1184 + $0xc0] sm:$0xff]
        %v1210 = vld [vmem:[%s1184 + $0xc8] sm:$0xff]
        %v1211 = vld [vmem:[%s1184 + $0xd0] sm:$0xff]
        %v1212 = vld [vmem:[%s1184 + $0xd8] sm:$0xff]
        %v1213 = vld [vmem:[%s1184 + $0xe0] sm:$0xff]
        %v1214 = vld [vmem:[%s1184 + $0xe8] sm:$0xff]
        %v1215 = vld [vmem:[%s1184 + $0xf0] sm:$0xff]
        %v1216 = vld [vmem:[%s1184 + $0xf8] sm:$0xff]
        %v1249 = vunpack.c.l.b16 %v1185
        %v1250 = vunpack.c.h.b16 %v1185
        %v1251 = vunpack.c.l.b16 %v1186
        %v1252 = vunpack.c.h.b16 %v1186
        %v1253 = vunpack.c.l.b16 %v1187
        %v1254 = vunpack.c.h.b16 %v1187
        %v1255 = vunpack.c.l.b16 %v1188
        %v1256 = vunpack.c.h.b16 %v1188
        %v1257 = vunpack.c.l.b16 %v1189
        %v1258 = vunpack.c.h.b16 %v1189
        %v1259 = vunpack.c.l.b16 %v1190
        %v1260 = vunpack.c.h.b16 %v1190
        %v1261 = vunpack.c.l.b16 %v1191
        %v1262 = vunpack.c.h.b16 %v1191
        %v1263 = vunpack.c.l.b16 %v1192
        %v1264 = vunpack.c.h.b16 %v1192
        %v1265 = vunpack.c.l.b16 %v1193
        %v1266 = vunpack.c.h.b16 %v1193
        %v1267 = vunpack.c.l.b16 %v1194
        %v1268 = vunpack.c.h.b16 %v1194
        %v1269 = vunpack.c.l.b16 %v1195
        %v1270 = vunpack.c.h.b16 %v1195
        %v1271 = vunpack.c.l.b16 %v1196
        %v1272 = vunpack.c.h.b16 %v1196
        %v1273 = vunpack.c.l.b16 %v1197
        %v1274 = vunpack.c.h.b16 %v1197
        %v1275 = vunpack.c.l.b16 %v1198
        %v1276 = vunpack.c.h.b16 %v1198
        %v1277 = vunpack.c.l.b16 %v1199
        %v1278 = vunpack.c.h.b16 %v1199
        %v1279 = vunpack.c.l.b16 %v1200
        %v1280 = vunpack.c.h.b16 %v1200
        %v1281 = vunpack.c.l.b16 %v1201
        %v1282 = vunpack.c.h.b16 %v1201
        %v1283 = vunpack.c.l.b16 %v1202
        %v1284 = vunpack.c.h.b16 %v1202
        %v1285 = vunpack.c.l.b16 %v1203
        %v1286 = vunpack.c.h.b16 %v1203
        %v1287 = vunpack.c.l.b16 %v1204
        %v1288 = vunpack.c.h.b16 %v1204
        %v1289 = vunpack.c.l.b16 %v1205
        %v1290 = vunpack.c.h.b16 %v1205
        %v1291 = vunpack.c.l.b16 %v1206
        %v1292 = vunpack.c.h.b16 %v1206
        %v1293 = vunpack.c.l.b16 %v1207
        %v1294 = vunpack.c.h.b16 %v1207
        %v1295 = vunpack.c.l.b16 %v1208
        %v1296 = vunpack.c.h.b16 %v1208
        %v1297 = vunpack.c.l.b16 %v1209
        %v1298 = vunpack.c.h.b16 %v1209
        %v1299 = vunpack.c.l.b16 %v1210
        %v1300 = vunpack.c.h.b16 %v1210
        %v1301 = vunpack.c.l.b16 %v1211
        %v1302 = vunpack.c.h.b16 %v1211
        %v1303 = vunpack.c.l.b16 %v1212
        %v1304 = vunpack.c.h.b16 %v1212
        %v1305 = vunpack.c.l.b16 %v1213
        %v1306 = vunpack.c.h.b16 %v1213
        %v1307 = vunpack.c.l.b16 %v1214
        %v1308 = vunpack.c.h.b16 %v1214
        %v1309 = vunpack.c.l.b16 %v1215
        %v1310 = vunpack.c.h.b16 %v1215
        %v1311 = vunpack.c.l.b16 %v1216
        %v1312 = vunpack.c.h.b16 %v1216
        %v1313 = vpack.c.b16 %v1251, %v1249
        %v1314 = vpack.c.b16 %v1252, %v1250
        %v1315 = vpack.c.b16 %v1255, %v1253
        %v1316 = vpack.c.b16 %v1256, %v1254
        %v1317 = vpack.c.b16 %v1259, %v1257
        %v1318 = vpack.c.b16 %v1260, %v1258
        %v1319 = vpack.c.b16 %v1263, %v1261
        %v1320 = vpack.c.b16 %v1264, %v1262
        %v1321 = vpack.c.b16 %v1267, %v1265
        %v1322 = vpack.c.b16 %v1268, %v1266
        %v1323 = vpack.c.b16 %v1271, %v1269
        %v1324 = vpack.c.b16 %v1272, %v1270
        %v1325 = vpack.c.b16 %v1275, %v1273
        %v1326 = vpack.c.b16 %v1276, %v1274
        %v1327 = vpack.c.b16 %v1279, %v1277
        %v1328 = vpack.c.b16 %v1280, %v1278
        %v1329 = vpack.c.b16 %v1283, %v1281
        %v1330 = vpack.c.b16 %v1284, %v1282
        %v1331 = vpack.c.b16 %v1287, %v1285
        %v1332 = vpack.c.b16 %v1288, %v1286
        %v1333 = vpack.c.b16 %v1291, %v1289
        %v1334 = vpack.c.b16 %v1292, %v1290
        %v1335 = vpack.c.b16 %v1295, %v1293
        %v1336 = vpack.c.b16 %v1296, %v1294
        %v1337 = vpack.c.b16 %v1299, %v1297
        %v1338 = vpack.c.b16 %v1300, %v1298
        %v1339 = vpack.c.b16 %v1303, %v1301
        %v1340 = vpack.c.b16 %v1304, %v1302
        %v1341 = vpack.c.b16 %v1307, %v1305
        %v1342 = vpack.c.b16 %v1308, %v1306
        %v1343 = vpack.c.b16 %v1311, %v1309
        %v1344 = vpack.c.b16 %v1312, %v1310
        %1377 = vmatprep.subr.bf16.mxu0 %v1328
        %1378 = vmatpush1.bf16.msra.mxu0 %v1327
        %1379 = vmatprep.subr.bf16.mxu0 %v1326
        %1380 = vmatpush1.bf16.msra.mxu0 %v1325
        %1381 = vmatprep.subr.bf16.mxu0 %v1324
        %1382 = vmatpush1.bf16.msra.mxu0 %v1323
        %1383 = vmatprep.subr.bf16.mxu0 %v1322
        %1384 = vmatpush1.bf16.msra.mxu0 %v1321
        %1385 = vmatprep.subr.bf16.mxu0 %v1320
        %1386 = vmatpush1.bf16.msra.mxu0 %v1319
        %1387 = vmatprep.subr.bf16.mxu0 %v1318
        %1388 = vmatpush1.bf16.msra.mxu0 %v1317
        %1389 = vmatprep.subr.bf16.mxu0 %v1316
        %1390 = vmatpush1.bf16.msra.mxu0 %v1315
        %1391 = vmatprep.subr.bf16.mxu0 %v1314
        %1392 = vmatpush1.bf16.msra.mxu0 %v1313
        %1393 = vmatprep.subr.bf16.mxu0 %v1344
        %1394 = vmatpush2.bf16.msra.mxu0 %v1343
        %1395 = vmatprep.subr.bf16.mxu0 %v1342
        %1396 = vmatpush2.bf16.msra.mxu0 %v1341
        %1397 = vmatprep.subr.bf16.mxu0 %v1340
        %1398 = vmatpush2.bf16.msra.mxu0 %v1339
        %1399 = vmatprep.subr.bf16.mxu0 %v1338
        %1400 = vmatpush2.bf16.msra.mxu0 %v1337
        %1401 = vmatprep.subr.bf16.mxu0 %v1336
        %1402 = vmatpush2.bf16.msra.mxu0 %v1335
        %1403 = vmatprep.subr.bf16.mxu0 %v1334
        %1404 = vmatpush2.bf16.msra.mxu0 %v1333
        %1405 = vmatprep.subr.bf16.mxu0 %v1332
        %1406 = vmatpush2.bf16.msra.mxu0 %v1331
        %1407 = vmatprep.subr.bf16.mxu0 %v1330
        %1408 = vmatpush2.bf16.msra.mxu0 %v1329
        %1409 = vmatprep.mubr.bf16.mxu0 %v928
        %1410 = vmatmul.mubr.bf16.gmra.mxu0 %v927
        %v1411 = vpop.f32.mrf.mxu0
        %v1412 = vadd.f32 0.0, %v1411
        %v1413 = vpop.f32.mrf.mxu0
        %v1414 = vadd.f32 0.0, %v1413
        %v1415 = vpop.f32.mrf.mxu0
        %v1416 = vadd.f32 0.0, %v1415
        %v1417 = vpop.f32.mrf.mxu0
        %v1418 = vadd.f32 0.0, %v1417
        %1419 = vdwg.mxu0
        %1420 = vset.pattern.permute.xlu0 1
        %1421 = vperm.xlu0 %1420, %v929
        %v1422 = vpop.permute.xlu0 %1421
        %1424 = vset.pattern.permute.xlu0 1
        %1425 = vperm.xlu0 %1424, %v930
        %v1426 = vpop.permute.xlu0 %1425
        %v1428 = vmul.f32 %v1412, %v1422
        %v1429 = vmul.f32 %v1414, %v1422
        %v1430 = vmul.f32 %v1416, %v1426
        %v1431 = vmul.f32 %v1418, %v1426
        %v1432 = vadd.f32 %v1180, %v1428
        %v1433 = vadd.f32 %v1181, %v1429
        %v1434 = vadd.f32 %v1182, %v1430
        %v1435 = vadd.f32 %v1183, %v1431
        %s1436 = scalar_lea.vmem [#allocation2], 512
        %v1437 = vld [vmem:[%s1436] sm:$0xff]
        %v1438 = vld [vmem:[%s1436 + $0x8] sm:$0xff]
        %v1439 = vld [vmem:[%s1436 + $0x10] sm:$0xff]
        %v1440 = vld [vmem:[%s1436 + $0x18] sm:$0xff]
        %v1441 = vld [vmem:[%s1436 + $0x20] sm:$0xff]
        %v1442 = vld [vmem:[%s1436 + $0x28] sm:$0xff]
        %v1443 = vld [vmem:[%s1436 + $0x30] sm:$0xff]
        %v1444 = vld [vmem:[%s1436 + $0x38] sm:$0xff]
        %v1445 = vld [vmem:[%s1436 + $0x40] sm:$0xff]
        %v1446 = vld [vmem:[%s1436 + $0x48] sm:$0xff]
        %v1447 = vld [vmem:[%s1436 + $0x50] sm:$0xff]
        %v1448 = vld [vmem:[%s1436 + $0x58] sm:$0xff]
        %v1449 = vld [vmem:[%s1436 + $0x60] sm:$0xff]
        %v1450 = vld [vmem:[%s1436 + $0x68] sm:$0xff]
        %v1451 = vld [vmem:[%s1436 + $0x70] sm:$0xff]
        %v1452 = vld [vmem:[%s1436 + $0x78] sm:$0xff]
        %v1453 = vld [vmem:[%s1436 + $0x80] sm:$0xff]
        %v1454 = vld [vmem:[%s1436 + $0x88] sm:$0xff]
        %v1455 = vld [vmem:[%s1436 + $0x90] sm:$0xff]
        %v1456 = vld [vmem:[%s1436 + $0x98] sm:$0xff]
        %v1457 = vld [vmem:[%s1436 + $0xa0] sm:$0xff]
        %v1458 = vld [vmem:[%s1436 + $0xa8] sm:$0xff]
        %v1459 = vld [vmem:[%s1436 + $0xb0] sm:$0xff]
        %v1460 = vld [vmem:[%s1436 + $0xb8] sm:$0xff]
        %v1461 = vld [vmem:[%s1436 + $0xc0] sm:$0xff]
        %v1462 = vld [vmem:[%s1436 + $0xc8] sm:$0xff]
        %v1463 = vld [vmem:[%s1436 + $0xd0] sm:$0xff]
        %v1464 = vld [vmem:[%s1436 + $0xd8] sm:$0xff]
        %v1465 = vld [vmem:[%s1436 + $0xe0] sm:$0xff]
        %v1466 = vld [vmem:[%s1436 + $0xe8] sm:$0xff]
        %v1467 = vld [vmem:[%s1436 + $0xf0] sm:$0xff]
        %v1468 = vld [vmem:[%s1436 + $0xf8] sm:$0xff]
        %v1501 = vunpack.c.l.b16 %v1437
        %v1502 = vunpack.c.h.b16 %v1437
        %v1503 = vunpack.c.l.b16 %v1438
        %v1504 = vunpack.c.h.b16 %v1438
        %v1505 = vunpack.c.l.b16 %v1439
        %v1506 = vunpack.c.h.b16 %v1439
        %v1507 = vunpack.c.l.b16 %v1440
        %v1508 = vunpack.c.h.b16 %v1440
        %v1509 = vunpack.c.l.b16 %v1441
        %v1510 = vunpack.c.h.b16 %v1441
        %v1511 = vunpack.c.l.b16 %v1442
        %v1512 = vunpack.c.h.b16 %v1442
        %v1513 = vunpack.c.l.b16 %v1443
        %v1514 = vunpack.c.h.b16 %v1443
        %v1515 = vunpack.c.l.b16 %v1444
        %v1516 = vunpack.c.h.b16 %v1444
        %v1517 = vunpack.c.l.b16 %v1445
        %v1518 = vunpack.c.h.b16 %v1445
        %v1519 = vunpack.c.l.b16 %v1446
        %v1520 = vunpack.c.h.b16 %v1446
        %v1521 = vunpack.c.l.b16 %v1447
        %v1522 = vunpack.c.h.b16 %v1447
        %v1523 = vunpack.c.l.b16 %v1448
        %v1524 = vunpack.c.h.b16 %v1448
        %v1525 = vunpack.c.l.b16 %v1449
        %v1526 = vunpack.c.h.b16 %v1449
        %v1527 = vunpack.c.l.b16 %v1450
        %v1528 = vunpack.c.h.b16 %v1450
        %v1529 = vunpack.c.l.b16 %v1451
        %v1530 = vunpack.c.h.b16 %v1451
        %v1531 = vunpack.c.l.b16 %v1452
        %v1532 = vunpack.c.h.b16 %v1452
        %v1533 = vunpack.c.l.b16 %v1453
        %v1534 = vunpack.c.h.b16 %v1453
        %v1535 = vunpack.c.l.b16 %v1454
        %v1536 = vunpack.c.h.b16 %v1454
        %v1537 = vunpack.c.l.b16 %v1455
        %v1538 = vunpack.c.h.b16 %v1455
        %v1539 = vunpack.c.l.b16 %v1456
        %v1540 = vunpack.c.h.b16 %v1456
        %v1541 = vunpack.c.l.b16 %v1457
        %v1542 = vunpack.c.h.b16 %v1457
        %v1543 = vunpack.c.l.b16 %v1458
        %v1544 = vunpack.c.h.b16 %v1458
        %v1545 = vunpack.c.l.b16 %v1459
        %v1546 = vunpack.c.h.b16 %v1459
        %v1547 = vunpack.c.l.b16 %v1460
        %v1548 = vunpack.c.h.b16 %v1460
        %v1549 = vunpack.c.l.b16 %v1461
        %v1550 = vunpack.c.h.b16 %v1461
        %v1551 = vunpack.c.l.b16 %v1462
        %v1552 = vunpack.c.h.b16 %v1462
        %v1553 = vunpack.c.l.b16 %v1463
        %v1554 = vunpack.c.h.b16 %v1463
        %v1555 = vunpack.c.l.b16 %v1464
        %v1556 = vunpack.c.h.b16 %v1464
        %v1557 = vunpack.c.l.b16 %v1465
        %v1558 = vunpack.c.h.b16 %v1465
        %v1559 = vunpack.c.l.b16 %v1466
        %v1560 = vunpack.c.h.b16 %v1466
        %v1561 = vunpack.c.l.b16 %v1467
        %v1562 = vunpack.c.h.b16 %v1467
        %v1563 = vunpack.c.l.b16 %v1468
        %v1564 = vunpack.c.h.b16 %v1468
        %v1565 = vpack.c.b16 %v1503, %v1501
        %v1566 = vpack.c.b16 %v1504, %v1502
        %v1567 = vpack.c.b16 %v1507, %v1505
        %v1568 = vpack.c.b16 %v1508, %v1506
        %v1569 = vpack.c.b16 %v1511, %v1509
        %v1570 = vpack.c.b16 %v1512, %v1510
        %v1571 = vpack.c.b16 %v1515, %v1513
        %v1572 = vpack.c.b16 %v1516, %v1514
        %v1573 = vpack.c.b16 %v1519, %v1517
        %v1574 = vpack.c.b16 %v1520, %v1518
        %v1575 = vpack.c.b16 %v1523, %v1521
        %v1576 = vpack.c.b16 %v1524, %v1522
        %v1577 = vpack.c.b16 %v1527, %v1525
        %v1578 = vpack.c.b16 %v1528, %v1526
        %v1579 = vpack.c.b16 %v1531, %v1529
        %v1580 = vpack.c.b16 %v1532, %v1530
        %v1581 = vpack.c.b16 %v1535, %v1533
        %v1582 = vpack.c.b16 %v1536, %v1534
        %v1583 = vpack.c.b16 %v1539, %v1537
        %v1584 = vpack.c.b16 %v1540, %v1538
        %v1585 = vpack.c.b16 %v1543, %v1541
        %v1586 = vpack.c.b16 %v1544, %v1542
        %v1587 = vpack.c.b16 %v1547, %v1545
        %v1588 = vpack.c.b16 %v1548, %v1546
        %v1589 = vpack.c.b16 %v1551, %v1549
        %v1590 = vpack.c.b16 %v1552, %v1550
        %v1591 = vpack.c.b16 %v1555, %v1553
        %v1592 = vpack.c.b16 %v1556, %v1554
        %v1593 = vpack.c.b16 %v1559, %v1557
        %v1594 = vpack.c.b16 %v1560, %v1558
        %v1595 = vpack.c.b16 %v1563, %v1561
        %v1596 = vpack.c.b16 %v1564, %v1562
        %1629 = vmatprep.subr.bf16.mxu0 %v1580
        %1630 = vmatpush1.bf16.msra.mxu0 %v1579
        %1631 = vmatprep.subr.bf16.mxu0 %v1578
        %1632 = vmatpush1.bf16.msra.mxu0 %v1577
        %1633 = vmatprep.subr.bf16.mxu0 %v1576
        %1634 = vmatpush1.bf16.msra.mxu0 %v1575
        %1635 = vmatprep.subr.bf16.mxu0 %v1574
        %1636 = vmatpush1.bf16.msra.mxu0 %v1573
        %1637 = vmatprep.subr.bf16.mxu0 %v1572
        %1638 = vmatpush1.bf16.msra.mxu0 %v1571
        %1639 = vmatprep.subr.bf16.mxu0 %v1570
        %1640 = vmatpush1.bf16.msra.mxu0 %v1569
        %1641 = vmatprep.subr.bf16.mxu0 %v1568
        %1642 = vmatpush1.bf16.msra.mxu0 %v1567
        %1643 = vmatprep.subr.bf16.mxu0 %v1566
        %1644 = vmatpush1.bf16.msra.mxu0 %v1565
        %1645 = vmatprep.subr.bf16.mxu0 %v1596
        %1646 = vmatpush2.bf16.msra.mxu0 %v1595
        %1647 = vmatprep.subr.bf16.mxu0 %v1594
        %1648 = vmatpush2.bf16.msra.mxu0 %v1593
        %1649 = vmatprep.subr.bf16.mxu0 %v1592
        %1650 = vmatpush2.bf16.msra.mxu0 %v1591
        %1651 = vmatprep.subr.bf16.mxu0 %v1590
        %1652 = vmatpush2.bf16.msra.mxu0 %v1589
        %1653 = vmatprep.subr.bf16.mxu0 %v1588
        %1654 = vmatpush2.bf16.msra.mxu0 %v1587
        %1655 = vmatprep.subr.bf16.mxu0 %v1586
        %1656 = vmatpush2.bf16.msra.mxu0 %v1585
        %1657 = vmatprep.subr.bf16.mxu0 %v1584
        %1658 = vmatpush2.bf16.msra.mxu0 %v1583
        %1659 = vmatprep.subr.bf16.mxu0 %v1582
        %1660 = vmatpush2.bf16.msra.mxu0 %v1581
        %1661 = vmatprep.mubr.bf16.mxu0 %v928
        %1662 = vmatmul.mubr.bf16.gmra.mxu0 %v927
        %v1663 = vpop.f32.mrf.mxu0
        %v1664 = vadd.f32 0.0, %v1663
        %v1665 = vpop.f32.mrf.mxu0
        %v1666 = vadd.f32 0.0, %v1665
        %v1667 = vpop.f32.mrf.mxu0
        %v1668 = vadd.f32 0.0, %v1667
        %v1669 = vpop.f32.mrf.mxu0
        %v1670 = vadd.f32 0.0, %v1669
        %1671 = vdwg.mxu0
        %1672 = vset.pattern.permute.xlu0 2
        %1673 = vperm.xlu0 %1672, %v929
        %v1674 = vpop.permute.xlu0 %1673
        %1676 = vset.pattern.permute.xlu0 2
        %1677 = vperm.xlu0 %1676, %v930
        %v1678 = vpop.permute.xlu0 %1677
        %v1680 = vmul.f32 %v1664, %v1674
        %v1681 = vmul.f32 %v1666, %v1674
        %v1682 = vmul.f32 %v1668, %v1678
        %v1683 = vmul.f32 %v1670, %v1678
        %v1684 = vadd.f32 %v1432, %v1680
        %v1685 = vadd.f32 %v1433, %v1681
        %v1686 = vadd.f32 %v1434, %v1682
        %v1687 = vadd.f32 %v1435, %v1683
        %s1688 = scalar_lea.vmem [#allocation2], 768
        %v1689 = vld [vmem:[%s1688] sm:$0xff]
        %v1690 = vld [vmem:[%s1688 + $0x8] sm:$0xff]
        %v1691 = vld [vmem:[%s1688 + $0x10] sm:$0xff]
        %v1692 = vld [vmem:[%s1688 + $0x18] sm:$0xff]
        %v1693 = vld [vmem:[%s1688 + $0x20] sm:$0xff]
        %v1694 = vld [vmem:[%s1688 + $0x28] sm:$0xff]
        %v1695 = vld [vmem:[%s1688 + $0x30] sm:$0xff]
        %v1696 = vld [vmem:[%s1688 + $0x38] sm:$0xff]
        %v1697 = vld [vmem:[%s1688 + $0x40] sm:$0xff]
        %v1698 = vld [vmem:[%s1688 + $0x48] sm:$0xff]
        %v1699 = vld [vmem:[%s1688 + $0x50] sm:$0xff]
        %v1700 = vld [vmem:[%s1688 + $0x58] sm:$0xff]
        %v1701 = vld [vmem:[%s1688 + $0x60] sm:$0xff]
        %v1702 = vld [vmem:[%s1688 + $0x68] sm:$0xff]
        %v1703 = vld [vmem:[%s1688 + $0x70] sm:$0xff]
        %v1704 = vld [vmem:[%s1688 + $0x78] sm:$0xff]
        %v1705 = vld [vmem:[%s1688 + $0x80] sm:$0xff]
        %v1706 = vld [vmem:[%s1688 + $0x88] sm:$0xff]
        %v1707 = vld [vmem:[%s1688 + $0x90] sm:$0xff]
        %v1708 = vld [vmem:[%s1688 + $0x98] sm:$0xff]
        %v1709 = vld [vmem:[%s1688 + $0xa0] sm:$0xff]
        %v1710 = vld [vmem:[%s1688 + $0xa8] sm:$0xff]
        %v1711 = vld [vmem:[%s1688 + $0xb0] sm:$0xff]
        %v1712 = vld [vmem:[%s1688 + $0xb8] sm:$0xff]
        %v1713 = vld [vmem:[%s1688 + $0xc0] sm:$0xff]
        %v1714 = vld [vmem:[%s1688 + $0xc8] sm:$0xff]
        %v1715 = vld [vmem:[%s1688 + $0xd0] sm:$0xff]
        %v1716 = vld [vmem:[%s1688 + $0xd8] sm:$0xff]
        %v1717 = vld [vmem:[%s1688 + $0xe0] sm:$0xff]
        %v1718 = vld [vmem:[%s1688 + $0xe8] sm:$0xff]
        %v1719 = vld [vmem:[%s1688 + $0xf0] sm:$0xff]
        %v1720 = vld [vmem:[%s1688 + $0xf8] sm:$0xff]
        %v1753 = vunpack.c.l.b16 %v1689
        %v1754 = vunpack.c.h.b16 %v1689
        %v1755 = vunpack.c.l.b16 %v1690
        %v1756 = vunpack.c.h.b16 %v1690
        %v1757 = vunpack.c.l.b16 %v1691
        %v1758 = vunpack.c.h.b16 %v1691
        %v1759 = vunpack.c.l.b16 %v1692
        %v1760 = vunpack.c.h.b16 %v1692
        %v1761 = vunpack.c.l.b16 %v1693
        %v1762 = vunpack.c.h.b16 %v1693
        %v1763 = vunpack.c.l.b16 %v1694
        %v1764 = vunpack.c.h.b16 %v1694
        %v1765 = vunpack.c.l.b16 %v1695
        %v1766 = vunpack.c.h.b16 %v1695
        %v1767 = vunpack.c.l.b16 %v1696
        %v1768 = vunpack.c.h.b16 %v1696
        %v1769 = vunpack.c.l.b16 %v1697
        %v1770 = vunpack.c.h.b16 %v1697
        %v1771 = vunpack.c.l.b16 %v1698
        %v1772 = vunpack.c.h.b16 %v1698
        %v1773 = vunpack.c.l.b16 %v1699
        %v1774 = vunpack.c.h.b16 %v1699
        %v1775 = vunpack.c.l.b16 %v1700
        %v1776 = vunpack.c.h.b16 %v1700
        %v1777 = vunpack.c.l.b16 %v1701
        %v1778 = vunpack.c.h.b16 %v1701
        %v1779 = vunpack.c.l.b16 %v1702
        %v1780 = vunpack.c.h.b16 %v1702
        %v1781 = vunpack.c.l.b16 %v1703
        %v1782 = vunpack.c.h.b16 %v1703
        %v1783 = vunpack.c.l.b16 %v1704
        %v1784 = vunpack.c.h.b16 %v1704
        %v1785 = vunpack.c.l.b16 %v1705
        %v1786 = vunpack.c.h.b16 %v1705
        %v1787 = vunpack.c.l.b16 %v1706
        %v1788 = vunpack.c.h.b16 %v1706
        %v1789 = vunpack.c.l.b16 %v1707
        %v1790 = vunpack.c.h.b16 %v1707
        %v1791 = vunpack.c.l.b16 %v1708
        %v1792 = vunpack.c.h.b16 %v1708
        %v1793 = vunpack.c.l.b16 %v1709
        %v1794 = vunpack.c.h.b16 %v1709
        %v1795 = vunpack.c.l.b16 %v1710
        %v1796 = vunpack.c.h.b16 %v1710
        %v1797 = vunpack.c.l.b16 %v1711
        %v1798 = vunpack.c.h.b16 %v1711
        %v1799 = vunpack.c.l.b16 %v1712
        %v1800 = vunpack.c.h.b16 %v1712
        %v1801 = vunpack.c.l.b16 %v1713
        %v1802 = vunpack.c.h.b16 %v1713
        %v1803 = vunpack.c.l.b16 %v1714
        %v1804 = vunpack.c.h.b16 %v1714
        %v1805 = vunpack.c.l.b16 %v1715
        %v1806 = vunpack.c.h.b16 %v1715
        %v1807 = vunpack.c.l.b16 %v1716
        %v1808 = vunpack.c.h.b16 %v1716
        %v1809 = vunpack.c.l.b16 %v1717
        %v1810 = vunpack.c.h.b16 %v1717
        %v1811 = vunpack.c.l.b16 %v1718
        %v1812 = vunpack.c.h.b16 %v1718
        %v1813 = vunpack.c.l.b16 %v1719
        %v1814 = vunpack.c.h.b16 %v1719
        %v1815 = vunpack.c.l.b16 %v1720
        %v1816 = vunpack.c.h.b16 %v1720
        %v1817 = vpack.c.b16 %v1755, %v1753
        %v1818 = vpack.c.b16 %v1756, %v1754
        %v1819 = vpack.c.b16 %v1759, %v1757
        %v1820 = vpack.c.b16 %v1760, %v1758
        %v1821 = vpack.c.b16 %v1763, %v1761
        %v1822 = vpack.c.b16 %v1764, %v1762
        %v1823 = vpack.c.b16 %v1767, %v1765
        %v1824 = vpack.c.b16 %v1768, %v1766
        %v1825 = vpack.c.b16 %v1771, %v1769
        %v1826 = vpack.c.b16 %v1772, %v1770
        %v1827 = vpack.c.b16 %v1775, %v1773
        %v1828 = vpack.c.b16 %v1776, %v1774
        %v1829 = vpack.c.b16 %v1779, %v1777
        %v1830 = vpack.c.b16 %v1780, %v1778
        %v1831 = vpack.c.b16 %v1783, %v1781
        %v1832 = vpack.c.b16 %v1784, %v1782
        %v1833 = vpack.c.b16 %v1787, %v1785
        %v1834 = vpack.c.b16 %v1788, %v1786
        %v1835 = vpack.c.b16 %v1791, %v1789
        %v1836 = vpack.c.b16 %v1792, %v1790
        %v1837 = vpack.c.b16 %v1795, %v1793
        %v1838 = vpack.c.b16 %v1796, %v1794
        %v1839 = vpack.c.b16 %v1799, %v1797
        %v1840 = vpack.c.b16 %v1800, %v1798
        %v1841 = vpack.c.b16 %v1803, %v1801
        %v1842 = vpack.c.b16 %v1804, %v1802
        %v1843 = vpack.c.b16 %v1807, %v1805
        %v1844 = vpack.c.b16 %v1808, %v1806
        %v1845 = vpack.c.b16 %v1811, %v1809
        %v1846 = vpack.c.b16 %v1812, %v1810
        %v1847 = vpack.c.b16 %v1815, %v1813
        %v1848 = vpack.c.b16 %v1816, %v1814
        %1881 = vmatprep.subr.bf16.mxu0 %v1832
        %1882 = vmatpush1.bf16.msra.mxu0 %v1831
        %1883 = vmatprep.subr.bf16.mxu0 %v1830
        %1884 = vmatpush1.bf16.msra.mxu0 %v1829
        %1885 = vmatprep.subr.bf16.mxu0 %v1828
        %1886 = vmatpush1.bf16.msra.mxu0 %v1827
        %1887 = vmatprep.subr.bf16.mxu0 %v1826
        %1888 = vmatpush1.bf16.msra.mxu0 %v1825
        %1889 = vmatprep.subr.bf16.mxu0 %v1824
        %1890 = vmatpush1.bf16.msra.mxu0 %v1823
        %1891 = vmatprep.subr.bf16.mxu0 %v1822
        %1892 = vmatpush1.bf16.msra.mxu0 %v1821
        %1893 = vmatprep.subr.bf16.mxu0 %v1820
        %1894 = vmatpush1.bf16.msra.mxu0 %v1819
        %1895 = vmatprep.subr.bf16.mxu0 %v1818
        %1896 = vmatpush1.bf16.msra.mxu0 %v1817
        %1897 = vmatprep.subr.bf16.mxu0 %v1848
        %1898 = vmatpush2.bf16.msra.mxu0 %v1847
        %1899 = vmatprep.subr.bf16.mxu0 %v1846
        %1900 = vmatpush2.bf16.msra.mxu0 %v1845
        %1901 = vmatprep.subr.bf16.mxu0 %v1844
        %1902 = vmatpush2.bf16.msra.mxu0 %v1843
        %1903 = vmatprep.subr.bf16.mxu0 %v1842
        %1904 = vmatpush2.bf16.msra.mxu0 %v1841
        %1905 = vmatprep.subr.bf16.mxu0 %v1840
        %1906 = vmatpush2.bf16.msra.mxu0 %v1839
        %1907 = vmatprep.subr.bf16.mxu0 %v1838
        %1908 = vmatpush2.bf16.msra.mxu0 %v1837
        %1909 = vmatprep.subr.bf16.mxu0 %v1836
        %1910 = vmatpush2.bf16.msra.mxu0 %v1835
        %1911 = vmatprep.subr.bf16.mxu0 %v1834
        %1912 = vmatpush2.bf16.msra.mxu0 %v1833
        %1913 = vmatprep.mubr.bf16.mxu0 %v928
        %1914 = vmatmul.mubr.bf16.gmra.mxu0 %v927
        %v1915 = vpop.f32.mrf.mxu0
        %v1916 = vadd.f32 0.0, %v1915
        %v1917 = vpop.f32.mrf.mxu0
        %v1918 = vadd.f32 0.0, %v1917
        %v1919 = vpop.f32.mrf.mxu0
        %v1920 = vadd.f32 0.0, %v1919
        %v1921 = vpop.f32.mrf.mxu0
        %v1922 = vadd.f32 0.0, %v1921
        %1923 = vdwg.mxu0
        %1924 = vset.pattern.permute.xlu0 3
        %1925 = vperm.xlu0 %1924, %v929
        %v1926 = vpop.permute.xlu0 %1925
        %1928 = vset.pattern.permute.xlu0 3
        %1929 = vperm.xlu0 %1928, %v930
        %v1930 = vpop.permute.xlu0 %1929
        %v1932 = vmul.f32 %v1916, %v1926
        %v1933 = vmul.f32 %v1918, %v1926
        %v1934 = vmul.f32 %v1920, %v1930
        %v1935 = vmul.f32 %v1922, %v1930
        %v1936 = vadd.f32 %v1684, %v1932
        %v1937 = vadd.f32 %v1685, %v1933
        %v1938 = vadd.f32 %v1686, %v1934
        %v1939 = vadd.f32 %v1687, %v1935
        %v1940 = vunpack.c.l.bf16 %v927
        %v1941 = vunpack.c.l.bf16 %v928
        %v1942 = vunpack.c.h.bf16 %v927
        %v1943 = vunpack.c.h.bf16 %v928
        %1944 = vset.pattern.permute.xlu0 4
        %1945 = vperm.xlu0 %1944, %v929
        %v1946 = vpop.permute.xlu0 %1945
        %1948 = vset.pattern.permute.xlu0 4
        %1949 = vperm.xlu0 %1948, %v930
        %v1950 = vpop.permute.xlu0 %1949
        %v1952 = vmul.f32 %v1940, %v1946
        %v1953 = vmul.f32 %v1941, %v1946
        %v1954 = vmul.f32 %v1942, %v1950
        %v1955 = vmul.f32 %v1943, %v1950
        %v1956 = vadd.f32 %v1936, %v1952
        %v1957 = vadd.f32 %v1937, %v1953
        %v1958 = vadd.f32 %v1938, %v1954
        %v1959 = vadd.f32 %v1939, %v1955
        %s1960 = scalar_lea.vmem [#allocation2], 1280
        %v1961 = vld [vmem:[%s1960] sm:$0xff]
        %v1962 = vld [vmem:[%s1960 + $0x8] sm:$0xff]
        %v1963 = vld [vmem:[%s1960 + $0x10] sm:$0xff]
        %v1964 = vld [vmem:[%s1960 + $0x18] sm:$0xff]
        %v1965 = vld [vmem:[%s1960 + $0x20] sm:$0xff]
        %v1966 = vld [vmem:[%s1960 + $0x28] sm:$0xff]
        %v1967 = vld [vmem:[%s1960 + $0x30] sm:$0xff]
        %v1968 = vld [vmem:[%s1960 + $0x38] sm:$0xff]
        %v1969 = vld [vmem:[%s1960 + $0x40] sm:$0xff]
        %v1970 = vld [vmem:[%s1960 + $0x48] sm:$0xff]
        %v1971 = vld [vmem:[%s1960 + $0x50] sm:$0xff]
        %v1972 = vld [vmem:[%s1960 + $0x58] sm:$0xff]
        %v1973 = vld [vmem:[%s1960 + $0x60] sm:$0xff]
        %v1974 = vld [vmem:[%s1960 + $0x68] sm:$0xff]
        %v1975 = vld [vmem:[%s1960 + $0x70] sm:$0xff]
        %v1976 = vld [vmem:[%s1960 + $0x78] sm:$0xff]
        %v1977 = vld [vmem:[%s1960 + $0x80] sm:$0xff]
        %v1978 = vld [vmem:[%s1960 + $0x88] sm:$0xff]
        %v1979 = vld [vmem:[%s1960 + $0x90] sm:$0xff]
        %v1980 = vld [vmem:[%s1960 + $0x98] sm:$0xff]
        %v1981 = vld [vmem:[%s1960 + $0xa0] sm:$0xff]
        %v1982 = vld [vmem:[%s1960 + $0xa8] sm:$0xff]
        %v1983 = vld [vmem:[%s1960 + $0xb0] sm:$0xff]
        %v1984 = vld [vmem:[%s1960 + $0xb8] sm:$0xff]
        %v1985 = vld [vmem:[%s1960 + $0xc0] sm:$0xff]
        %v1986 = vld [vmem:[%s1960 + $0xc8] sm:$0xff]
        %v1987 = vld [vmem:[%s1960 + $0xd0] sm:$0xff]
        %v1988 = vld [vmem:[%s1960 + $0xd8] sm:$0xff]
        %v1989 = vld [vmem:[%s1960 + $0xe0] sm:$0xff]
        %v1990 = vld [vmem:[%s1960 + $0xe8] sm:$0xff]
        %v1991 = vld [vmem:[%s1960 + $0xf0] sm:$0xff]
        %v1992 = vld [vmem:[%s1960 + $0xf8] sm:$0xff]
        %v2025 = vunpack.c.l.b16 %v1961
        %v2026 = vunpack.c.h.b16 %v1961
        %v2027 = vunpack.c.l.b16 %v1962
        %v2028 = vunpack.c.h.b16 %v1962
        %v2029 = vunpack.c.l.b16 %v1963
        %v2030 = vunpack.c.h.b16 %v1963
        %v2031 = vunpack.c.l.b16 %v1964
        %v2032 = vunpack.c.h.b16 %v1964
        %v2033 = vunpack.c.l.b16 %v1965
        %v2034 = vunpack.c.h.b16 %v1965
        %v2035 = vunpack.c.l.b16 %v1966
        %v2036 = vunpack.c.h.b16 %v1966
        %v2037 = vunpack.c.l.b16 %v1967
        %v2038 = vunpack.c.h.b16 %v1967
        %v2039 = vunpack.c.l.b16 %v1968
        %v2040 = vunpack.c.h.b16 %v1968
        %v2041 = vunpack.c.l.b16 %v1969
        %v2042 = vunpack.c.h.b16 %v1969
        %v2043 = vunpack.c.l.b16 %v1970
        %v2044 = vunpack.c.h.b16 %v1970
        %v2045 = vunpack.c.l.b16 %v1971
        %v2046 = vunpack.c.h.b16 %v1971
        %v2047 = vunpack.c.l.b16 %v1972
        %v2048 = vunpack.c.h.b16 %v1972
        %v2049 = vunpack.c.l.b16 %v1973
        %v2050 = vunpack.c.h.b16 %v1973
        %v2051 = vunpack.c.l.b16 %v1974
        %v2052 = vunpack.c.h.b16 %v1974
        %v2053 = vunpack.c.l.b16 %v1975
        %v2054 = vunpack.c.h.b16 %v1975
        %v2055 = vunpack.c.l.b16 %v1976
        %v2056 = vunpack.c.h.b16 %v1976
        %v2057 = vunpack.c.l.b16 %v1977
        %v2058 = vunpack.c.h.b16 %v1977
        %v2059 = vunpack.c.l.b16 %v1978
        %v2060 = vunpack.c.h.b16 %v1978
        %v2061 = vunpack.c.l.b16 %v1979
        %v2062 = vunpack.c.h.b16 %v1979
        %v2063 = vunpack.c.l.b16 %v1980
        %v2064 = vunpack.c.h.b16 %v1980
        %v2065 = vunpack.c.l.b16 %v1981
        %v2066 = vunpack.c.h.b16 %v1981
        %v2067 = vunpack.c.l.b16 %v1982
        %v2068 = vunpack.c.h.b16 %v1982
        %v2069 = vunpack.c.l.b16 %v1983
        %v2070 = vunpack.c.h.b16 %v1983
        %v2071 = vunpack.c.l.b16 %v1984
        %v2072 = vunpack.c.h.b16 %v1984
        %v2073 = vunpack.c.l.b16 %v1985
        %v2074 = vunpack.c.h.b16 %v1985
        %v2075 = vunpack.c.l.b16 %v1986
        %v2076 = vunpack.c.h.b16 %v1986
        %v2077 = vunpack.c.l.b16 %v1987
        %v2078 = vunpack.c.h.b16 %v1987
        %v2079 = vunpack.c.l.b16 %v1988
        %v2080 = vunpack.c.h.b16 %v1988
        %v2081 = vunpack.c.l.b16 %v1989
        %v2082 = vunpack.c.h.b16 %v1989
        %v2083 = vunpack.c.l.b16 %v1990
        %v2084 = vunpack.c.h.b16 %v1990
        %v2085 = vunpack.c.l.b16 %v1991
        %v2086 = vunpack.c.h.b16 %v1991
        %v2087 = vunpack.c.l.b16 %v1992
        %v2088 = vunpack.c.h.b16 %v1992
        %v2089 = vpack.c.b16 %v2027, %v2025
        %v2090 = vpack.c.b16 %v2028, %v2026
        %v2091 = vpack.c.b16 %v2031, %v2029
        %v2092 = vpack.c.b16 %v2032, %v2030
        %v2093 = vpack.c.b16 %v2035, %v2033
        %v2094 = vpack.c.b16 %v2036, %v2034
        %v2095 = vpack.c.b16 %v2039, %v2037
        %v2096 = vpack.c.b16 %v2040, %v2038
        %v2097 = vpack.c.b16 %v2043, %v2041
        %v2098 = vpack.c.b16 %v2044, %v2042
        %v2099 = vpack.c.b16 %v2047, %v2045
        %v2100 = vpack.c.b16 %v2048, %v2046
        %v2101 = vpack.c.b16 %v2051, %v2049
        %v2102 = vpack.c.b16 %v2052, %v2050
        %v2103 = vpack.c.b16 %v2055, %v2053
        %v2104 = vpack.c.b16 %v2056, %v2054
        %v2105 = vpack.c.b16 %v2059, %v2057
        %v2106 = vpack.c.b16 %v2060, %v2058
        %v2107 = vpack.c.b16 %v2063, %v2061
        %v2108 = vpack.c.b16 %v2064, %v2062
        %v2109 = vpack.c.b16 %v2067, %v2065
        %v2110 = vpack.c.b16 %v2068, %v2066
        %v2111 = vpack.c.b16 %v2071, %v2069
        %v2112 = vpack.c.b16 %v2072, %v2070
        %v2113 = vpack.c.b16 %v2075, %v2073
        %v2114 = vpack.c.b16 %v2076, %v2074
        %v2115 = vpack.c.b16 %v2079, %v2077
        %v2116 = vpack.c.b16 %v2080, %v2078
        %v2117 = vpack.c.b16 %v2083, %v2081
        %v2118 = vpack.c.b16 %v2084, %v2082
        %v2119 = vpack.c.b16 %v2087, %v2085
        %v2120 = vpack.c.b16 %v2088, %v2086
        %2153 = vmatprep.subr.bf16.mxu0 %v2104
        %2154 = vmatpush1.bf16.msra.mxu0 %v2103
        %2155 = vmatprep.subr.bf16.mxu0 %v2102
        %2156 = vmatpush1.bf16.msra.mxu0 %v2101
        %2157 = vmatprep.subr.bf16.mxu0 %v2100
        %2158 = vmatpush1.bf16.msra.mxu0 %v2099
        %2159 = vmatprep.subr.bf16.mxu0 %v2098
        %2160 = vmatpush1.bf16.msra.mxu0 %v2097
        %2161 = vmatprep.subr.bf16.mxu0 %v2096
        %2162 = vmatpush1.bf16.msra.mxu0 %v2095
        %2163 = vmatprep.subr.bf16.mxu0 %v2094
        %2164 = vmatpush1.bf16.msra.mxu0 %v2093
        %2165 = vmatprep.subr.bf16.mxu0 %v2092
        %2166 = vmatpush1.bf16.msra.mxu0 %v2091
        %2167 = vmatprep.subr.bf16.mxu0 %v2090
        %2168 = vmatpush1.bf16.msra.mxu0 %v2089
        %2169 = vmatprep.subr.bf16.mxu0 %v2120
        %2170 = vmatpush2.bf16.msra.mxu0 %v2119
        %2171 = vmatprep.subr.bf16.mxu0 %v2118
        %2172 = vmatpush2.bf16.msra.mxu0 %v2117
        %2173 = vmatprep.subr.bf16.mxu0 %v2116
        %2174 = vmatpush2.bf16.msra.mxu0 %v2115
        %2175 = vmatprep.subr.bf16.mxu0 %v2114
        %2176 = vmatpush2.bf16.msra.mxu0 %v2113
        %2177 = vmatprep.subr.bf16.mxu0 %v2112
        %2178 = vmatpush2.bf16.msra.mxu0 %v2111
        %2179 = vmatprep.subr.bf16.mxu0 %v2110
        %2180 = vmatpush2.bf16.msra.mxu0 %v2109
        %2181 = vmatprep.subr.bf16.mxu0 %v2108
        %2182 = vmatpush2.bf16.msra.mxu0 %v2107
        %2183 = vmatprep.subr.bf16.mxu0 %v2106
        %2184 = vmatpush2.bf16.msra.mxu0 %v2105
        %2185 = vmatprep.mubr.bf16.mxu0 %v928
        %2186 = vmatmul.mubr.bf16.gmra.mxu0 %v927
        %v2187 = vpop.f32.mrf.mxu0
        %v2188 = vadd.f32 0.0, %v2187
        %v2189 = vpop.f32.mrf.mxu0
        %v2190 = vadd.f32 0.0, %v2189
        %v2191 = vpop.f32.mrf.mxu0
        %v2192 = vadd.f32 0.0, %v2191
        %v2193 = vpop.f32.mrf.mxu0
        %v2194 = vadd.f32 0.0, %v2193
        %2195 = vdwg.mxu0
        %2196 = vset.pattern.permute.xlu0 5
        %2197 = vperm.xlu0 %2196, %v929
        %v2198 = vpop.permute.xlu0 %2197
        %2200 = vset.pattern.permute.xlu0 5
        %2201 = vperm.xlu0 %2200, %v930
        %v2202 = vpop.permute.xlu0 %2201
        %v2204 = vmul.f32 %v2188, %v2198
        %v2205 = vmul.f32 %v2190, %v2198
        %v2206 = vmul.f32 %v2192, %v2202
        %v2207 = vmul.f32 %v2194, %v2202
        %v2208 = vadd.f32 %v1956, %v2204
        %v2209 = vadd.f32 %v1957, %v2205
        %v2210 = vadd.f32 %v1958, %v2206
        %v2211 = vadd.f32 %v1959, %v2207
        %s2212 = scalar_lea.vmem [#allocation2], 1536
        %v2213 = vld [vmem:[%s2212] sm:$0xff]
        %v2214 = vld [vmem:[%s2212 + $0x8] sm:$0xff]
        %v2215 = vld [vmem:[%s2212 + $0x10] sm:$0xff]
        %v2216 = vld [vmem:[%s2212 + $0x18] sm:$0xff]
        %v2217 = vld [vmem:[%s2212 + $0x20] sm:$0xff]
        %v2218 = vld [vmem:[%s2212 + $0x28] sm:$0xff]
        %v2219 = vld [vmem:[%s2212 + $0x30] sm:$0xff]
        %v2220 = vld [vmem:[%s2212 + $0x38] sm:$0xff]
        %v2221 = vld [vmem:[%s2212 + $0x40] sm:$0xff]
        %v2222 = vld [vmem:[%s2212 + $0x48] sm:$0xff]
        %v2223 = vld [vmem:[%s2212 + $0x50] sm:$0xff]
        %v2224 = vld [vmem:[%s2212 + $0x58] sm:$0xff]
        %v2225 = vld [vmem:[%s2212 + $0x60] sm:$0xff]
        %v2226 = vld [vmem:[%s2212 + $0x68] sm:$0xff]
        %v2227 = vld [vmem:[%s2212 + $0x70] sm:$0xff]
        %v2228 = vld [vmem:[%s2212 + $0x78] sm:$0xff]
        %v2229 = vld [vmem:[%s2212 + $0x80] sm:$0xff]
        %v2230 = vld [vmem:[%s2212 + $0x88] sm:$0xff]
        %v2231 = vld [vmem:[%s2212 + $0x90] sm:$0xff]
        %v2232 = vld [vmem:[%s2212 + $0x98] sm:$0xff]
        %v2233 = vld [vmem:[%s2212 + $0xa0] sm:$0xff]
        %v2234 = vld [vmem:[%s2212 + $0xa8] sm:$0xff]
        %v2235 = vld [vmem:[%s2212 + $0xb0] sm:$0xff]
        %v2236 = vld [vmem:[%s2212 + $0xb8] sm:$0xff]
        %v2237 = vld [vmem:[%s2212 + $0xc0] sm:$0xff]
        %v2238 = vld [vmem:[%s2212 + $0xc8] sm:$0xff]
        %v2239 = vld [vmem:[%s2212 + $0xd0] sm:$0xff]
        %v2240 = vld [vmem:[%s2212 + $0xd8] sm:$0xff]
        %v2241 = vld [vmem:[%s2212 + $0xe0] sm:$0xff]
        %v2242 = vld [vmem:[%s2212 + $0xe8] sm:$0xff]
        %v2243 = vld [vmem:[%s2212 + $0xf0] sm:$0xff]
        %v2244 = vld [vmem:[%s2212 + $0xf8] sm:$0xff]
        %v2277 = vunpack.c.l.b16 %v2213
        %v2278 = vunpack.c.h.b16 %v2213
        %v2279 = vunpack.c.l.b16 %v2214
        %v2280 = vunpack.c.h.b16 %v2214
        %v2281 = vunpack.c.l.b16 %v2215
        %v2282 = vunpack.c.h.b16 %v2215
        %v2283 = vunpack.c.l.b16 %v2216
        %v2284 = vunpack.c.h.b16 %v2216
        %v2285 = vunpack.c.l.b16 %v2217
        %v2286 = vunpack.c.h.b16 %v2217
        %v2287 = vunpack.c.l.b16 %v2218
        %v2288 = vunpack.c.h.b16 %v2218
        %v2289 = vunpack.c.l.b16 %v2219
        %v2290 = vunpack.c.h.b16 %v2219
        %v2291 = vunpack.c.l.b16 %v2220
        %v2292 = vunpack.c.h.b16 %v2220
        %v2293 = vunpack.c.l.b16 %v2221
        %v2294 = vunpack.c.h.b16 %v2221
        %v2295 = vunpack.c.l.b16 %v2222
        %v2296 = vunpack.c.h.b16 %v2222
        %v2297 = vunpack.c.l.b16 %v2223
        %v2298 = vunpack.c.h.b16 %v2223
        %v2299 = vunpack.c.l.b16 %v2224
        %v2300 = vunpack.c.h.b16 %v2224
        %v2301 = vunpack.c.l.b16 %v2225
        %v2302 = vunpack.c.h.b16 %v2225
        %v2303 = vunpack.c.l.b16 %v2226
        %v2304 = vunpack.c.h.b16 %v2226
        %v2305 = vunpack.c.l.b16 %v2227
        %v2306 = vunpack.c.h.b16 %v2227
        %v2307 = vunpack.c.l.b16 %v2228
        %v2308 = vunpack.c.h.b16 %v2228
        %v2309 = vunpack.c.l.b16 %v2229
        %v2310 = vunpack.c.h.b16 %v2229
        %v2311 = vunpack.c.l.b16 %v2230
        %v2312 = vunpack.c.h.b16 %v2230
        %v2313 = vunpack.c.l.b16 %v2231
        %v2314 = vunpack.c.h.b16 %v2231
        %v2315 = vunpack.c.l.b16 %v2232
        %v2316 = vunpack.c.h.b16 %v2232
        %v2317 = vunpack.c.l.b16 %v2233
        %v2318 = vunpack.c.h.b16 %v2233
        %v2319 = vunpack.c.l.b16 %v2234
        %v2320 = vunpack.c.h.b16 %v2234
        %v2321 = vunpack.c.l.b16 %v2235
        %v2322 = vunpack.c.h.b16 %v2235
        %v2323 = vunpack.c.l.b16 %v2236
        %v2324 = vunpack.c.h.b16 %v2236
        %v2325 = vunpack.c.l.b16 %v2237
        %v2326 = vunpack.c.h.b16 %v2237
        %v2327 = vunpack.c.l.b16 %v2238
        %v2328 = vunpack.c.h.b16 %v2238
        %v2329 = vunpack.c.l.b16 %v2239
        %v2330 = vunpack.c.h.b16 %v2239
        %v2331 = vunpack.c.l.b16 %v2240
        %v2332 = vunpack.c.h.b16 %v2240
        %v2333 = vunpack.c.l.b16 %v2241
        %v2334 = vunpack.c.h.b16 %v2241
        %v2335 = vunpack.c.l.b16 %v2242
        %v2336 = vunpack.c.h.b16 %v2242
        %v2337 = vunpack.c.l.b16 %v2243
        %v2338 = vunpack.c.h.b16 %v2243
        %v2339 = vunpack.c.l.b16 %v2244
        %v2340 = vunpack.c.h.b16 %v2244
        %v2341 = vpack.c.b16 %v2279, %v2277
        %v2342 = vpack.c.b16 %v2280, %v2278
        %v2343 = vpack.c.b16 %v2283, %v2281
        %v2344 = vpack.c.b16 %v2284, %v2282
        %v2345 = vpack.c.b16 %v2287, %v2285
        %v2346 = vpack.c.b16 %v2288, %v2286
        %v2347 = vpack.c.b16 %v2291, %v2289
        %v2348 = vpack.c.b16 %v2292, %v2290
        %v2349 = vpack.c.b16 %v2295, %v2293
        %v2350 = vpack.c.b16 %v2296, %v2294
        %v2351 = vpack.c.b16 %v2299, %v2297
        %v2352 = vpack.c.b16 %v2300, %v2298
        %v2353 = vpack.c.b16 %v2303, %v2301
        %v2354 = vpack.c.b16 %v2304, %v2302
        %v2355 = vpack.c.b16 %v2307, %v2305
        %v2356 = vpack.c.b16 %v2308, %v2306
        %v2357 = vpack.c.b16 %v2311, %v2309
        %v2358 = vpack.c.b16 %v2312, %v2310
        %v2359 = vpack.c.b16 %v2315, %v2313
        %v2360 = vpack.c.b16 %v2316, %v2314
        %v2361 = vpack.c.b16 %v2319, %v2317
        %v2362 = vpack.c.b16 %v2320, %v2318
        %v2363 = vpack.c.b16 %v2323, %v2321
        %v2364 = vpack.c.b16 %v2324, %v2322
        %v2365 = vpack.c.b16 %v2327, %v2325
        %v2366 = vpack.c.b16 %v2328, %v2326
        %v2367 = vpack.c.b16 %v2331, %v2329
        %v2368 = vpack.c.b16 %v2332, %v2330
        %v2369 = vpack.c.b16 %v2335, %v2333
        %v2370 = vpack.c.b16 %v2336, %v2334
        %v2371 = vpack.c.b16 %v2339, %v2337
        %v2372 = vpack.c.b16 %v2340, %v2338
        %2405 = vmatprep.subr.bf16.mxu0 %v2356
        %2406 = vmatpush1.bf16.msra.mxu0 %v2355
        %2407 = vmatprep.subr.bf16.mxu0 %v2354
        %2408 = vmatpush1.bf16.msra.mxu0 %v2353
        %2409 = vmatprep.subr.bf16.mxu0 %v2352
        %2410 = vmatpush1.bf16.msra.mxu0 %v2351
        %2411 = vmatprep.subr.bf16.mxu0 %v2350
        %2412 = vmatpush1.bf16.msra.mxu0 %v2349
        %2413 = vmatprep.subr.bf16.mxu0 %v2348
        %2414 = vmatpush1.bf16.msra.mxu0 %v2347
        %2415 = vmatprep.subr.bf16.mxu0 %v2346
        %2416 = vmatpush1.bf16.msra.mxu0 %v2345
        %2417 = vmatprep.subr.bf16.mxu0 %v2344
        %2418 = vmatpush1.bf16.msra.mxu0 %v2343
        %2419 = vmatprep.subr.bf16.mxu0 %v2342
        %2420 = vmatpush1.bf16.msra.mxu0 %v2341
        %2421 = vmatprep.subr.bf16.mxu0 %v2372
        %2422 = vmatpush2.bf16.msra.mxu0 %v2371
        %2423 = vmatprep.subr.bf16.mxu0 %v2370
        %2424 = vmatpush2.bf16.msra.mxu0 %v2369
        %2425 = vmatprep.subr.bf16.mxu0 %v2368
        %2426 = vmatpush2.bf16.msra.mxu0 %v2367
        %2427 = vmatprep.subr.bf16.mxu0 %v2366
        %2428 = vmatpush2.bf16.msra.mxu0 %v2365
        %2429 = vmatprep.subr.bf16.mxu0 %v2364
        %2430 = vmatpush2.bf16.msra.mxu0 %v2363
        %2431 = vmatprep.subr.bf16.mxu0 %v2362
        %2432 = vmatpush2.bf16.msra.mxu0 %v2361
        %2433 = vmatprep.subr.bf16.mxu0 %v2360
        %2434 = vmatpush2.bf16.msra.mxu0 %v2359
        %2435 = vmatprep.subr.bf16.mxu0 %v2358
        %2436 = vmatpush2.bf16.msra.mxu0 %v2357
        %2437 = vmatprep.mubr.bf16.mxu0 %v928
        %2438 = vmatmul.mubr.bf16.gmra.mxu0 %v927
        %v2439 = vpop.f32.mrf.mxu0
        %v2440 = vadd.f32 0.0, %v2439
        %v2441 = vpop.f32.mrf.mxu0
        %v2442 = vadd.f32 0.0, %v2441
        %v2443 = vpop.f32.mrf.mxu0
        %v2444 = vadd.f32 0.0, %v2443
        %v2445 = vpop.f32.mrf.mxu0
        %v2446 = vadd.f32 0.0, %v2445
        %2447 = vdwg.mxu0
        %2448 = vset.pattern.permute.xlu0 6
        %2449 = vperm.xlu0 %2448, %v929
        %v2450 = vpop.permute.xlu0 %2449
        %2452 = vset.pattern.permute.xlu0 6
        %2453 = vperm.xlu0 %2452, %v930
        %v2454 = vpop.permute.xlu0 %2453
        %v2456 = vmul.f32 %v2440, %v2450
        %v2457 = vmul.f32 %v2442, %v2450
        %v2458 = vmul.f32 %v2444, %v2454
        %v2459 = vmul.f32 %v2446, %v2454
        %v2460 = vadd.f32 %v2208, %v2456
        %v2461 = vadd.f32 %v2209, %v2457
        %v2462 = vadd.f32 %v2210, %v2458
        %v2463 = vadd.f32 %v2211, %v2459
        %s2464 = scalar_lea.vmem [#allocation2], 1792
        %v2465 = vld [vmem:[%s2464] sm:$0xff]
        %v2466 = vld [vmem:[%s2464 + $0x8] sm:$0xff]
        %v2467 = vld [vmem:[%s2464 + $0x10] sm:$0xff]
        %v2468 = vld [vmem:[%s2464 + $0x18] sm:$0xff]
        %v2469 = vld [vmem:[%s2464 + $0x20] sm:$0xff]
        %v2470 = vld [vmem:[%s2464 + $0x28] sm:$0xff]
        %v2471 = vld [vmem:[%s2464 + $0x30] sm:$0xff]
        %v2472 = vld [vmem:[%s2464 + $0x38] sm:$0xff]
        %v2473 = vld [vmem:[%s2464 + $0x40] sm:$0xff]
        %v2474 = vld [vmem:[%s2464 + $0x48] sm:$0xff]
        %v2475 = vld [vmem:[%s2464 + $0x50] sm:$0xff]
        %v2476 = vld [vmem:[%s2464 + $0x58] sm:$0xff]
        %v2477 = vld [vmem:[%s2464 + $0x60] sm:$0xff]
        %v2478 = vld [vmem:[%s2464 + $0x68] sm:$0xff]
        %v2479 = vld [vmem:[%s2464 + $0x70] sm:$0xff]
        %v2480 = vld [vmem:[%s2464 + $0x78] sm:$0xff]
        %v2481 = vld [vmem:[%s2464 + $0x80] sm:$0xff]
        %v2482 = vld [vmem:[%s2464 + $0x88] sm:$0xff]
        %v2483 = vld [vmem:[%s2464 + $0x90] sm:$0xff]
        %v2484 = vld [vmem:[%s2464 + $0x98] sm:$0xff]
        %v2485 = vld [vmem:[%s2464 + $0xa0] sm:$0xff]
        %v2486 = vld [vmem:[%s2464 + $0xa8] sm:$0xff]
        %v2487 = vld [vmem:[%s2464 + $0xb0] sm:$0xff]
        %v2488 = vld [vmem:[%s2464 + $0xb8] sm:$0xff]
        %v2489 = vld [vmem:[%s2464 + $0xc0] sm:$0xff]
        %v2490 = vld [vmem:[%s2464 + $0xc8] sm:$0xff]
        %v2491 = vld [vmem:[%s2464 + $0xd0] sm:$0xff]
        %v2492 = vld [vmem:[%s2464 + $0xd8] sm:$0xff]
        %v2493 = vld [vmem:[%s2464 + $0xe0] sm:$0xff]
        %v2494 = vld [vmem:[%s2464 + $0xe8] sm:$0xff]
        %v2495 = vld [vmem:[%s2464 + $0xf0] sm:$0xff]
        %v2496 = vld [vmem:[%s2464 + $0xf8] sm:$0xff]
        %v2529 = vunpack.c.l.b16 %v2465
        %v2530 = vunpack.c.h.b16 %v2465
        %v2531 = vunpack.c.l.b16 %v2466
        %v2532 = vunpack.c.h.b16 %v2466
        %v2533 = vunpack.c.l.b16 %v2467
        %v2534 = vunpack.c.h.b16 %v2467
        %v2535 = vunpack.c.l.b16 %v2468
        %v2536 = vunpack.c.h.b16 %v2468
        %v2537 = vunpack.c.l.b16 %v2469
        %v2538 = vunpack.c.h.b16 %v2469
        %v2539 = vunpack.c.l.b16 %v2470
        %v2540 = vunpack.c.h.b16 %v2470
        %v2541 = vunpack.c.l.b16 %v2471
        %v2542 = vunpack.c.h.b16 %v2471
        %v2543 = vunpack.c.l.b16 %v2472
        %v2544 = vunpack.c.h.b16 %v2472
        %v2545 = vunpack.c.l.b16 %v2473
        %v2546 = vunpack.c.h.b16 %v2473
        %v2547 = vunpack.c.l.b16 %v2474
        %v2548 = vunpack.c.h.b16 %v2474
        %v2549 = vunpack.c.l.b16 %v2475
        %v2550 = vunpack.c.h.b16 %v2475
        %v2551 = vunpack.c.l.b16 %v2476
        %v2552 = vunpack.c.h.b16 %v2476
        %v2553 = vunpack.c.l.b16 %v2477
        %v2554 = vunpack.c.h.b16 %v2477
        %v2555 = vunpack.c.l.b16 %v2478
        %v2556 = vunpack.c.h.b16 %v2478
        %v2557 = vunpack.c.l.b16 %v2479
        %v2558 = vunpack.c.h.b16 %v2479
        %v2559 = vunpack.c.l.b16 %v2480
        %v2560 = vunpack.c.h.b16 %v2480
        %v2561 = vunpack.c.l.b16 %v2481
        %v2562 = vunpack.c.h.b16 %v2481
        %v2563 = vunpack.c.l.b16 %v2482
        %v2564 = vunpack.c.h.b16 %v2482
        %v2565 = vunpack.c.l.b16 %v2483
        %v2566 = vunpack.c.h.b16 %v2483
        %v2567 = vunpack.c.l.b16 %v2484
        %v2568 = vunpack.c.h.b16 %v2484
        %v2569 = vunpack.c.l.b16 %v2485
        %v2570 = vunpack.c.h.b16 %v2485
        %v2571 = vunpack.c.l.b16 %v2486
        %v2572 = vunpack.c.h.b16 %v2486
        %v2573 = vunpack.c.l.b16 %v2487
        %v2574 = vunpack.c.h.b16 %v2487
        %v2575 = vunpack.c.l.b16 %v2488
        %v2576 = vunpack.c.h.b16 %v2488
        %v2577 = vunpack.c.l.b16 %v2489
        %v2578 = vunpack.c.h.b16 %v2489
        %v2579 = vunpack.c.l.b16 %v2490
        %v2580 = vunpack.c.h.b16 %v2490
        %v2581 = vunpack.c.l.b16 %v2491
        %v2582 = vunpack.c.h.b16 %v2491
        %v2583 = vunpack.c.l.b16 %v2492
        %v2584 = vunpack.c.h.b16 %v2492
        %v2585 = vunpack.c.l.b16 %v2493
        %v2586 = vunpack.c.h.b16 %v2493
        %v2587 = vunpack.c.l.b16 %v2494
        %v2588 = vunpack.c.h.b16 %v2494
        %v2589 = vunpack.c.l.b16 %v2495
        %v2590 = vunpack.c.h.b16 %v2495
        %v2591 = vunpack.c.l.b16 %v2496
        %v2592 = vunpack.c.h.b16 %v2496
        %v2593 = vpack.c.b16 %v2531, %v2529
        %v2594 = vpack.c.b16 %v2532, %v2530
        %v2595 = vpack.c.b16 %v2535, %v2533
        %v2596 = vpack.c.b16 %v2536, %v2534
        %v2597 = vpack.c.b16 %v2539, %v2537
        %v2598 = vpack.c.b16 %v2540, %v2538
        %v2599 = vpack.c.b16 %v2543, %v2541
        %v2600 = vpack.c.b16 %v2544, %v2542
        %v2601 = vpack.c.b16 %v2547, %v2545
        %v2602 = vpack.c.b16 %v2548, %v2546
        %v2603 = vpack.c.b16 %v2551, %v2549
        %v2604 = vpack.c.b16 %v2552, %v2550
        %v2605 = vpack.c.b16 %v2555, %v2553
        %v2606 = vpack.c.b16 %v2556, %v2554
        %v2607 = vpack.c.b16 %v2559, %v2557
        %v2608 = vpack.c.b16 %v2560, %v2558
        %v2609 = vpack.c.b16 %v2563, %v2561
        %v2610 = vpack.c.b16 %v2564, %v2562
        %v2611 = vpack.c.b16 %v2567, %v2565
        %v2612 = vpack.c.b16 %v2568, %v2566
        %v2613 = vpack.c.b16 %v2571, %v2569
        %v2614 = vpack.c.b16 %v2572, %v2570
        %v2615 = vpack.c.b16 %v2575, %v2573
        %v2616 = vpack.c.b16 %v2576, %v2574
        %v2617 = vpack.c.b16 %v2579, %v2577
        %v2618 = vpack.c.b16 %v2580, %v2578
        %v2619 = vpack.c.b16 %v2583, %v2581
        %v2620 = vpack.c.b16 %v2584, %v2582
        %v2621 = vpack.c.b16 %v2587, %v2585
        %v2622 = vpack.c.b16 %v2588, %v2586
        %v2623 = vpack.c.b16 %v2591, %v2589
        %v2624 = vpack.c.b16 %v2592, %v2590
        %2657 = vmatprep.subr.bf16.mxu0 %v2608
        %2658 = vmatpush1.bf16.msra.mxu0 %v2607
        %2659 = vmatprep.subr.bf16.mxu0 %v2606
        %2660 = vmatpush1.bf16.msra.mxu0 %v2605
        %2661 = vmatprep.subr.bf16.mxu0 %v2604
        %2662 = vmatpush1.bf16.msra.mxu0 %v2603
        %2663 = vmatprep.subr.bf16.mxu0 %v2602
        %2664 = vmatpush1.bf16.msra.mxu0 %v2601
        %2665 = vmatprep.subr.bf16.mxu0 %v2600
        %2666 = vmatpush1.bf16.msra.mxu0 %v2599
        %2667 = vmatprep.subr.bf16.mxu0 %v2598
        %2668 = vmatpush1.bf16.msra.mxu0 %v2597
        %2669 = vmatprep.subr.bf16.mxu0 %v2596
        %2670 = vmatpush1.bf16.msra.mxu0 %v2595
        %2671 = vmatprep.subr.bf16.mxu0 %v2594
        %2672 = vmatpush1.bf16.msra.mxu0 %v2593
        %2673 = vmatprep.subr.bf16.mxu0 %v2624
        %2674 = vmatpush2.bf16.msra.mxu0 %v2623
        %2675 = vmatprep.subr.bf16.mxu0 %v2622
        %2676 = vmatpush2.bf16.msra.mxu0 %v2621
        %2677 = vmatprep.subr.bf16.mxu0 %v2620
        %2678 = vmatpush2.bf16.msra.mxu0 %v2619
        %2679 = vmatprep.subr.bf16.mxu0 %v2618
        %2680 = vmatpush2.bf16.msra.mxu0 %v2617
        %2681 = vmatprep.subr.bf16.mxu0 %v2616
        %2682 = vmatpush2.bf16.msra.mxu0 %v2615
        %2683 = vmatprep.subr.bf16.mxu0 %v2614
        %2684 = vmatpush2.bf16.msra.mxu0 %v2613
        %2685 = vmatprep.subr.bf16.mxu0 %v2612
        %2686 = vmatpush2.bf16.msra.mxu0 %v2611
        %2687 = vmatprep.subr.bf16.mxu0 %v2610
        %2688 = vmatpush2.bf16.msra.mxu0 %v2609
        %2689 = vmatprep.mubr.bf16.mxu0 %v928
        %2690 = vmatmul.mubr.bf16.gmra.mxu0 %v927
        %v2691 = vpop.f32.mrf.mxu0
        %v2692 = vadd.f32 0.0, %v2691
        %v2693 = vpop.f32.mrf.mxu0
        %v2694 = vadd.f32 0.0, %v2693
        %v2695 = vpop.f32.mrf.mxu0
        %v2696 = vadd.f32 0.0, %v2695
        %v2697 = vpop.f32.mrf.mxu0
        %v2698 = vadd.f32 0.0, %v2697
        %2699 = vdwg.mxu0
        %2700 = vset.pattern.permute.xlu0 7
        %2701 = vperm.xlu0 %2700, %v929
        %v2702 = vpop.permute.xlu0 %2701
        %2704 = vset.pattern.permute.xlu0 7
        %2705 = vperm.xlu0 %2704, %v930
        %v2706 = vpop.permute.xlu0 %2705
        %v2708 = vmul.f32 %v2692, %v2702
        %v2709 = vmul.f32 %v2694, %v2702
        %v2710 = vmul.f32 %v2696, %v2706
        %v2711 = vmul.f32 %v2698, %v2706
        %v2712 = vadd.f32 %v2460, %v2708
        %v2713 = vadd.f32 %v2461, %v2709
        %v2714 = vadd.f32 %v2462, %v2710
        %v2715 = vadd.f32 %v2463, %v2711
        %s2716 = scalar_lea.vmem [#allocation2], 2048
        %v2717 = vld [vmem:[%s2716] sm:$0xff]
        %v2718 = vld [vmem:[%s2716 + $0x8] sm:$0xff]
        %v2719 = vld [vmem:[%s2716 + $0x10] sm:$0xff]
        %v2720 = vld [vmem:[%s2716 + $0x18] sm:$0xff]
        %v2721 = vld [vmem:[%s2716 + $0x20] sm:$0xff]
        %v2722 = vld [vmem:[%s2716 + $0x28] sm:$0xff]
        %v2723 = vld [vmem:[%s2716 + $0x30] sm:$0xff]
        %v2724 = vld [vmem:[%s2716 + $0x38] sm:$0xff]
        %v2725 = vld [vmem:[%s2716 + $0x40] sm:$0xff]
        %v2726 = vld [vmem:[%s2716 + $0x48] sm:$0xff]
        %v2727 = vld [vmem:[%s2716 + $0x50] sm:$0xff]
        %v2728 = vld [vmem:[%s2716 + $0x58] sm:$0xff]
        %v2729 = vld [vmem:[%s2716 + $0x60] sm:$0xff]
        %v2730 = vld [vmem:[%s2716 + $0x68] sm:$0xff]
        %v2731 = vld [vmem:[%s2716 + $0x70] sm:$0xff]
        %v2732 = vld [vmem:[%s2716 + $0x78] sm:$0xff]
        %v2733 = vld [vmem:[%s2716 + $0x80] sm:$0xff]
        %v2734 = vld [vmem:[%s2716 + $0x88] sm:$0xff]
        %v2735 = vld [vmem:[%s2716 + $0x90] sm:$0xff]
        %v2736 = vld [vmem:[%s2716 + $0x98] sm:$0xff]
        %v2737 = vld [vmem:[%s2716 + $0xa0] sm:$0xff]
        %v2738 = vld [vmem:[%s2716 + $0xa8] sm:$0xff]
        %v2739 = vld [vmem:[%s2716 + $0xb0] sm:$0xff]
        %v2740 = vld [vmem:[%s2716 + $0xb8] sm:$0xff]
        %v2741 = vld [vmem:[%s2716 + $0xc0] sm:$0xff]
        %v2742 = vld [vmem:[%s2716 + $0xc8] sm:$0xff]
        %v2743 = vld [vmem:[%s2716 + $0xd0] sm:$0xff]
        %v2744 = vld [vmem:[%s2716 + $0xd8] sm:$0xff]
        %v2745 = vld [vmem:[%s2716 + $0xe0] sm:$0xff]
        %v2746 = vld [vmem:[%s2716 + $0xe8] sm:$0xff]
        %v2747 = vld [vmem:[%s2716 + $0xf0] sm:$0xff]
        %v2748 = vld [vmem:[%s2716 + $0xf8] sm:$0xff]
        %v2781 = vunpack.c.l.b16 %v2717
        %v2782 = vunpack.c.h.b16 %v2717
        %v2783 = vunpack.c.l.b16 %v2718
        %v2784 = vunpack.c.h.b16 %v2718
        %v2785 = vunpack.c.l.b16 %v2719
        %v2786 = vunpack.c.h.b16 %v2719
        %v2787 = vunpack.c.l.b16 %v2720
        %v2788 = vunpack.c.h.b16 %v2720
        %v2789 = vunpack.c.l.b16 %v2721
        %v2790 = vunpack.c.h.b16 %v2721
        %v2791 = vunpack.c.l.b16 %v2722
        %v2792 = vunpack.c.h.b16 %v2722
        %v2793 = vunpack.c.l.b16 %v2723
        %v2794 = vunpack.c.h.b16 %v2723
        %v2795 = vunpack.c.l.b16 %v2724
        %v2796 = vunpack.c.h.b16 %v2724
        %v2797 = vunpack.c.l.b16 %v2725
        %v2798 = vunpack.c.h.b16 %v2725
        %v2799 = vunpack.c.l.b16 %v2726
        %v2800 = vunpack.c.h.b16 %v2726
        %v2801 = vunpack.c.l.b16 %v2727
        %v2802 = vunpack.c.h.b16 %v2727
        %v2803 = vunpack.c.l.b16 %v2728
        %v2804 = vunpack.c.h.b16 %v2728
        %v2805 = vunpack.c.l.b16 %v2729
        %v2806 = vunpack.c.h.b16 %v2729
        %v2807 = vunpack.c.l.b16 %v2730
        %v2808 = vunpack.c.h.b16 %v2730
        %v2809 = vunpack.c.l.b16 %v2731
        %v2810 = vunpack.c.h.b16 %v2731
        %v2811 = vunpack.c.l.b16 %v2732
        %v2812 = vunpack.c.h.b16 %v2732
        %v2813 = vunpack.c.l.b16 %v2733
        %v2814 = vunpack.c.h.b16 %v2733
        %v2815 = vunpack.c.l.b16 %v2734
        %v2816 = vunpack.c.h.b16 %v2734
        %v2817 = vunpack.c.l.b16 %v2735
        %v2818 = vunpack.c.h.b16 %v2735
        %v2819 = vunpack.c.l.b16 %v2736
        %v2820 = vunpack.c.h.b16 %v2736
        %v2821 = vunpack.c.l.b16 %v2737
        %v2822 = vunpack.c.h.b16 %v2737
        %v2823 = vunpack.c.l.b16 %v2738
        %v2824 = vunpack.c.h.b16 %v2738
        %v2825 = vunpack.c.l.b16 %v2739
        %v2826 = vunpack.c.h.b16 %v2739
        %v2827 = vunpack.c.l.b16 %v2740
        %v2828 = vunpack.c.h.b16 %v2740
        %v2829 = vunpack.c.l.b16 %v2741
        %v2830 = vunpack.c.h.b16 %v2741
        %v2831 = vunpack.c.l.b16 %v2742
        %v2832 = vunpack.c.h.b16 %v2742
        %v2833 = vunpack.c.l.b16 %v2743
        %v2834 = vunpack.c.h.b16 %v2743
        %v2835 = vunpack.c.l.b16 %v2744
        %v2836 = vunpack.c.h.b16 %v2744
        %v2837 = vunpack.c.l.b16 %v2745
        %v2838 = vunpack.c.h.b16 %v2745
        %v2839 = vunpack.c.l.b16 %v2746
        %v2840 = vunpack.c.h.b16 %v2746
        %v2841 = vunpack.c.l.b16 %v2747
        %v2842 = vunpack.c.h.b16 %v2747
        %v2843 = vunpack.c.l.b16 %v2748
        %v2844 = vunpack.c.h.b16 %v2748
        %v2845 = vpack.c.b16 %v2783, %v2781
        %v2846 = vpack.c.b16 %v2784, %v2782
        %v2847 = vpack.c.b16 %v2787, %v2785
        %v2848 = vpack.c.b16 %v2788, %v2786
        %v2849 = vpack.c.b16 %v2791, %v2789
        %v2850 = vpack.c.b16 %v2792, %v2790
        %v2851 = vpack.c.b16 %v2795, %v2793
        %v2852 = vpack.c.b16 %v2796, %v2794
        %v2853 = vpack.c.b16 %v2799, %v2797
        %v2854 = vpack.c.b16 %v2800, %v2798
        %v2855 = vpack.c.b16 %v2803, %v2801
        %v2856 = vpack.c.b16 %v2804, %v2802
        %v2857 = vpack.c.b16 %v2807, %v2805
        %v2858 = vpack.c.b16 %v2808, %v2806
        %v2859 = vpack.c.b16 %v2811, %v2809
        %v2860 = vpack.c.b16 %v2812, %v2810
        %v2861 = vpack.c.b16 %v2815, %v2813
        %v2862 = vpack.c.b16 %v2816, %v2814
        %v2863 = vpack.c.b16 %v2819, %v2817
        %v2864 = vpack.c.b16 %v2820, %v2818
        %v2865 = vpack.c.b16 %v2823, %v2821
        %v2866 = vpack.c.b16 %v2824, %v2822
        %v2867 = vpack.c.b16 %v2827, %v2825
        %v2868 = vpack.c.b16 %v2828, %v2826
        %v2869 = vpack.c.b16 %v2831, %v2829
        %v2870 = vpack.c.b16 %v2832, %v2830
        %v2871 = vpack.c.b16 %v2835, %v2833
        %v2872 = vpack.c.b16 %v2836, %v2834
        %v2873 = vpack.c.b16 %v2839, %v2837
        %v2874 = vpack.c.b16 %v2840, %v2838
        %v2875 = vpack.c.b16 %v2843, %v2841
        %v2876 = vpack.c.b16 %v2844, %v2842
        %2909 = vmatprep.subr.bf16.mxu0 %v2860
        %2910 = vmatpush1.bf16.msra.mxu0 %v2859
        %2911 = vmatprep.subr.bf16.mxu0 %v2858
        %2912 = vmatpush1.bf16.msra.mxu0 %v2857
        %2913 = vmatprep.subr.bf16.mxu0 %v2856
        %2914 = vmatpush1.bf16.msra.mxu0 %v2855
        %2915 = vmatprep.subr.bf16.mxu0 %v2854
        %2916 = vmatpush1.bf16.msra.mxu0 %v2853
        %2917 = vmatprep.subr.bf16.mxu0 %v2852
        %2918 = vmatpush1.bf16.msra.mxu0 %v2851
        %2919 = vmatprep.subr.bf16.mxu0 %v2850
        %2920 = vmatpush1.bf16.msra.mxu0 %v2849
        %2921 = vmatprep.subr.bf16.mxu0 %v2848
        %2922 = vmatpush1.bf16.msra.mxu0 %v2847
        %2923 = vmatprep.subr.bf16.mxu0 %v2846
        %2924 = vmatpush1.bf16.msra.mxu0 %v2845
        %2925 = vmatprep.subr.bf16.mxu0 %v2876
        %2926 = vmatpush2.bf16.msra.mxu0 %v2875
        %2927 = vmatprep.subr.bf16.mxu0 %v2874
        %2928 = vmatpush2.bf16.msra.mxu0 %v2873
        %2929 = vmatprep.subr.bf16.mxu0 %v2872
        %2930 = vmatpush2.bf16.msra.mxu0 %v2871
        %2931 = vmatprep.subr.bf16.mxu0 %v2870
        %2932 = vmatpush2.bf16.msra.mxu0 %v2869
        %2933 = vmatprep.subr.bf16.mxu0 %v2868
        %2934 = vmatpush2.bf16.msra.mxu0 %v2867
        %2935 = vmatprep.subr.bf16.mxu0 %v2866
        %2936 = vmatpush2.bf16.msra.mxu0 %v2865
        %2937 = vmatprep.subr.bf16.mxu0 %v2864
        %2938 = vmatpush2.bf16.msra.mxu0 %v2863
        %2939 = vmatprep.subr.bf16.mxu0 %v2862
        %2940 = vmatpush2.bf16.msra.mxu0 %v2861
        %2941 = vmatprep.mubr.bf16.mxu0 %v928
        %2942 = vmatmul.mubr.bf16.gmra.mxu0 %v927
        %v2943 = vpop.f32.mrf.mxu0
        %v2944 = vadd.f32 0.0, %v2943
        %v2945 = vpop.f32.mrf.mxu0
        %v2946 = vadd.f32 0.0, %v2945
        %v2947 = vpop.f32.mrf.mxu0
        %v2948 = vadd.f32 0.0, %v2947
        %v2949 = vpop.f32.mrf.mxu0
        %v2950 = vadd.f32 0.0, %v2949
        %2951 = vdwg.mxu0
        %2952 = vset.pattern.permute.xlu0 8
        %2953 = vperm.xlu0 %2952, %v929
        %v2954 = vpop.permute.xlu0 %2953
        %2956 = vset.pattern.permute.xlu0 8
        %2957 = vperm.xlu0 %2956, %v930
        %v2958 = vpop.permute.xlu0 %2957
        %v2960 = vmul.f32 %v2944, %v2954
        %v2961 = vmul.f32 %v2946, %v2954
        %v2962 = vmul.f32 %v2948, %v2958
        %v2963 = vmul.f32 %v2950, %v2958
        %v2964 = vadd.f32 %v2712, %v2960
        %v2965 = vadd.f32 %v2713, %v2961
        %v2966 = vadd.f32 %v2714, %v2962
        %v2967 = vadd.f32 %v2715, %v2963
        %v2968 = vld [vmem:[#allocation10] sm:$0xff]
        %v2969 = vld [vmem:[#allocation10 + $0x8] sm:$0xff]
        %2971 = vset.pattern.permute.xlu0 0
        %2972 = vperm.xlu0 %2971, %v2968
        %v2973 = vpop.permute.xlu0 %2972
        %2976 = vset.pattern.permute.xlu0 0
        %2977 = vperm.xlu0 %2976, %v2969
        %v2978 = vpop.permute.xlu0 %2977
        %v2980 = vmul.f32 %v2964, %v2973
        %v2981 = vmul.f32 %v2965, %v2973
        %v2982 = vmul.f32 %v2966, %v2978
        %v2983 = vmul.f32 %v2967, %v2978
        %v2984 = vld [vmem:[#allocation12] sm:$0xff]
        %v2985 = vld [vmem:[#allocation12 + $0x8] sm:$0xff]
        %2987 = vset.pattern.permute.xlu0 0
        %2988 = vperm.xlu0 %2987, %v2984
        %v2989 = vpop.permute.xlu0 %2988
        %2992 = vset.pattern.permute.xlu0 0
        %2993 = vperm.xlu0 %2992, %v2985
        %v2994 = vpop.permute.xlu0 %2993
        %v2996 = vadd.f32 %v2980, %v2989
        %v2997 = vadd.f32 %v2981, %v2989
        %v2998 = vadd.f32 %v2982, %v2994
        %v2999 = vadd.f32 %v2983, %v2994
        %v3000 = vmax.f32 %v2996, 0.0
        %v3001 = vmax.f32 %v2997, 0.0
        %v3002 = vmax.f32 %v2998, 0.0
        %v3003 = vmax.f32 %v2999, 0.0
        %v3004 = vld [vmem:[#allocation13] sm:$0xf]
        %v3005 = vld [vmem:[#allocation13 + $0x4] sm:$0xf]
        %v3006 = vpack.c.bf16 %v3002, %v3000
        %v3007 = vpack.c.bf16 %v3003, %v3001
        %v3008 = vld [vmem:[#allocation15] sm:$0xff]
        %v3009 = vld [vmem:[#allocation15 + $0x8] sm:$0xff]
        %3011 = vset.pattern.permute.xlu0 0
        %3012 = vperm.xlu0 %3011, %v3008
        %v3013 = vpop.permute.xlu0 %3012
        %3016 = vset.pattern.permute.xlu0 0
        %3017 = vperm.xlu0 %3016, %v3009
        %v3018 = vpop.permute.xlu0 %3017
        %v3022 = vunpack.c.l.b16 %v3004
        %v3023 = vunpack.c.l.b16 %v3005
        %v3024 = vpack.c.b16 %v3023, %v3022
        %vm3025 = vcmask 130048
        %v3027 = vsel %vm3025, %v3024, 0
        %3029 = vmatprep.subr.bf16.mxu0 0
        %3030 = vmatpush1.bf16.msra.mxu0 0
        %3031 = vmatprep.subr.bf16.mxu0 0
        %3032 = vmatpush1.bf16.msra.mxu0 0
        %3033 = vmatprep.subr.bf16.mxu0 0
        %3034 = vmatpush1.bf16.msra.mxu0 0
        %3035 = vmatprep.subr.bf16.mxu0 0
        %3036 = vmatpush1.bf16.msra.mxu0 0
        %3037 = vmatprep.subr.bf16.mxu0 0
        %3038 = vmatpush1.bf16.msra.mxu0 0
        %3039 = vmatprep.subr.bf16.mxu0 0
        %3040 = vmatpush1.bf16.msra.mxu0 0
        %3041 = vmatprep.subr.bf16.mxu0 0
        %3042 = vmatpush1.bf16.msra.mxu0 0
        %3043 = vmatprep.subr.bf16.mxu0 %v3007
        %3044 = vmatpush1.bf16.msra.mxu0 %v3006
        %3045 = vmatprep.subr.bf16.mxu0 0
        %3046 = vmatpush2.bf16.msra.mxu0 0
        %3047 = vmatprep.subr.bf16.mxu0 0
        %3048 = vmatpush2.bf16.msra.mxu0 0
        %3049 = vmatprep.subr.bf16.mxu0 0
        %3050 = vmatpush2.bf16.msra.mxu0 0
        %3051 = vmatprep.subr.bf16.mxu0 0
        %3052 = vmatpush2.bf16.msra.mxu0 0
        %3053 = vmatprep.subr.bf16.mxu0 0
        %3054 = vmatpush2.bf16.msra.mxu0 0
        %3055 = vmatprep.subr.bf16.mxu0 0
        %3056 = vmatpush2.bf16.msra.mxu0 0
        %3057 = vmatprep.subr.bf16.mxu0 0
        %3058 = vmatpush2.bf16.msra.mxu0 0
        %3059 = vmatprep.subr.bf16.mxu0 0
        %3060 = vmatpush2.bf16.msra.mxu0 0
        %3061 = vmatprep.mubr.bf16.mxu0 0
        %3062 = vmatmul.mubr.bf16.gmra.mxu0 %v3027
        %v3063 = vpop.f32.mrf.mxu0
        %v3064 = vadd.f32 %v3013, %v3063
        %v3065 = vpop.f32.mrf.mxu0
        %v3066 = vadd.f32 %v3013, %v3065
        %v3067 = vpop.f32.mrf.mxu0
        %v3068 = vadd.f32 %v3018, %v3067
        %v3069 = vpop.f32.mrf.mxu0
        %v3070 = vadd.f32 %v3018, %v3069
        %3071 = vdwg.mxu0
        %v3072 = vadd.f32 %v923, %v3064
        %v3073 = vadd.f32 %v924, %v3066
        %v3074 = vadd.f32 %v925, %v3068
        %v3075 = vadd.f32 %v926, %v3070
        %v3076 = vld [vmem:[#allocation16] sm:$0xf]
        %v3077 = vld [vmem:[#allocation16 + $0x4] sm:$0xf]
        %v3078 = vld [vmem:[#allocation18] sm:$0xf]
        %v3079 = vld [vmem:[#allocation18 + $0x4] sm:$0xf]
        %v3080 = vpack.c.bf16 %v3074, %v3072
        %v3081 = vpack.c.bf16 %v3075, %v3073
        %v3084 = vunpack.c.l.b16 %v3078
        %v3085 = vunpack.c.l.b16 %v3079
        %v3086 = vpack.c.b16 %v3085, %v3084
        %v3088 = vsel %vm3025, %v3086, 0
        %3090 = vmatprep.subr.bf16.mxu0 0
        %3091 = vmatpush1.bf16.msra.mxu0 0
        %3092 = vmatprep.subr.bf16.mxu0 0
        %3093 = vmatpush1.bf16.msra.mxu0 0
        %3094 = vmatprep.subr.bf16.mxu0 0
        %3095 = vmatpush1.bf16.msra.mxu0 0
        %3096 = vmatprep.subr.bf16.mxu0 0
        %3097 = vmatpush1.bf16.msra.mxu0 0
        %3098 = vmatprep.subr.bf16.mxu0 0
        %3099 = vmatpush1.bf16.msra.mxu0 0
        %3100 = vmatprep.subr.bf16.mxu0 0
        %3101 = vmatpush1.bf16.msra.mxu0 0
        %3102 = vmatprep.subr.bf16.mxu0 0
        %3103 = vmatpush1.bf16.msra.mxu0 0
        %3104 = vmatprep.subr.bf16.mxu0 %v3081
        %3105 = vmatpush1.bf16.msra.mxu0 %v3080
        %3106 = vmatprep.subr.bf16.mxu0 0
        %3107 = vmatpush2.bf16.msra.mxu0 0
        %3108 = vmatprep.subr.bf16.mxu0 0
        %3109 = vmatpush2.bf16.msra.mxu0 0
        %3110 = vmatprep.subr.bf16.mxu0 0
        %3111 = vmatpush2.bf16.msra.mxu0 0
        %3112 = vmatprep.subr.bf16.mxu0 0
        %3113 = vmatpush2.bf16.msra.mxu0 0
        %3114 = vmatprep.subr.bf16.mxu0 0
        %3115 = vmatpush2.bf16.msra.mxu0 0
        %3116 = vmatprep.subr.bf16.mxu0 0
        %3117 = vmatpush2.bf16.msra.mxu0 0
        %3118 = vmatprep.subr.bf16.mxu0 0
        %3119 = vmatpush2.bf16.msra.mxu0 0
        %3120 = vmatprep.subr.bf16.mxu0 0
        %3121 = vmatpush2.bf16.msra.mxu0 0
        %3122 = vmatprep.mubr.bf16.mxu0 0
        %3123 = vmatmul.mubr.bf16.gmra.mxu0 %v3088
        %v3124 = vpop.f32.mrf.mxu0
        %v3125 = vadd.f32 0.0, %v3124
        %v3126 = vpop.f32.mrf.mxu0
        %v3127 = vadd.f32 0.0, %v3126
        %v3128 = vpop.f32.mrf.mxu0
        %v3129 = vadd.f32 0.0, %v3128
        %v3130 = vpop.f32.mrf.mxu0
        %v3131 = vadd.f32 0.0, %v3130
        %3132 = vdwg.mxu0
        %v3135 = vunpack.c.l.b16 %v3076
        %v3136 = vunpack.c.l.b16 %v3077
        %v3137 = vpack.c.b16 %v3136, %v3135
        %v3139 = vsel %vm837, %v3137, 0
        %3141 = vmatprep.subr.bf16.mxu0 0
        %3142 = vmatpush1.bf16.msra.mxu0 0
        %3143 = vmatprep.subr.bf16.mxu0 0
        %3144 = vmatpush1.bf16.msra.mxu0 0
        %3145 = vmatprep.subr.bf16.mxu0 0
        %3146 = vmatpush1.bf16.msra.mxu0 0
        %3147 = vmatprep.subr.bf16.mxu0 0
        %3148 = vmatpush1.bf16.msra.mxu0 0
        %3149 = vmatprep.subr.bf16.mxu0 0
        %3150 = vmatpush1.bf16.msra.mxu0 0
        %3151 = vmatprep.subr.bf16.mxu0 0
        %3152 = vmatpush1.bf16.msra.mxu0 0
        %3153 = vmatprep.subr.bf16.mxu0 0
        %3154 = vmatpush1.bf16.msra.mxu0 0
        %3155 = vmatprep.subr.bf16.mxu0 %v846
        %3156 = vmatpush1.bf16.msra.mxu0 %v843
        %3157 = vmatprep.subr.bf16.mxu0 0
        %3158 = vmatpush2.bf16.msra.mxu0 0
        %3159 = vmatprep.subr.bf16.mxu0 0
        %3160 = vmatpush2.bf16.msra.mxu0 0
        %3161 = vmatprep.subr.bf16.mxu0 0
        %3162 = vmatpush2.bf16.msra.mxu0 0
        %3163 = vmatprep.subr.bf16.mxu0 0
        %3164 = vmatpush2.bf16.msra.mxu0 0
        %3165 = vmatprep.subr.bf16.mxu0 0
        %3166 = vmatpush2.bf16.msra.mxu0 0
        %3167 = vmatprep.subr.bf16.mxu0 0
        %3168 = vmatpush2.bf16.msra.mxu0 0
        %3169 = vmatprep.subr.bf16.mxu0 0
        %3170 = vmatpush2.bf16.msra.mxu0 0
        %3171 = vmatprep.subr.bf16.mxu0 0
        %3172 = vmatpush2.bf16.msra.mxu0 0
        %3173 = vmatprep.mubr.bf16.mxu0 0
        %3174 = vmatmul.mubr.bf16.gmra.mxu0 %v3139
        %v3175 = vpop.f32.mrf.mxu0
        %v3176 = vadd.f32 %v3125, %v3175
        %v3177 = vpop.f32.mrf.mxu0
        %v3178 = vadd.f32 %v3127, %v3177
        %v3179 = vpop.f32.mrf.mxu0
        %v3180 = vadd.f32 %v3129, %v3179
        %v3181 = vpop.f32.mrf.mxu0
        %v3182 = vadd.f32 %v3131, %v3181
        %3183 = vdwg.mxu0
        %v3184 = vld [vmem:[#allocation19] sm:$0xff]
        %v3185 = vld [vmem:[#allocation19 + $0x8] sm:$0xff]
        %3187 = vset.pattern.permute.xlu0 0
        %3188 = vperm.xlu0 %3187, %v3184
        %v3189 = vpop.permute.xlu0 %3188
        %3192 = vset.pattern.permute.xlu0 0
        %3193 = vperm.xlu0 %3192, %v3185
        %v3194 = vpop.permute.xlu0 %3193
        %v3196 = vmul.f32 %v3176, %v3189
        %v3197 = vmul.f32 %v3178, %v3189
        %v3198 = vmul.f32 %v3180, %v3194
        %v3199 = vmul.f32 %v3182, %v3194
        %v3200 = vld [vmem:[#allocation21] sm:$0xff]
        %v3201 = vld [vmem:[#allocation21 + $0x8] sm:$0xff]
        %3203 = vset.pattern.permute.xlu0 0
        %3204 = vperm.xlu0 %3203, %v3200
        %v3205 = vpop.permute.xlu0 %3204
        %3208 = vset.pattern.permute.xlu0 0
        %3209 = vperm.xlu0 %3208, %v3201
        %v3210 = vpop.permute.xlu0 %3209
        %v3212 = vadd.f32 %v3196, %v3205
        %v3213 = vadd.f32 %v3197, %v3205
        %v3214 = vadd.f32 %v3198, %v3210
        %v3215 = vadd.f32 %v3199, %v3210
        %v3216 = vmax.f32 %v3212, 0.0
        %v3217 = vmax.f32 %v3213, 0.0
        %v3218 = vmax.f32 %v3214, 0.0
        %v3219 = vmax.f32 %v3215, 0.0
        %v3220 = vpack.c.bf16 %v3218, %v3216
        %v3221 = vpack.c.bf16 %v3219, %v3217
        %3222 = vmatprep.subr.bf16.mxu0 %v1074
        %3223 = vmatpush1.bf16.msra.mxu0 %v1073
        %3224 = vmatprep.subr.bf16.mxu0 %v1072
        %3225 = vmatpush1.bf16.msra.mxu0 %v1071
        %3226 = vmatprep.subr.bf16.mxu0 %v1070
        %3227 = vmatpush1.bf16.msra.mxu0 %v1069
        %3228 = vmatprep.subr.bf16.mxu0 %v1068
        %3229 = vmatpush1.bf16.msra.mxu0 %v1067
        %3230 = vmatprep.subr.bf16.mxu0 %v1066
        %3231 = vmatpush1.bf16.msra.mxu0 %v1065
        %3232 = vmatprep.subr.bf16.mxu0 %v1064
        %3233 = vmatpush1.bf16.msra.mxu0 %v1063
        %3234 = vmatprep.subr.bf16.mxu0 %v1062
        %3235 = vmatpush1.bf16.msra.mxu0 %v1061
        %3236 = vmatprep.subr.bf16.mxu0 %v1060
        %3237 = vmatpush1.bf16.msra.mxu0 %v1059
        %3238 = vmatprep.subr.bf16.mxu0 %v1090
        %3239 = vmatpush2.bf16.msra.mxu0 %v1089
        %3240 = vmatprep.subr.bf16.mxu0 %v1088
        %3241 = vmatpush2.bf16.msra.mxu0 %v1087
        %3242 = vmatprep.subr.bf16.mxu0 %v1086
        %3243 = vmatpush2.bf16.msra.mxu0 %v1085
        %3244 = vmatprep.subr.bf16.mxu0 %v1084
        %3245 = vmatpush2.bf16.msra.mxu0 %v1083
        %3246 = vmatprep.subr.bf16.mxu0 %v1082
        %3247 = vmatpush2.bf16.msra.mxu0 %v1081
        %3248 = vmatprep.subr.bf16.mxu0 %v1080
        %3249 = vmatpush2.bf16.msra.mxu0 %v1079
        %3250 = vmatprep.subr.bf16.mxu0 %v1078
        %3251 = vmatpush2.bf16.msra.mxu0 %v1077
        %3252 = vmatprep.subr.bf16.mxu0 %v1076
        %3253 = vmatpush2.bf16.msra.mxu0 %v1075
        %3254 = vmatprep.mubr.bf16.mxu0 %v3221
        %3255 = vmatmul.mubr.bf16.gmra.mxu0 %v3220
        %v3256 = vpop.f32.mrf.mxu0
        %v3257 = vadd.f32 0.0, %v3256
        %v3258 = vpop.f32.mrf.mxu0
        %v3259 = vadd.f32 0.0, %v3258
        %v3260 = vpop.f32.mrf.mxu0
        %v3261 = vadd.f32 0.0, %v3260
        %v3262 = vpop.f32.mrf.mxu0
        %v3263 = vadd.f32 0.0, %v3262
        %3264 = vdwg.mxu0
        %v3265 = vpack.c.bf16 %v3261, %v3257
        %v3266 = vpack.c.bf16 %v3263, %v3259
        %3267 = vmatprep.subr.bf16.mxu0 %v1328
        %3268 = vmatpush1.bf16.msra.mxu0 %v1327
        %3269 = vmatprep.subr.bf16.mxu0 %v1326
        %3270 = vmatpush1.bf16.msra.mxu0 %v1325
        %3271 = vmatprep.subr.bf16.mxu0 %v1324
        %3272 = vmatpush1.bf16.msra.mxu0 %v1323
        %3273 = vmatprep.subr.bf16.mxu0 %v1322
        %3274 = vmatpush1.bf16.msra.mxu0 %v1321
        %3275 = vmatprep.subr.bf16.mxu0 %v1320
        %3276 = vmatpush1.bf16.msra.mxu0 %v1319
        %3277 = vmatprep.subr.bf16.mxu0 %v1318
        %3278 = vmatpush1.bf16.msra.mxu0 %v1317
        %3279 = vmatprep.subr.bf16.mxu0 %v1316
        %3280 = vmatpush1.bf16.msra.mxu0 %v1315
        %3281 = vmatprep.subr.bf16.mxu0 %v1314
        %3282 = vmatpush1.bf16.msra.mxu0 %v1313
        %3283 = vmatprep.subr.bf16.mxu0 %v1344
        %3284 = vmatpush2.bf16.msra.mxu0 %v1343
        %3285 = vmatprep.subr.bf16.mxu0 %v1342
        %3286 = vmatpush2.bf16.msra.mxu0 %v1341
        %3287 = vmatprep.subr.bf16.mxu0 %v1340
        %3288 = vmatpush2.bf16.msra.mxu0 %v1339
        %3289 = vmatprep.subr.bf16.mxu0 %v1338
        %3290 = vmatpush2.bf16.msra.mxu0 %v1337
        %3291 = vmatprep.subr.bf16.mxu0 %v1336
        %3292 = vmatpush2.bf16.msra.mxu0 %v1335
        %3293 = vmatprep.subr.bf16.mxu0 %v1334
        %3294 = vmatpush2.bf16.msra.mxu0 %v1333
        %3295 = vmatprep.subr.bf16.mxu0 %v1332
        %3296 = vmatpush2.bf16.msra.mxu0 %v1331
        %3297 = vmatprep.subr.bf16.mxu0 %v1330
        %3298 = vmatpush2.bf16.msra.mxu0 %v1329
        %3299 = vmatprep.mubr.bf16.mxu0 %v3221
        %3300 = vmatmul.mubr.bf16.gmra.mxu0 %v3220
        %v3301 = vpop.f32.mrf.mxu0
        %v3302 = vadd.f32 0.0, %v3301
        %v3303 = vpop.f32.mrf.mxu0
        %v3304 = vadd.f32 0.0, %v3303
        %v3305 = vpop.f32.mrf.mxu0
        %v3306 = vadd.f32 0.0, %v3305
        %v3307 = vpop.f32.mrf.mxu0
        %v3308 = vadd.f32 0.0, %v3307
        %3309 = vdwg.mxu0
        %v3310 = vpack.c.bf16 %v3306, %v3302
        %v3311 = vpack.c.bf16 %v3308, %v3304
        %3312 = vmatprep.subr.bf16.mxu0 %v1580
        %3313 = vmatpush1.bf16.msra.mxu0 %v1579
        %3314 = vmatprep.subr.bf16.mxu0 %v1578
        %3315 = vmatpush1.bf16.msra.mxu0 %v1577
        %3316 = vmatprep.subr.bf16.mxu0 %v1576
        %3317 = vmatpush1.bf16.msra.mxu0 %v1575
        %3318 = vmatprep.subr.bf16.mxu0 %v1574
        %3319 = vmatpush1.bf16.msra.mxu0 %v1573
        %3320 = vmatprep.subr.bf16.mxu0 %v1572
        %3321 = vmatpush1.bf16.msra.mxu0 %v1571
        %3322 = vmatprep.subr.bf16.mxu0 %v1570
        %3323 = vmatpush1.bf16.msra.mxu0 %v1569
        %3324 = vmatprep.subr.bf16.mxu0 %v1568
        %3325 = vmatpush1.bf16.msra.mxu0 %v1567
        %3326 = vmatprep.subr.bf16.mxu0 %v1566
        %3327 = vmatpush1.bf16.msra.mxu0 %v1565
        %3328 = vmatprep.subr.bf16.mxu0 %v1596
        %3329 = vmatpush2.bf16.msra.mxu0 %v1595
        %3330 = vmatprep.subr.bf16.mxu0 %v1594
        %3331 = vmatpush2.bf16.msra.mxu0 %v1593
        %3332 = vmatprep.subr.bf16.mxu0 %v1592
        %3333 = vmatpush2.bf16.msra.mxu0 %v1591
        %3334 = vmatprep.subr.bf16.mxu0 %v1590
        %3335 = vmatpush2.bf16.msra.mxu0 %v1589
        %3336 = vmatprep.subr.bf16.mxu0 %v1588
        %3337 = vmatpush2.bf16.msra.mxu0 %v1587
        %3338 = vmatprep.subr.bf16.mxu0 %v1586
        %3339 = vmatpush2.bf16.msra.mxu0 %v1585
        %3340 = vmatprep.subr.bf16.mxu0 %v1584
        %3341 = vmatpush2.bf16.msra.mxu0 %v1583
        %3342 = vmatprep.subr.bf16.mxu0 %v1582
        %3343 = vmatpush2.bf16.msra.mxu0 %v1581
        %3344 = vmatprep.mubr.bf16.mxu0 %v3221
        %3345 = vmatmul.mubr.bf16.gmra.mxu0 %v3220
        %v3346 = vpop.f32.mrf.mxu0
        %v3347 = vadd.f32 0.0, %v3346
        %v3348 = vpop.f32.mrf.mxu0
        %v3349 = vadd.f32 0.0, %v3348
        %v3350 = vpop.f32.mrf.mxu0
        %v3351 = vadd.f32 0.0, %v3350
        %v3352 = vpop.f32.mrf.mxu0
        %v3353 = vadd.f32 0.0, %v3352
        %3354 = vdwg.mxu0
        %v3355 = vpack.c.bf16 %v3351, %v3347
        %v3356 = vpack.c.bf16 %v3353, %v3349
        %3357 = vmatprep.subr.bf16.mxu0 %v1832
        %3358 = vmatpush1.bf16.msra.mxu0 %v1831
        %3359 = vmatprep.subr.bf16.mxu0 %v1830
        %3360 = vmatpush1.bf16.msra.mxu0 %v1829
        %3361 = vmatprep.subr.bf16.mxu0 %v1828
        %3362 = vmatpush1.bf16.msra.mxu0 %v1827
        %3363 = vmatprep.subr.bf16.mxu0 %v1826
        %3364 = vmatpush1.bf16.msra.mxu0 %v1825
        %3365 = vmatprep.subr.bf16.mxu0 %v1824
        %3366 = vmatpush1.bf16.msra.mxu0 %v1823
        %3367 = vmatprep.subr.bf16.mxu0 %v1822
        %3368 = vmatpush1.bf16.msra.mxu0 %v1821
        %3369 = vmatprep.subr.bf16.mxu0 %v1820
        %3370 = vmatpush1.bf16.msra.mxu0 %v1819
        %3371 = vmatprep.subr.bf16.mxu0 %v1818
        %3372 = vmatpush1.bf16.msra.mxu0 %v1817
        %3373 = vmatprep.subr.bf16.mxu0 %v1848
        %3374 = vmatpush2.bf16.msra.mxu0 %v1847
        %3375 = vmatprep.subr.bf16.mxu0 %v1846
        %3376 = vmatpush2.bf16.msra.mxu0 %v1845
        %3377 = vmatprep.subr.bf16.mxu0 %v1844
        %3378 = vmatpush2.bf16.msra.mxu0 %v1843
        %3379 = vmatprep.subr.bf16.mxu0 %v1842
        %3380 = vmatpush2.bf16.msra.mxu0 %v1841
        %3381 = vmatprep.subr.bf16.mxu0 %v1840
        %3382 = vmatpush2.bf16.msra.mxu0 %v1839
        %3383 = vmatprep.subr.bf16.mxu0 %v1838
        %3384 = vmatpush2.bf16.msra.mxu0 %v1837
        %3385 = vmatprep.subr.bf16.mxu0 %v1836
        %3386 = vmatpush2.bf16.msra.mxu0 %v1835
        %3387 = vmatprep.subr.bf16.mxu0 %v1834
        %3388 = vmatpush2.bf16.msra.mxu0 %v1833
        %3389 = vmatprep.mubr.bf16.mxu0 %v3221
        %3390 = vmatmul.mubr.bf16.gmra.mxu0 %v3220
        %v3391 = vpop.f32.mrf.mxu0
        %v3392 = vadd.f32 0.0, %v3391
        %v3393 = vpop.f32.mrf.mxu0
        %v3394 = vadd.f32 0.0, %v3393
        %v3395 = vpop.f32.mrf.mxu0
        %v3396 = vadd.f32 0.0, %v3395
        %v3397 = vpop.f32.mrf.mxu0
        %v3398 = vadd.f32 0.0, %v3397
        %3399 = vdwg.mxu0
        %v3400 = vpack.c.bf16 %v3396, %v3392
        %v3401 = vpack.c.bf16 %v3398, %v3394
        %3402 = vmatprep.subr.bf16.mxu0 %v2104
        %3403 = vmatpush1.bf16.msra.mxu0 %v2103
        %3404 = vmatprep.subr.bf16.mxu0 %v2102
        %3405 = vmatpush1.bf16.msra.mxu0 %v2101
        %3406 = vmatprep.subr.bf16.mxu0 %v2100
        %3407 = vmatpush1.bf16.msra.mxu0 %v2099
        %3408 = vmatprep.subr.bf16.mxu0 %v2098
        %3409 = vmatpush1.bf16.msra.mxu0 %v2097
        %3410 = vmatprep.subr.bf16.mxu0 %v2096
        %3411 = vmatpush1.bf16.msra.mxu0 %v2095
        %3412 = vmatprep.subr.bf16.mxu0 %v2094
        %3413 = vmatpush1.bf16.msra.mxu0 %v2093
        %3414 = vmatprep.subr.bf16.mxu0 %v2092
        %3415 = vmatpush1.bf16.msra.mxu0 %v2091
        %3416 = vmatprep.subr.bf16.mxu0 %v2090
        %3417 = vmatpush1.bf16.msra.mxu0 %v2089
        %3418 = vmatprep.subr.bf16.mxu0 %v2120
        %3419 = vmatpush2.bf16.msra.mxu0 %v2119
        %3420 = vmatprep.subr.bf16.mxu0 %v2118
        %3421 = vmatpush2.bf16.msra.mxu0 %v2117
        %3422 = vmatprep.subr.bf16.mxu0 %v2116
        %3423 = vmatpush2.bf16.msra.mxu0 %v2115
        %3424 = vmatprep.subr.bf16.mxu0 %v2114
        %3425 = vmatpush2.bf16.msra.mxu0 %v2113
        %3426 = vmatprep.subr.bf16.mxu0 %v2112
        %3427 = vmatpush2.bf16.msra.mxu0 %v2111
        %3428 = vmatprep.subr.bf16.mxu0 %v2110
        %3429 = vmatpush2.bf16.msra.mxu0 %v2109
        %3430 = vmatprep.subr.bf16.mxu0 %v2108
        %3431 = vmatpush2.bf16.msra.mxu0 %v2107
        %3432 = vmatprep.subr.bf16.mxu0 %v2106
        %3433 = vmatpush2.bf16.msra.mxu0 %v2105
        %3434 = vmatprep.mubr.bf16.mxu0 %v3221
        %3435 = vmatmul.mubr.bf16.gmra.mxu0 %v3220
        %v3436 = vpop.f32.mrf.mxu0
        %v3437 = vadd.f32 0.0, %v3436
        %v3438 = vpop.f32.mrf.mxu0
        %v3439 = vadd.f32 0.0, %v3438
        %v3440 = vpop.f32.mrf.mxu0
        %v3441 = vadd.f32 0.0, %v3440
        %v3442 = vpop.f32.mrf.mxu0
        %v3443 = vadd.f32 0.0, %v3442
        %3444 = vdwg.mxu0
        %v3445 = vpack.c.bf16 %v3441, %v3437
        %v3446 = vpack.c.bf16 %v3443, %v3439
        %3447 = vmatprep.subr.bf16.mxu0 %v2356
        %3448 = vmatpush1.bf16.msra.mxu0 %v2355
        %3449 = vmatprep.subr.bf16.mxu0 %v2354
        %3450 = vmatpush1.bf16.msra.mxu0 %v2353
        %3451 = vmatprep.subr.bf16.mxu0 %v2352
        %3452 = vmatpush1.bf16.msra.mxu0 %v2351
        %3453 = vmatprep.subr.bf16.mxu0 %v2350
        %3454 = vmatpush1.bf16.msra.mxu0 %v2349
        %3455 = vmatprep.subr.bf16.mxu0 %v2348
        %3456 = vmatpush1.bf16.msra.mxu0 %v2347
        %3457 = vmatprep.subr.bf16.mxu0 %v2346
        %3458 = vmatpush1.bf16.msra.mxu0 %v2345
        %3459 = vmatprep.subr.bf16.mxu0 %v2344
        %3460 = vmatpush1.bf16.msra.mxu0 %v2343
        %3461 = vmatprep.subr.bf16.mxu0 %v2342
        %3462 = vmatpush1.bf16.msra.mxu0 %v2341
        %3463 = vmatprep.subr.bf16.mxu0 %v2372
        %3464 = vmatpush2.bf16.msra.mxu0 %v2371
        %3465 = vmatprep.subr.bf16.mxu0 %v2370
        %3466 = vmatpush2.bf16.msra.mxu0 %v2369
        %3467 = vmatprep.subr.bf16.mxu0 %v2368
        %3468 = vmatpush2.bf16.msra.mxu0 %v2367
        %3469 = vmatprep.subr.bf16.mxu0 %v2366
        %3470 = vmatpush2.bf16.msra.mxu0 %v2365
        %3471 = vmatprep.subr.bf16.mxu0 %v2364
        %3472 = vmatpush2.bf16.msra.mxu0 %v2363
        %3473 = vmatprep.subr.bf16.mxu0 %v2362
        %3474 = vmatpush2.bf16.msra.mxu0 %v2361
        %3475 = vmatprep.subr.bf16.mxu0 %v2360
        %3476 = vmatpush2.bf16.msra.mxu0 %v2359
        %3477 = vmatprep.subr.bf16.mxu0 %v2358
        %3478 = vmatpush2.bf16.msra.mxu0 %v2357
        %3479 = vmatprep.mubr.bf16.mxu0 %v3221
        %3480 = vmatmul.mubr.bf16.gmra.mxu0 %v3220
        %v3481 = vpop.f32.mrf.mxu0
        %v3482 = vadd.f32 0.0, %v3481
        %v3483 = vpop.f32.mrf.mxu0
        %v3484 = vadd.f32 0.0, %v3483
        %v3485 = vpop.f32.mrf.mxu0
        %v3486 = vadd.f32 0.0, %v3485
        %v3487 = vpop.f32.mrf.mxu0
        %v3488 = vadd.f32 0.0, %v3487
        %3489 = vdwg.mxu0
        %v3490 = vpack.c.bf16 %v3486, %v3482
        %v3491 = vpack.c.bf16 %v3488, %v3484
        %3492 = vmatprep.subr.bf16.mxu0 %v2608
        %3493 = vmatpush1.bf16.msra.mxu0 %v2607
        %3494 = vmatprep.subr.bf16.mxu0 %v2606
        %3495 = vmatpush1.bf16.msra.mxu0 %v2605
        %3496 = vmatprep.subr.bf16.mxu0 %v2604
        %3497 = vmatpush1.bf16.msra.mxu0 %v2603
        %3498 = vmatprep.subr.bf16.mxu0 %v2602
        %3499 = vmatpush1.bf16.msra.mxu0 %v2601
        %3500 = vmatprep.subr.bf16.mxu0 %v2600
        %3501 = vmatpush1.bf16.msra.mxu0 %v2599
        %3502 = vmatprep.subr.bf16.mxu0 %v2598
        %3503 = vmatpush1.bf16.msra.mxu0 %v2597
        %3504 = vmatprep.subr.bf16.mxu0 %v2596
        %3505 = vmatpush1.bf16.msra.mxu0 %v2595
        %3506 = vmatprep.subr.bf16.mxu0 %v2594
        %3507 = vmatpush1.bf16.msra.mxu0 %v2593
        %3508 = vmatprep.subr.bf16.mxu0 %v2624
        %3509 = vmatpush2.bf16.msra.mxu0 %v2623
        %3510 = vmatprep.subr.bf16.mxu0 %v2622
        %3511 = vmatpush2.bf16.msra.mxu0 %v2621
        %3512 = vmatprep.subr.bf16.mxu0 %v2620
        %3513 = vmatpush2.bf16.msra.mxu0 %v2619
        %3514 = vmatprep.subr.bf16.mxu0 %v2618
        %3515 = vmatpush2.bf16.msra.mxu0 %v2617
        %3516 = vmatprep.subr.bf16.mxu0 %v2616
        %3517 = vmatpush2.bf16.msra.mxu0 %v2615
        %3518 = vmatprep.subr.bf16.mxu0 %v2614
        %3519 = vmatpush2.bf16.msra.mxu0 %v2613
        %3520 = vmatprep.subr.bf16.mxu0 %v2612
        %3521 = vmatpush2.bf16.msra.mxu0 %v2611
        %3522 = vmatprep.subr.bf16.mxu0 %v2610
        %3523 = vmatpush2.bf16.msra.mxu0 %v2609
        %3524 = vmatprep.mubr.bf16.mxu0 %v3221
        %3525 = vmatmul.mubr.bf16.gmra.mxu0 %v3220
        %v3526 = vpop.f32.mrf.mxu0
        %v3527 = vadd.f32 0.0, %v3526
        %v3528 = vpop.f32.mrf.mxu0
        %v3529 = vadd.f32 0.0, %v3528
        %v3530 = vpop.f32.mrf.mxu0
        %v3531 = vadd.f32 0.0, %v3530
        %v3532 = vpop.f32.mrf.mxu0
        %v3533 = vadd.f32 0.0, %v3532
        %3534 = vdwg.mxu0
        %v3535 = vpack.c.bf16 %v3531, %v3527
        %v3536 = vpack.c.bf16 %v3533, %v3529
        %3537 = vmatprep.subr.bf16.mxu0 %v2860
        %3538 = vmatpush1.bf16.msra.mxu0 %v2859
        %3539 = vmatprep.subr.bf16.mxu0 %v2858
        %3540 = vmatpush1.bf16.msra.mxu0 %v2857
        %3541 = vmatprep.subr.bf16.mxu0 %v2856
        %3542 = vmatpush1.bf16.msra.mxu0 %v2855
        %3543 = vmatprep.subr.bf16.mxu0 %v2854
        %3544 = vmatpush1.bf16.msra.mxu0 %v2853
        %3545 = vmatprep.subr.bf16.mxu0 %v2852
        %3546 = vmatpush1.bf16.msra.mxu0 %v2851
        %3547 = vmatprep.subr.bf16.mxu0 %v2850
        %3548 = vmatpush1.bf16.msra.mxu0 %v2849
        %3549 = vmatprep.subr.bf16.mxu0 %v2848
        %3550 = vmatpush1.bf16.msra.mxu0 %v2847
        %3551 = vmatprep.subr.bf16.mxu0 %v2846
        %3552 = vmatpush1.bf16.msra.mxu0 %v2845
        %3553 = vmatprep.subr.bf16.mxu0 %v2876
        %3554 = vmatpush2.bf16.msra.mxu0 %v2875
        %3555 = vmatprep.subr.bf16.mxu0 %v2874
        %3556 = vmatpush2.bf16.msra.mxu0 %v2873
        %3557 = vmatprep.subr.bf16.mxu0 %v2872
        %3558 = vmatpush2.bf16.msra.mxu0 %v2871
        %3559 = vmatprep.subr.bf16.mxu0 %v2870
        %3560 = vmatpush2.bf16.msra.mxu0 %v2869
        %3561 = vmatprep.subr.bf16.mxu0 %v2868
        %3562 = vmatpush2.bf16.msra.mxu0 %v2867
        %3563 = vmatprep.subr.bf16.mxu0 %v2866
        %3564 = vmatpush2.bf16.msra.mxu0 %v2865
        %3565 = vmatprep.subr.bf16.mxu0 %v2864
        %3566 = vmatpush2.bf16.msra.mxu0 %v2863
        %3567 = vmatprep.subr.bf16.mxu0 %v2862
        %3568 = vmatpush2.bf16.msra.mxu0 %v2861
        %3569 = vmatprep.mubr.bf16.mxu0 %v3221
        %3570 = vmatmul.mubr.bf16.gmra.mxu0 %v3220
        %v3571 = vpop.f32.mrf.mxu0
        %v3572 = vadd.f32 0.0, %v3571
        %v3573 = vpop.f32.mrf.mxu0
        %v3574 = vadd.f32 0.0, %v3573
        %v3575 = vpop.f32.mrf.mxu0
        %v3576 = vadd.f32 0.0, %v3575
        %v3577 = vpop.f32.mrf.mxu0
        %v3578 = vadd.f32 0.0, %v3577
        %3579 = vdwg.mxu0
        %v3580 = vpack.c.bf16 %v3576, %v3572
        %v3581 = vpack.c.bf16 %v3578, %v3574
        %v3582 = vld [vmem:[#allocation27] sm:$0xf]
        %v3583 = vld [vmem:[#allocation27 + $0x4] sm:$0xf]
        %v3584 = vld [vmem:[#allocation27 + $0x8] sm:$0xf]
        %v3585 = vld [vmem:[#allocation27 + $0xc] sm:$0xf]
        %v3586 = vld [vmem:[#allocation27 + $0x10] sm:$0xf]
        %v3587 = vld [vmem:[#allocation27 + $0x14] sm:$0xf]
        %v3588 = vld [vmem:[#allocation27 + $0x18] sm:$0xf]
        %v3589 = vld [vmem:[#allocation27 + $0x1c] sm:$0xf]
        %v3590 = vld [vmem:[#allocation27 + $0x20] sm:$0xf]
        %v3591 = vld [vmem:[#allocation27 + $0x24] sm:$0xf]
        %v3592 = vld [vmem:[#allocation27 + $0x28] sm:$0xf]
        %v3593 = vld [vmem:[#allocation27 + $0x2c] sm:$0xf]
        %v3594 = vld [vmem:[#allocation27 + $0x30] sm:$0xf]
        %v3595 = vld [vmem:[#allocation27 + $0x34] sm:$0xf]
        %v3596 = vld [vmem:[#allocation27 + $0x38] sm:$0xf]
        %v3597 = vld [vmem:[#allocation27 + $0x3c] sm:$0xf]
        %v3598 = vld [vmem:[#allocation27 + $0x40] sm:$0xf]
        %v3599 = vld [vmem:[#allocation27 + $0x44] sm:$0xf]
        %v3600 = vld [vmem:[#allocation27 + $0x48] sm:$0xf]
        %v3601 = vld [vmem:[#allocation27 + $0x4c] sm:$0xf]
        %v3602 = vld [vmem:[#allocation27 + $0x50] sm:$0xf]
        %v3603 = vld [vmem:[#allocation27 + $0x54] sm:$0xf]
        %v3604 = vld [vmem:[#allocation27 + $0x58] sm:$0xf]
        %v3605 = vld [vmem:[#allocation27 + $0x5c] sm:$0xf]
        %v3606 = vld [vmem:[#allocation27 + $0x60] sm:$0xf]
        %v3607 = vld [vmem:[#allocation27 + $0x64] sm:$0xf]
        %v3608 = vld [vmem:[#allocation27 + $0x68] sm:$0xf]
        %v3609 = vld [vmem:[#allocation27 + $0x6c] sm:$0xf]
        %v3610 = vld [vmem:[#allocation27 + $0x70] sm:$0xf]
        %v3611 = vld [vmem:[#allocation27 + $0x74] sm:$0xf]
        %v3612 = vld [vmem:[#allocation27 + $0x78] sm:$0xf]
        %v3613 = vld [vmem:[#allocation27 + $0x7c] sm:$0xf]
        %v3646 = vunpack.c.l.b16 %v3582
        %v3647 = vunpack.c.l.b16 %v3583
        %v3648 = vunpack.c.l.b16 %v3584
        %v3649 = vunpack.c.l.b16 %v3585
        %v3650 = vunpack.c.l.b16 %v3586
        %v3651 = vunpack.c.l.b16 %v3587
        %v3652 = vunpack.c.l.b16 %v3588
        %v3653 = vunpack.c.l.b16 %v3589
        %v3654 = vunpack.c.l.b16 %v3590
        %v3655 = vunpack.c.l.b16 %v3591
        %v3656 = vunpack.c.l.b16 %v3592
        %v3657 = vunpack.c.l.b16 %v3593
        %v3658 = vunpack.c.l.b16 %v3594
        %v3659 = vunpack.c.l.b16 %v3595
        %v3660 = vunpack.c.l.b16 %v3596
        %v3661 = vunpack.c.l.b16 %v3597
        %v3662 = vunpack.c.l.b16 %v3598
        %v3663 = vunpack.c.l.b16 %v3599
        %v3664 = vunpack.c.l.b16 %v3600
        %v3665 = vunpack.c.l.b16 %v3601
        %v3666 = vunpack.c.l.b16 %v3602
        %v3667 = vunpack.c.l.b16 %v3603
        %v3668 = vunpack.c.l.b16 %v3604
        %v3669 = vunpack.c.l.b16 %v3605
        %v3670 = vunpack.c.l.b16 %v3606
        %v3671 = vunpack.c.l.b16 %v3607
        %v3672 = vunpack.c.l.b16 %v3608
        %v3673 = vunpack.c.l.b16 %v3609
        %v3674 = vunpack.c.l.b16 %v3610
        %v3675 = vunpack.c.l.b16 %v3611
        %v3676 = vunpack.c.l.b16 %v3612
        %v3677 = vunpack.c.l.b16 %v3613
        %v3678 = vpack.c.b16 %v3647, %v3646
        %v3679 = vpack.c.b16 %v3649, %v3648
        %v3680 = vpack.c.b16 %v3651, %v3650
        %v3681 = vpack.c.b16 %v3653, %v3652
        %v3682 = vpack.c.b16 %v3655, %v3654
        %v3683 = vpack.c.b16 %v3657, %v3656
        %v3684 = vpack.c.b16 %v3659, %v3658
        %v3685 = vpack.c.b16 %v3661, %v3660
        %v3686 = vpack.c.b16 %v3663, %v3662
        %v3687 = vpack.c.b16 %v3665, %v3664
        %v3688 = vpack.c.b16 %v3667, %v3666
        %v3689 = vpack.c.b16 %v3669, %v3668
        %v3690 = vpack.c.b16 %v3671, %v3670
        %v3691 = vpack.c.b16 %v3673, %v3672
        %v3692 = vpack.c.b16 %v3675, %v3674
        %v3693 = vpack.c.b16 %v3677, %v3676
        %3710 = vmatprep.subr.bf16.mxu0 0
        %3711 = vmatpush1.bf16.msra.mxu0 %v3685
        %3712 = vmatprep.subr.bf16.mxu0 0
        %3713 = vmatpush1.bf16.msra.mxu0 %v3684
        %3714 = vmatprep.subr.bf16.mxu0 0
        %3715 = vmatpush1.bf16.msra.mxu0 %v3683
        %3716 = vmatprep.subr.bf16.mxu0 0
        %3717 = vmatpush1.bf16.msra.mxu0 %v3682
        %3718 = vmatprep.subr.bf16.mxu0 0
        %3719 = vmatpush1.bf16.msra.mxu0 %v3681
        %3720 = vmatprep.subr.bf16.mxu0 0
        %3721 = vmatpush1.bf16.msra.mxu0 %v3680
        %3722 = vmatprep.subr.bf16.mxu0 0
        %3723 = vmatpush1.bf16.msra.mxu0 %v3679
        %3724 = vmatprep.subr.bf16.mxu0 0
        %3725 = vmatpush1.bf16.msra.mxu0 %v3678
        %3726 = vmatprep.subr.bf16.mxu0 0
        %3727 = vmatpush2.bf16.msra.mxu0 %v3693
        %3728 = vmatprep.subr.bf16.mxu0 0
        %3729 = vmatpush2.bf16.msra.mxu0 %v3692
        %3730 = vmatprep.subr.bf16.mxu0 0
        %3731 = vmatpush2.bf16.msra.mxu0 %v3691
        %3732 = vmatprep.subr.bf16.mxu0 0
        %3733 = vmatpush2.bf16.msra.mxu0 %v3690
        %3734 = vmatprep.subr.bf16.mxu0 0
        %3735 = vmatpush2.bf16.msra.mxu0 %v3689
        %3736 = vmatprep.subr.bf16.mxu0 0
        %3737 = vmatpush2.bf16.msra.mxu0 %v3688
        %3738 = vmatprep.subr.bf16.mxu0 0
        %3739 = vmatpush2.bf16.msra.mxu0 %v3687
        %3740 = vmatprep.subr.bf16.mxu0 0
        %3741 = vmatpush2.bf16.msra.mxu0 %v3686
        %3742 = vmatprep.mubr.bf16.mxu0 %v3266
        %3743 = vmatmul.mubr.bf16.gmra.mxu0 %v3265
        %v3744 = vpop.f32.mrf.mxu0
        %v3745 = vadd.f32 0.0, %v3744
        %v3746 = vpop.f32.mrf.mxu0
        %v3747 = vpop.f32.mrf.mxu0
        %v3748 = vadd.f32 0.0, %v3747
        %v3749 = vpop.f32.mrf.mxu0
        %3750 = vmatprep.mubr.bf16.mxu0 %v3311
        %3751 = vmatmul.mubr.bf16.gmra.mxu0 %v3310
        %v3752 = vpop.f32.mrf.mxu0
        %v3753 = vadd.f32 0.0, %v3752
        %v3754 = vpop.f32.mrf.mxu0
        %v3755 = vpop.f32.mrf.mxu0
        %v3756 = vadd.f32 0.0, %v3755
        %v3757 = vpop.f32.mrf.mxu0
        %3758 = vmatprep.mubr.bf16.mxu0 %v3356
        %3759 = vmatmul.mubr.bf16.gmra.mxu0 %v3355
        %v3760 = vpop.f32.mrf.mxu0
        %v3761 = vadd.f32 0.0, %v3760
        %v3762 = vpop.f32.mrf.mxu0
        %v3763 = vpop.f32.mrf.mxu0
        %v3764 = vadd.f32 0.0, %v3763
        %v3765 = vpop.f32.mrf.mxu0
        %3766 = vmatprep.mubr.bf16.mxu0 %v3401
        %3767 = vmatmul.mubr.bf16.gmra.mxu0 %v3400
        %v3768 = vpop.f32.mrf.mxu0
        %v3769 = vadd.f32 0.0, %v3768
        %v3770 = vpop.f32.mrf.mxu0
        %v3771 = vpop.f32.mrf.mxu0
        %v3772 = vadd.f32 0.0, %v3771
        %v3773 = vpop.f32.mrf.mxu0
        %3774 = vmatprep.mubr.bf16.mxu0 %v3221
        %3775 = vmatmul.mubr.bf16.gmra.mxu0 %v3220
        %v3776 = vpop.f32.mrf.mxu0
        %v3777 = vadd.f32 0.0, %v3776
        %v3778 = vpop.f32.mrf.mxu0
        %v3779 = vpop.f32.mrf.mxu0
        %v3780 = vadd.f32 0.0, %v3779
        %v3781 = vpop.f32.mrf.mxu0
        %3782 = vmatprep.mubr.bf16.mxu0 %v3446
        %3783 = vmatmul.mubr.bf16.gmra.mxu0 %v3445
        %v3784 = vpop.f32.mrf.mxu0
        %v3785 = vadd.f32 0.0, %v3784
        %v3786 = vpop.f32.mrf.mxu0
        %v3787 = vpop.f32.mrf.mxu0
        %v3788 = vadd.f32 0.0, %v3787
        %v3789 = vpop.f32.mrf.mxu0
        %3790 = vmatprep.mubr.bf16.mxu0 %v3491
        %3791 = vmatmul.mubr.bf16.gmra.mxu0 %v3490
        %v3792 = vpop.f32.mrf.mxu0
        %v3793 = vadd.f32 0.0, %v3792
        %v3794 = vpop.f32.mrf.mxu0
        %v3795 = vpop.f32.mrf.mxu0
        %v3796 = vadd.f32 0.0, %v3795
        %v3797 = vpop.f32.mrf.mxu0
        %3798 = vmatprep.mubr.bf16.mxu0 %v3536
        %3799 = vmatmul.mubr.bf16.gmra.mxu0 %v3535
        %v3800 = vpop.f32.mrf.mxu0
        %v3801 = vadd.f32 0.0, %v3800
        %v3802 = vpop.f32.mrf.mxu0
        %v3803 = vpop.f32.mrf.mxu0
        %v3804 = vadd.f32 0.0, %v3803
        %v3805 = vpop.f32.mrf.mxu0
        %3806 = vmatprep.mubr.bf16.mxu0 %v3581
        %3807 = vmatmul.mubr.bf16.gmra.mxu0 %v3580
        %v3808 = vpop.f32.mrf.mxu0
        %v3809 = vadd.f32 0.0, %v3808
        %v3810 = vpop.f32.mrf.mxu0
        %v3811 = vpop.f32.mrf.mxu0
        %v3812 = vadd.f32 0.0, %v3811
        %v3813 = vpop.f32.mrf.mxu0
        %3814 = vdwg.mxu0
        %v3815 = vpack.c.bf16 %v3748, %v3745
        %v3816 = vpack.c.bf16 %v3756, %v3753
        %v3817 = vpack.c.bf16 %v3764, %v3761
        %v3818 = vpack.c.bf16 %v3772, %v3769
        %v3819 = vpack.c.bf16 %v3780, %v3777
        %v3820 = vpack.c.bf16 %v3788, %v3785
        %v3821 = vpack.c.bf16 %v3796, %v3793
        %v3822 = vpack.c.bf16 %v3804, %v3801
        %v3823 = vpack.c.bf16 %v3812, %v3809
        %v3824 = vld [vmem:[#allocation22] sm:$0xff]
        %v3825 = vld [vmem:[#allocation22 + $0x8] sm:$0xff]
        %v3828 = vunpack.c.l.b16 %v3824
        %v3829 = vunpack.c.h.b16 %v3824
        %v3830 = vunpack.c.l.b16 %v3825
        %v3831 = vunpack.c.h.b16 %v3825
        %v3832 = vpack.c.b16 %v3830, %v3828
        %v3833 = vpack.c.b16 %v3831, %v3829
        %v3836 = vsel %vm3025, %v3833, 0
        %3838 = vmatprep.subr.bf16.mxu0 0
        %3839 = vmatpush1.bf16.msra.mxu0 %v3822
        %3840 = vmatprep.subr.bf16.mxu0 0
        %3841 = vmatpush1.bf16.msra.mxu0 %v3821
        %3842 = vmatprep.subr.bf16.mxu0 0
        %3843 = vmatpush1.bf16.msra.mxu0 %v3820
        %3844 = vmatprep.subr.bf16.mxu0 0
        %3845 = vmatpush1.bf16.msra.mxu0 %v3819
        %3846 = vmatprep.subr.bf16.mxu0 0
        %3847 = vmatpush1.bf16.msra.mxu0 %v3818
        %3848 = vmatprep.subr.bf16.mxu0 0
        %3849 = vmatpush1.bf16.msra.mxu0 %v3817
        %3850 = vmatprep.subr.bf16.mxu0 0
        %3851 = vmatpush1.bf16.msra.mxu0 %v3816
        %3852 = vmatprep.subr.bf16.mxu0 0
        %3853 = vmatpush1.bf16.msra.mxu0 %v3815
        %3854 = vmatprep.subr.bf16.mxu0 0
        %3855 = vmatpush2.bf16.msra.mxu0 0
        %3856 = vmatprep.subr.bf16.mxu0 0
        %3857 = vmatpush2.bf16.msra.mxu0 0
        %3858 = vmatprep.subr.bf16.mxu0 0
        %3859 = vmatpush2.bf16.msra.mxu0 0
        %3860 = vmatprep.subr.bf16.mxu0 0
        %3861 = vmatpush2.bf16.msra.mxu0 0
        %3862 = vmatprep.subr.bf16.mxu0 0
        %3863 = vmatpush2.bf16.msra.mxu0 0
        %3864 = vmatprep.subr.bf16.mxu0 0
        %3865 = vmatpush2.bf16.msra.mxu0 0
        %3866 = vmatprep.subr.bf16.mxu0 0
        %3867 = vmatpush2.bf16.msra.mxu0 0
        %3868 = vmatprep.subr.bf16.mxu0 0
        %3869 = vmatpush2.bf16.msra.mxu0 %v3823
        %3870 = vmatprep.mubr.bf16.mxu0 %v3836
        %3871 = vmatmul.mubr.bf16.gmra.mxu0 %v3832
        %v3872 = vpop.f32.mrf.mxu0
        %v3873 = vadd.f32 0.0, %v3872
        %v3874 = vpop.f32.mrf.mxu0
        %v3875 = vpop.f32.mrf.mxu0
        %v3876 = vadd.f32 0.0, %v3875
        %v3877 = vpop.f32.mrf.mxu0
        %3878 = vdwg.mxu0
        %v3879 = vld [vmem:[#allocation24] sm:$0xff]
        %v3880 = vld [vmem:[#allocation24 + $0x8] sm:$0xff]
        %3882 = vset.pattern.permute.xlu0 0
        %3883 = vperm.xlu0 %3882, %v3879
        %v3884 = vpop.permute.xlu0 %3883
        %3887 = vset.pattern.permute.xlu0 0
        %3888 = vperm.xlu0 %3887, %v3880
        %v3889 = vpop.permute.xlu0 %3888
        %v3891 = vmul.f32 %v3873, %v3884
        %v3892 = vmul.f32 %v3876, %v3889
        %v3893 = vld [vmem:[#allocation25] sm:$0xff]
        %v3894 = vld [vmem:[#allocation25 + $0x8] sm:$0xff]
        %3896 = vset.pattern.permute.xlu0 0
        %3897 = vperm.xlu0 %3896, %v3893
        %v3898 = vpop.permute.xlu0 %3897
        %3901 = vset.pattern.permute.xlu0 0
        %3902 = vperm.xlu0 %3901, %v3894
        %v3903 = vpop.permute.xlu0 %3902
        %v3905 = vadd.f32 %v3891, %v3898
        %v3906 = vadd.f32 %v3892, %v3903
        %v3907 = vmax.f32 %v3905, 0.0
        %v3908 = vmax.f32 %v3906, 0.0
        %vm3909 = vcmask 523264
        %3910 = vst.msk [vmem:[%s822] sm:$0xff] %vm3909, %v3907
        %3911 = vst.msk [vmem:[%s822 + $0x8] sm:$0xff] %vm3909, %v3908
        %p3912 = scmp.lt.s32.totalorder %s38, 1
        %s3913 = scalar_select %p3912, %s38, 1
        %s3914 = smul.addr %s3913, 2
        %s3915 = smul.addr %s3914, 8
        %s3916 = scalar_lea.vmem %s18, %s3915
        // Predicated region
        $region161: #{_lambda_.1} parent=91 // pred_check
          %p3917 = pneg %p439
        $region162: #{_lambda_.1} parent=91 // pred_check_branch
          %3919 = sbr.rel (%p3917) target = $region164
        $region163: #{_lambda_.1} parent=91 // pred_region
          _
        $region164: #{_lambda_.1} parent=91 // pred_fallthru
          _
      $region92: #{_lambda_.1} parent=5 // pred_fallthru
        _
      %p3920 = scmp.le.s32.totalorder 2, %s33
      // Predicated region
      $region165: #{_lambda_.1} parent=5 // pred_check
        %p3921 = pneg %p3920
      $region166: #{_lambda_.1} parent=5 // pred_check_branch
        %3923 = sbr.rel (%p3921) target = $region168
      $region167: #{_lambda_.1} parent=5 // pred_region
        %s3924 = ssub.s32 %s33, 2
        // Predicated region
        $region169: #{_lambda_.1} parent=167 // pred_check
          %p3925 = pneg %p445
        $region170: #{_lambda_.1} parent=167 // pred_check_branch
          %3927 = sbr.rel (%p3925) target = $region172
        $region171: #{_lambda_.1} parent=167 // pred_region
          %p3928 = scmp.lt.s32.totalorder %s39, 1
          %s3929 = scalar_select %p3928, %s39, 1
          %s3930 = smul.addr %s3929, 2
          %s3931 = smul.addr %s3930, 8
          %s3932 = scalar_lea.vmem %s18, %s3931
        $region172: #{_lambda_.1} parent=167 // pred_fallthru
          _
      $region168: #{_lambda_.1} parent=5 // pred_fallthru
        _
    $region6: #{_lambda_.1} parent=1 // loop_footer
      %s37 = sadd.s32 1, %s33
    $region7: #{_lambda_.1} parent=1 // loop_footer_branch
      %32 = sbr.rel target = $region3
    $region8: #{_lambda_.1} parent=1 // loop_exit
      _
    %3933 = vsyncpa [#allocation3], 1
    %s3934 = scalar_lea.sflag [#allocation3], 1
    %3935 = vsyncpa %s3934, 1
    %3936 = vsyncpa [#allocation5], 1
    %3937 = vsyncpa [#allocation8], 1
    %3938 = vsyncpa [#allocation11], 1
    %3939 = vsyncpa [#allocation14], 1
    %3940 = vsyncpa [#allocation17], 1
    %3941 = vsyncpa [#allocation20], 1
    %3942 = vsyncpa [#allocation23], 1
    %3943 = vsyncpa [#allocation26], 1

</llo_original>
